<compile_context>
chip_gen: v6e
topology: v6e:2x2x1
jax: 0.10.0
libtpu: 0.0.40
codegen_flags: <defaults>
</compile_context>

<pallas_src>
import jax
import jax.numpy as jnp
from jax.experimental import pallas as pl
from jax.experimental.pallas import tpu as pltpu

HIDDEN = 128  # fc1 / fc2 width from the module


def _round_up(x, m):
    return ((x + m - 1) // m) * m


def _choose_block_bt(BT):
    """Timesteps per grid step: multiple of 16 (bf16 sublane alignment),
    capped at 512 (per-step VMEM stays a few MiB), and >= 2 grid steps once
    BT >= 32 so v7x's two TensorCores both get work."""
    if BT < 32:
        return _round_up(max(BT, 1), 16)
    tb = min(512, _round_up(pl.cdiv(BT, 4), 16))
    tb = max(tb, 16)
    if pl.cdiv(BT, tb) < 2:
        tb = max(16, _round_up(pl.cdiv(BT, 2), 16))
    return tb


# ----------------------------------------------------------------------------
# Pallas kernel: split-W1 fc1 -> fc2 -> fc3 over off-diagonal pairs, then
# chunked add_q_values aggregation, for a block of TB timesteps.
# ----------------------------------------------------------------------------
def pair_coma_kernel(state_ref, fi_ref, fj_ref, oh_ref,
                     w1s_ref, w1i_ref, w1j_ref, b1_ref,
                     w2_ref, b2_ref, w3_ref, b3_ref,
                     out_ref, q_scr):
    f32 = jnp.float32
    n = oh_ref.shape[0]
    A = oh_ref.shape[2]
    tb = state_ref.shape[0]

    # ---- fc1 as split-W1 partial sums (state / agent-i / agent-j blocks) ----
    h_s = jnp.dot(state_ref[...], w1s_ref[...],
                  preferred_element_type=f32) + b1_ref[...]          # (TB, H)
    h_i = [h_s + jnp.dot(fi_ref[i], w1i_ref[...], preferred_element_type=f32)
           for i in range(n)]                                        # n x (TB, H)
    h_j = [jnp.dot(fj_ref[j], w1j_ref[...], preferred_element_type=f32)
           for j in range(n)]                                        # n x (TB, H)

    # ---- fc2 / fc3 per OFF-DIAGONAL pair; diagonal pairs are skipped exactly
    # (torch zeroes them with (1 - identity)).  Results go to a VMEM scratch.
    p = 0
    for i in range(n):
        for j in range(n):
            if i == j:
                continue
            h1 = jnp.maximum(h_i[i] + h_j[j], 0.0).astype(jnp.bfloat16)
            h2 = jnp.dot(h1, w2_ref[...], preferred_element_type=f32) + b2_ref[...]
            h2 = jnp.maximum(h2, 0.0).astype(jnp.bfloat16)
            q_scr[p] = jnp.dot(h2, w3_ref[...],
                               preferred_element_type=f32) + b3_ref[...]   # (TB, A)
            p += 1

    # ---- add_q_values, chunked over timesteps to bound vreg pressure --------
    TBC = 16                       # rows per chunk -> accumulators are 1-2 vregs
    nchunks = tb // TBC

    def chunk_body(c, carry):
        base = pl.multiple_of(c * TBC, TBC)
        rows = pl.ds(base, TBC)
        oh_c = [oh_ref[i, rows, :] for i in range(n)]           # one-hot(a_i)
        q_part = [jnp.zeros((TBC, A), f32) for _ in range(n)]   # sum_j q[i,j,:]
        q_sub = [jnp.zeros((TBC, 1), f32) for _ in range(n)]    # q_part_2 + q_part_3
        q_tot = jnp.zeros((TBC, 1), f32)                        # q_taken_tot
        p = 0
        for i in range(n):
            for j in range(n):
                if i == j:
                    continue
                q_ij = q_scr[p, rows, :]                               # (TBC, A)
                qt = jnp.sum(q_ij * oh_c[i], axis=-1, keepdims=True)   # gather a_i
                q_part[i] = q_part[i] + q_ij
                q_sub[i] = q_sub[i] + qt          # q_part_2[i]
                q_sub[j] = q_sub[j] + qt          # q_part_3[j]
                q_tot = q_tot + qt
                p += 1
        for k in range(n):
            out_ref[k, rows, :] = q_tot - q_sub[k] + 2.0 * q_part[k]
        return carry

    jax.lax.fori_loop(0, nchunks, chunk_body, 0)


# ----------------------------------------------------------------------------
# Forward wrapper
# ----------------------------------------------------------------------------
def pair_coma_forward(state, obs, actions, actions_onehot, params,
                      n_agents, n_actions, block_bt=None):
    bs, T = state.shape[0], state.shape[1]
    BT = bs * T
    n, A = n_agents, n_actions
    S = state.shape[-1]
    O = obs.shape[-1]
    bf16 = jnp.bfloat16

    # --- per-agent / shared feature tensors built directly in bf16 (the
    #     n^2-redundant pair tensor of _build_inputs is never materialized). --
    st = state.reshape(BT, S).astype(bf16)                                 # (BT, S)
    ob = obs.reshape(BT, n, O).transpose(1, 0, 2).astype(bf16)             # (n, BT, O)
    last = jnp.concatenate(
        [jnp.zeros_like(actions_onehot[:, :1]), actions_onehot[:, :-1]], axis=1)
    la = last.reshape(BT, n, A).transpose(1, 0, 2).astype(bf16)            # (n, BT, A)
    cur = actions_onehot.reshape(BT, n, A).transpose(1, 0, 2).astype(bf16) # (n, BT, A)
    eye_b = jnp.broadcast_to(jnp.eye(n, dtype=bf16)[:, None, :], (n, BT, n))
    feat_i = jnp.concatenate([ob, la, eye_b], axis=-1)                     # (n, BT, Fi)
    feat_j = jnp.concatenate([la, eye_b, cur], axis=-1)                    # (n, BT, Fj)
    oh = jax.nn.one_hot(actions[..., 0], A, dtype=jnp.float32)             # gather index
    oh = oh.reshape(BT, n, A).transpose(1, 0, 2)                           # (n, BT, A)
    Fi = O + A + n
    Fj = A + n + A

    # --- split W1 row-wise to match the [state | agent-i | agent-j] features.
    #     Original feature order: [state, obs_i, last_i, last_j, id_i, id_j, cur_j].
    w1, b1, w2, b2, w3, b3 = params
    o_obs = slice(S, S + O)
    o_li = slice(S + O, S + O + A)
    o_lj = slice(S + O + A, S + O + 2 * A)
    o_ii = slice(S + O + 2 * A, S + O + 2 * A + n)
    o_ij = slice(S + O + 2 * A + n, S + O + 2 * A + 2 * n)
    o_cj = slice(S + O + 2 * A + 2 * n, S + O + 2 * A + 2 * n + A)
    w1s = w1[:S].astype(bf16)
    w1i = jnp.concatenate([w1[o_obs], w1[o_li], w1[o_ii]], axis=0).astype(bf16)
    w1j = jnp.concatenate([w1[o_lj], w1[o_ij], w1[o_cj]], axis=0).astype(bf16)
    w2 = w2.astype(bf16)
    w3 = w3.astype(bf16)
    b1 = b1.astype(jnp.float32)
    b2 = b2.astype(jnp.float32)
    b3 = b3.astype(jnp.float32)
    H = w2.shape[0]

    # --- tiling over timesteps ---
    if block_bt is None:
        block_bt = _choose_block_bt(BT)
    TB = _round_up(int(block_bt), 16)
    BT_pad = _round_up(BT, TB)
    if BT_pad != BT:
        pad = BT_pad - BT
        st = jnp.pad(st, ((0, pad), (0, 0)))
        feat_i = jnp.pad(feat_i, ((0, 0), (0, pad), (0, 0)))
        feat_j = jnp.pad(feat_j, ((0, 0), (0, pad), (0, 0)))
        oh = jnp.pad(oh, ((0, 0), (0, pad), (0, 0)))
    grid = (BT_pad // TB,)
    P = n * (n - 1)  # off-diagonal pairs only

    const2 = lambda g: (0, 0)

    out = pl.pallas_call(
        pair_coma_kernel,
        out_shape=jax.ShapeDtypeStruct((n, BT_pad, A), jnp.float32),
        grid_spec=pltpu.PrefetchScalarGridSpec(
            num_scalar_prefetch=0,
            grid=grid,
            in_specs=[
                pl.BlockSpec((TB, S), lambda g: (g, 0)),          # state
                pl.BlockSpec((n, TB, Fi), lambda g: (0, g, 0)),   # agent-i features
                pl.BlockSpec((n, TB, Fj), lambda g: (0, g, 0)),   # agent-j features
                pl.BlockSpec((n, TB, A), lambda g: (0, g, 0)),    # one-hot(actions)
                pl.BlockSpec((S, H), const2),                     # W1 state rows (bf16)
                pl.BlockSpec((Fi, H), const2),                    # W1 agent-i rows
                pl.BlockSpec((Fj, H), const2),                    # W1 agent-j rows
                pl.BlockSpec((1, H), const2),                     # b1
                pl.BlockSpec((H, H), const2),                     # W2 (bf16)
                pl.BlockSpec((1, H), const2),                     # b2
                pl.BlockSpec((H, A), const2),                     # W3 (bf16)
                pl.BlockSpec((1, A), const2),                     # b3
            ],
            out_specs=pl.BlockSpec((n, TB, A), lambda g: (0, g, 0)),
            scratch_shapes=[pltpu.VMEM((P, TB, A), jnp.float32)],
        ),
        compiler_params=pltpu.CompilerParams(
            dimension_semantics=("parallel",),
            vmem_limit_bytes=32 * 1024 * 1024,
        ),
    )(st, feat_i, feat_j, oh, w1s, w1i, w1j, b1, w2, b2, w3, b3)

    # (n, BT_pad, A) -> (bs, T, n, A); transpose/reshape of a tiny tensor in XLA.
    q_final = out[:, :BT, :].transpose(1, 0, 2).reshape(bs, T, n, A)
    return q_final, q_final  # module returns (q_final, q_final)


# ----------------------------------------------------------------------------
# Pure-JAX reference mirroring the torch code (for correctness check)
# ----------------------------------------------------------------------------
def build_inputs(state, obs, actions_onehot, n_agents):
    """Batch-major builder mirroring the torch _build_inputs (reference path)."""
    bs, T = state.shape[0], state.shape[1]
    n = n_agents
    A = actions_onehot.shape[-1]
    st = jnp.broadcast_to(state[:, :, None, None, :], (bs, T, n, n, state.shape[-1]))
    ob = jnp.broadcast_to(obs[:, :, :, None, :], (bs, T, n, n, obs.shape[-1]))
    last = jnp.concatenate(
        [jnp.zeros_like(actions_onehot[:, :1]), actions_onehot[:, :-1]], axis=1)
    la1 = jnp.broadcast_to(last[:, :, :, None, :], (bs, T, n, n, A))
    la2 = jnp.broadcast_to(last[:, :, None, :, :], (bs, T, n, n, A))
    eye = jnp.eye(n, dtype=state.dtype)
    id1 = jnp.broadcast_to(eye[None, None, :, None, :], (bs, T, n, n, n))
    id2 = jnp.broadcast_to(eye[None, None, None, :, :], (bs, T, n, n, n))
    ca = jnp.broadcast_to(actions_onehot[:, :, None, :, :], (bs, T, n, n, A))
    return jnp.concatenate([st, ob, la1, la2, id1, id2, ca], axis=-1)


def ref_forward(inputs5, actions, params, n, A, mixed=True):
    w1, b1, w2, b2, w3, b3 = params

    def mm(x, w):
        if mixed:  # mirror the kernel's bf16 matmul inputs / f32 accumulation
            x = x.astype(jnp.bfloat16).astype(jnp.float32)
            w = w.astype(jnp.bfloat16).astype(jnp.float32)
        return x @ w

    h = jnp.maximum(mm(inputs5, w1) + b1[0], 0.0)
    h = jnp.maximum(mm(h, w2) + b2[0], 0.0)
    q = mm(h, w3) + b3[0]                                            # (bs,T,n,n,A)
    bs, T = q.shape[0], q.shape[1]
    eye = jnp.eye(n, dtype=q.dtype)[None, None, :, :, None]
    q = (1.0 - eye) * q
    idx = jnp.broadcast_to(actions[:, :, :, None, :], (bs, T, n, n, 1))
    q_taken = jnp.take_along_axis(q, idx, axis=4)[..., 0]            # (bs,T,n,n)
    q_taken_tot = q_taken.sum(3).sum(2)[:, :, None, None]
    q_part = q.sum(3)
    q_part_2 = q_taken.sum(3)[:, :, :, None]
    q_part_3 = q_taken.sum(2)[:, :, :, None]
    return q_taken_tot - q_part_3 - q_part_2 + 2.0 * q_part


def init_params(key, D, A):
    k = jax.random.split(key, 6)

    def lin(kw, kb, fin, fout):
        bound = 1.0 / float(fin) ** 0.5
        w = jax.random.uniform(kw, (fin, fout), jnp.float32, -bound, bound)
        b = jax.random.uniform(kb, (1, fout), jnp.float32, -bound, bound)
        return w, b

    w1, b1 = lin(k[0], k[1], D, HIDDEN)
    w2, b2 = lin(k[2], k[3], HIDDEN, HIDDEN)
    w3, b3 = lin(k[4], k[5], HIDDEN, A)
    return w1, b1, w2, b2, w3, b3


if __name__ == "__main__":
    key = jax.random.PRNGKey(0)
    bs, T, n, A = 4, 7, 3, 5                 # batch, max_seq_length, n_agents, n_actions
    state_dim, obs_dim = 12, 10
    D = state_dim + obs_dim + 3 * A + 2 * n  # _get_input_shape

    ks = jax.random.split(key, 4)
    state = jax.random.normal(ks[0], (bs, T, state_dim), jnp.float32)
    obs = jax.random.normal(ks[1], (bs, T, n, obs_dim), jnp.float32)
    actions = jax.random.randint(ks[2], (bs, T, n, 1), 0, A)
    actions_onehot = jax.nn.one_hot(actions[..., 0], A, dtype=jnp.float32)
    params = init_params(ks[3], D, A)

    # block_bt=16 -> BT=28 pads to 32, grid=(2,): exercises padding + multi-step.
    q_final, q_final_2 = pair_coma_forward(
        state, obs, actions, actions_onehot, params, n, A, block_bt=16)
    q_final = jax.block_until_ready(q_final)
    assert q_final.shape == (bs, T, n, A)
    assert q_final_2.shape == (bs, T, n, A)

    # Correctness vs a pure-JAX mirror of the torch module (bf16-matmul mimic).
    inputs5 = build_inputs(state, obs, actions_onehot, n)
    assert inputs5.shape == (bs, T, n, n, D)
    ref = ref_forward(inputs5, actions, params, n, A, mixed=True)
    err = float(jnp.max(jnp.abs(q_final - ref)))
    assert jnp.allclose(q_final, ref, rtol=2e-2, atol=2e-2), err

    print("KERNEL_OK")
</pallas_src>

<mosaic_0001>
module attributes {stable_mosaic.version = 11 : i64} {
  func.func @pair_coma_kernel(%arg0: i32, %arg1: memref<16x12xbf16, #tpu.memory_space<vmem>>, %arg2: memref<3x16x18xbf16, #tpu.memory_space<vmem>>, %arg3: memref<3x16x13xbf16, #tpu.memory_space<vmem>>, %arg4: memref<3x16x5xf32, #tpu.memory_space<vmem>>, %arg5: memref<12x128xbf16, #tpu.memory_space<vmem>>, %arg6: memref<18x128xbf16, #tpu.memory_space<vmem>>, %arg7: memref<13x128xbf16, #tpu.memory_space<vmem>>, %arg8: memref<1x128xf32, #tpu.memory_space<vmem>>, %arg9: memref<128x128xbf16, #tpu.memory_space<vmem>>, %arg10: memref<1x128xf32, #tpu.memory_space<vmem>>, %arg11: memref<128x5xbf16, #tpu.memory_space<vmem>>, %arg12: memref<1x5xf32, #tpu.memory_space<vmem>>, %arg13: memref<3x16x5xf32, #tpu.memory_space<vmem>>, %arg14: memref<6x16x5xf32, #tpu.memory_space<vmem>>) attributes {dimension_semantics = [#tpu.dimension_semantics<parallel>], iteration_bounds = array<i64: 2>, scalar_prefetch = 0 : i64, scratch_operands = 1 : i64, tpu.core_type = #tpu.core_type<tc>, window_params = [{transform_indices = @transform_0, window_bounds = array<i64: 16, 12>}, {transform_indices = @transform_1, window_bounds = array<i64: 3, 16, 18>}, {transform_indices = @transform_2, window_bounds = array<i64: 3, 16, 13>}, {transform_indices = @transform_3, window_bounds = array<i64: 3, 16, 5>}, {pipeline_mode = #tpu.pipeline_mode<synchronous>, transform_indices = @transform_4, window_bounds = array<i64: 12, 128>}, {pipeline_mode = #tpu.pipeline_mode<synchronous>, transform_indices = @transform_5, window_bounds = array<i64: 18, 128>}, {pipeline_mode = #tpu.pipeline_mode<synchronous>, transform_indices = @transform_6, window_bounds = array<i64: 13, 128>}, {pipeline_mode = #tpu.pipeline_mode<synchronous>, transform_indices = @transform_7, window_bounds = array<i64: 1, 128>}, {pipeline_mode = #tpu.pipeline_mode<synchronous>, transform_indices = @transform_8, window_bounds = array<i64: 128, 128>}, {pipeline_mode = #tpu.pipeline_mode<synchronous>, transform_indices = @transform_9, window_bounds = array<i64: 1, 128>}, {pipeline_mode = #tpu.pipeline_mode<synchronous>, transform_indices = @transform_10, window_bounds = array<i64: 128, 5>}, {pipeline_mode = #tpu.pipeline_mode<synchronous>, transform_indices = @transform_11, window_bounds = array<i64: 1, 5>}, {transform_indices = @transform_12, window_bounds = array<i64: 3, 16, 5>}]} {
    %c0 = arith.constant 0 : index
    %c0_0 = arith.constant 0 : index
    %0 = vector.load %arg1[%c0, %c0_0] : memref<16x12xbf16, #tpu.memory_space<vmem>>, vector<16x12xbf16>
    %c0_1 = arith.constant 0 : index
    %c0_2 = arith.constant 0 : index
    %1 = vector.load %arg5[%c0_1, %c0_2] : memref<12x128xbf16, #tpu.memory_space<vmem>>, vector<12x128xbf16>
    %cst = arith.constant dense<0.000000e+00> : vector<16x128xf32>
    %2 = tpu.matmul %0, %1, %cst {dimension_numbers = #tpu.dot_dimension_numbers<[1], [0], [0], [1], [0, 0, 1, 1], [], []>} : vector<16x12xbf16>, vector<12x128xbf16>, vector<16x128xf32> -> vector<16x128xf32>
    %c0_3 = arith.constant 0 : index
    %c0_4 = arith.constant 0 : index
    %3 = vector.load %arg8[%c0_3, %c0_4] : memref<1x128xf32, #tpu.memory_space<vmem>>, vector<1x128xf32>
    %4 = vector.broadcast %3 : vector<1x128xf32> to vector<16x128xf32>
    %5 = arith.addf %2, %4 : vector<16x128xf32>
    %c0_5 = arith.constant 0 : index
    %c0_6 = arith.constant 0 : index
    %c0_7 = arith.constant 0 : index
    %6 = vector.load %arg2[%c0_5, %c0_6, %c0_7] : memref<3x16x18xbf16, #tpu.memory_space<vmem>>, vector<1x16x18xbf16>
    %7 = vector.shape_cast %6 : vector<1x16x18xbf16> to vector<16x18xbf16>
    %c0_8 = arith.constant 0 : index
    %c0_9 = arith.constant 0 : index
    %8 = vector.load %arg6[%c0_8, %c0_9] : memref<18x128xbf16, #tpu.memory_space<vmem>>, vector<18x128xbf16>
    %cst_10 = arith.constant dense<0.000000e+00> : vector<16x128xf32>
    %9 = tpu.matmul %7, %8, %cst_10 {dimension_numbers = #tpu.dot_dimension_numbers<[1], [0], [0], [1], [0, 0, 1, 1], [], []>} : vector<16x18xbf16>, vector<18x128xbf16>, vector<16x128xf32> -> vector<16x128xf32>
    %10 = arith.addf %5, %9 : vector<16x128xf32>
    %c1 = arith.constant 1 : index
    %c0_11 = arith.constant 0 : index
    %c0_12 = arith.constant 0 : index
    %11 = vector.load %arg2[%c1, %c0_11, %c0_12] : memref<3x16x18xbf16, #tpu.memory_space<vmem>>, vector<1x16x18xbf16>
    %12 = vector.shape_cast %11 : vector<1x16x18xbf16> to vector<16x18xbf16>
    %c0_13 = arith.constant 0 : index
    %c0_14 = arith.constant 0 : index
    %13 = vector.load %arg6[%c0_13, %c0_14] : memref<18x128xbf16, #tpu.memory_space<vmem>>, vector<18x128xbf16>
    %cst_15 = arith.constant dense<0.000000e+00> : vector<16x128xf32>
    %14 = tpu.matmul %12, %13, %cst_15 {dimension_numbers = #tpu.dot_dimension_numbers<[1], [0], [0], [1], [0, 0, 1, 1], [], []>} : vector<16x18xbf16>, vector<18x128xbf16>, vector<16x128xf32> -> vector<16x128xf32>
    %15 = arith.addf %5, %14 : vector<16x128xf32>
    %c2 = arith.constant 2 : index
    %c0_16 = arith.constant 0 : index
    %c0_17 = arith.constant 0 : index
    %16 = vector.load %arg2[%c2, %c0_16, %c0_17] : memref<3x16x18xbf16, #tpu.memory_space<vmem>>, vector<1x16x18xbf16>
    %17 = vector.shape_cast %16 : vector<1x16x18xbf16> to vector<16x18xbf16>
    %c0_18 = arith.constant 0 : index
    %c0_19 = arith.constant 0 : index
    %18 = vector.load %arg6[%c0_18, %c0_19] : memref<18x128xbf16, #tpu.memory_space<vmem>>, vector<18x128xbf16>
    %cst_20 = arith.constant dense<0.000000e+00> : vector<16x128xf32>
    %19 = tpu.matmul %17, %18, %cst_20 {dimension_numbers = #tpu.dot_dimension_numbers<[1], [0], [0], [1], [0, 0, 1, 1], [], []>} : vector<16x18xbf16>, vector<18x128xbf16>, vector<16x128xf32> -> vector<16x128xf32>
    %20 = arith.addf %5, %19 : vector<16x128xf32>
    %c0_21 = arith.constant 0 : index
    %c0_22 = arith.constant 0 : index
    %c0_23 = arith.constant 0 : index
    %21 = vector.load %arg3[%c0_21, %c0_22, %c0_23] : memref<3x16x13xbf16, #tpu.memory_space<vmem>>, vector<1x16x13xbf16>
    %22 = vector.shape_cast %21 : vector<1x16x13xbf16> to vector<16x13xbf16>
    %c0_24 = arith.constant 0 : index
    %c0_25 = arith.constant 0 : index
    %23 = vector.load %arg7[%c0_24, %c0_25] : memref<13x128xbf16, #tpu.memory_space<vmem>>, vector<13x128xbf16>
    %cst_26 = arith.constant dense<0.000000e+00> : vector<16x128xf32>
    %24 = tpu.matmul %22, %23, %cst_26 {dimension_numbers = #tpu.dot_dimension_numbers<[1], [0], [0], [1], [0, 0, 1, 1], [], []>} : vector<16x13xbf16>, vector<13x128xbf16>, vector<16x128xf32> -> vector<16x128xf32>
    %c1_27 = arith.constant 1 : index
    %c0_28 = arith.constant 0 : index
    %c0_29 = arith.constant 0 : index
    %25 = vector.load %arg3[%c1_27, %c0_28, %c0_29] : memref<3x16x13xbf16, #tpu.memory_space<vmem>>, vector<1x16x13xbf16>
    %26 = vector.shape_cast %25 : vector<1x16x13xbf16> to vector<16x13xbf16>
    %c0_30 = arith.constant 0 : index
    %c0_31 = arith.constant 0 : index
    %27 = vector.load %arg7[%c0_30, %c0_31] : memref<13x128xbf16, #tpu.memory_space<vmem>>, vector<13x128xbf16>
    %cst_32 = arith.constant dense<0.000000e+00> : vector<16x128xf32>
    %28 = tpu.matmul %26, %27, %cst_32 {dimension_numbers = #tpu.dot_dimension_numbers<[1], [0], [0], [1], [0, 0, 1, 1], [], []>} : vector<16x13xbf16>, vector<13x128xbf16>, vector<16x128xf32> -> vector<16x128xf32>
    %c2_33 = arith.constant 2 : index
    %c0_34 = arith.constant 0 : index
    %c0_35 = arith.constant 0 : index
    %29 = vector.load %arg3[%c2_33, %c0_34, %c0_35] : memref<3x16x13xbf16, #tpu.memory_space<vmem>>, vector<1x16x13xbf16>
    %30 = vector.shape_cast %29 : vector<1x16x13xbf16> to vector<16x13xbf16>
    %c0_36 = arith.constant 0 : index
    %c0_37 = arith.constant 0 : index
    %31 = vector.load %arg7[%c0_36, %c0_37] : memref<13x128xbf16, #tpu.memory_space<vmem>>, vector<13x128xbf16>
    %cst_38 = arith.constant dense<0.000000e+00> : vector<16x128xf32>
    %32 = tpu.matmul %30, %31, %cst_38 {dimension_numbers = #tpu.dot_dimension_numbers<[1], [0], [0], [1], [0, 0, 1, 1], [], []>} : vector<16x13xbf16>, vector<13x128xbf16>, vector<16x128xf32> -> vector<16x128xf32>
    %33 = arith.addf %10, %28 : vector<16x128xf32>
    %cst_39 = arith.constant 0.000000e+00 : f32
    %34 = vector.broadcast %cst_39 : f32 to vector<16x128xf32>
    %35 = arith.maximumf %33, %34 : vector<16x128xf32>
    %36 = arith.truncf %35 : vector<16x128xf32> to vector<16x128xbf16>
    %c0_40 = arith.constant 0 : index
    %c0_41 = arith.constant 0 : index
    %37 = vector.load %arg9[%c0_40, %c0_41] : memref<128x128xbf16, #tpu.memory_space<vmem>>, vector<128x128xbf16>
    %cst_42 = arith.constant dense<0.000000e+00> : vector<16x128xf32>
    %38 = tpu.matmul %36, %37, %cst_42 {dimension_numbers = #tpu.dot_dimension_numbers<[1], [0], [0], [1], [0, 0, 1, 1], [], []>} : vector<16x128xbf16>, vector<128x128xbf16>, vector<16x128xf32> -> vector<16x128xf32>
    %c0_43 = arith.constant 0 : index
    %c0_44 = arith.constant 0 : index
    %39 = vector.load %arg10[%c0_43, %c0_44] : memref<1x128xf32, #tpu.memory_space<vmem>>, vector<1x128xf32>
    %40 = vector.broadcast %39 : vector<1x128xf32> to vector<16x128xf32>
    %41 = arith.addf %38, %40 : vector<16x128xf32>
    %cst_45 = arith.constant 0.000000e+00 : f32
    %42 = vector.broadcast %cst_45 : f32 to vector<16x128xf32>
    %43 = arith.maximumf %41, %42 : vector<16x128xf32>
    %44 = arith.truncf %43 : vector<16x128xf32> to vector<16x128xbf16>
    %c0_46 = arith.constant 0 : index
    %c0_47 = arith.constant 0 : index
    %45 = vector.load %arg11[%c0_46, %c0_47] : memref<128x5xbf16, #tpu.memory_space<vmem>>, vector<128x5xbf16>
    %cst_48 = arith.constant dense<0.000000e+00> : vector<16x5xf32>
    %46 = tpu.matmul %44, %45, %cst_48 {dimension_numbers = #tpu.dot_dimension_numbers<[1], [0], [0], [1], [0, 0, 1, 1], [], []>} : vector<16x128xbf16>, vector<128x5xbf16>, vector<16x5xf32> -> vector<16x5xf32>
    %c0_49 = arith.constant 0 : index
    %c0_50 = arith.constant 0 : index
    %47 = vector.load %arg12[%c0_49, %c0_50] : memref<1x5xf32, #tpu.memory_space<vmem>>, vector<1x5xf32>
    %48 = vector.broadcast %47 : vector<1x5xf32> to vector<16x5xf32>
    %49 = arith.addf %46, %48 : vector<16x5xf32>
    %c0_51 = arith.constant 0 : index
    %c0_52 = arith.constant 0 : index
    %c0_53 = arith.constant 0 : index
    %50 = vector.load %arg14[%c0_51, %c0_52, %c0_53] : memref<6x16x5xf32, #tpu.memory_space<vmem>>, vector<1x16x5xf32>
    %51 = vector.shape_cast %50 : vector<1x16x5xf32> to vector<16x5xf32>
    %52 = vector.shape_cast %49 : vector<16x5xf32> to vector<1x16x5xf32>
    tpu.vector_store %arg14[%c0_51, %c0_52, %c0_53], %52 {strides = array<i32>} : memref<6x16x5xf32, #tpu.memory_space<vmem>>, vector<1x16x5xf32>,
    %53 = arith.addf %10, %32 : vector<16x128xf32>
    %cst_54 = arith.constant 0.000000e+00 : f32
    %54 = vector.broadcast %cst_54 : f32 to vector<16x128xf32>
    %55 = arith.maximumf %53, %54 : vector<16x128xf32>
    %56 = arith.truncf %55 : vector<16x128xf32> to vector<16x128xbf16>
    %c0_55 = arith.constant 0 : index
    %c0_56 = arith.constant 0 : index
    %57 = vector.load %arg9[%c0_55, %c0_56] : memref<128x128xbf16, #tpu.memory_space<vmem>>, vector<128x128xbf16>
    %cst_57 = arith.constant dense<0.000000e+00> : vector<16x128xf32>
    %58 = tpu.matmul %56, %57, %cst_57 {dimension_numbers = #tpu.dot_dimension_numbers<[1], [0], [0], [1], [0, 0, 1, 1], [], []>} : vector<16x128xbf16>, vector<128x128xbf16>, vector<16x128xf32> -> vector<16x128xf32>
    %c0_58 = arith.constant 0 : index
    %c0_59 = arith.constant 0 : index
    %59 = vector.load %arg10[%c0_58, %c0_59] : memref<1x128xf32, #tpu.memory_space<vmem>>, vector<1x128xf32>
    %60 = vector.broadcast %59 : vector<1x128xf32> to vector<16x128xf32>
    %61 = arith.addf %58, %60 : vector<16x128xf32>
    %cst_60 = arith.constant 0.000000e+00 : f32
    %62 = vector.broadcast %cst_60 : f32 to vector<16x128xf32>
    %63 = arith.maximumf %61, %62 : vector<16x128xf32>
    %64 = arith.truncf %63 : vector<16x128xf32> to vector<16x128xbf16>
    %c0_61 = arith.constant 0 : index
    %c0_62 = arith.constant 0 : index
    %65 = vector.load %arg11[%c0_61, %c0_62] : memref<128x5xbf16, #tpu.memory_space<vmem>>, vector<128x5xbf16>
    %cst_63 = arith.constant dense<0.000000e+00> : vector<16x5xf32>
    %66 = tpu.matmul %64, %65, %cst_63 {dimension_numbers = #tpu.dot_dimension_numbers<[1], [0], [0], [1], [0, 0, 1, 1], [], []>} : vector<16x128xbf16>, vector<128x5xbf16>, vector<16x5xf32> -> vector<16x5xf32>
    %c0_64 = arith.constant 0 : index
    %c0_65 = arith.constant 0 : index
    %67 = vector.load %arg12[%c0_64, %c0_65] : memref<1x5xf32, #tpu.memory_space<vmem>>, vector<1x5xf32>
    %68 = vector.broadcast %67 : vector<1x5xf32> to vector<16x5xf32>
    %69 = arith.addf %66, %68 : vector<16x5xf32>
    %c1_66 = arith.constant 1 : index
    %c0_67 = arith.constant 0 : index
    %c0_68 = arith.constant 0 : index
    %70 = vector.load %arg14[%c1_66, %c0_67, %c0_68] : memref<6x16x5xf32, #tpu.memory_space<vmem>>, vector<1x16x5xf32>
    %71 = vector.shape_cast %70 : vector<1x16x5xf32> to vector<16x5xf32>
    %72 = vector.shape_cast %69 : vector<16x5xf32> to vector<1x16x5xf32>
    tpu.vector_store %arg14[%c1_66, %c0_67, %c0_68], %72 {strides = array<i32>} : memref<6x16x5xf32, #tpu.memory_space<vmem>>, vector<1x16x5xf32>,
    %73 = arith.addf %15, %24 : vector<16x128xf32>
    %cst_69 = arith.constant 0.000000e+00 : f32
    %74 = vector.broadcast %cst_69 : f32 to vector<16x128xf32>
    %75 = arith.maximumf %73, %74 : vector<16x128xf32>
    %76 = arith.truncf %75 : vector<16x128xf32> to vector<16x128xbf16>
    %c0_70 = arith.constant 0 : index
    %c0_71 = arith.constant 0 : index
    %77 = vector.load %arg9[%c0_70, %c0_71] : memref<128x128xbf16, #tpu.memory_space<vmem>>, vector<128x128xbf16>
    %cst_72 = arith.constant dense<0.000000e+00> : vector<16x128xf32>
    %78 = tpu.matmul %76, %77, %cst_72 {dimension_numbers = #tpu.dot_dimension_numbers<[1], [0], [0], [1], [0, 0, 1, 1], [], []>} : vector<16x128xbf16>, vector<128x128xbf16>, vector<16x128xf32> -> vector<16x128xf32>
    %c0_73 = arith.constant 0 : index
    %c0_74 = arith.constant 0 : index
    %79 = vector.load %arg10[%c0_73, %c0_74] : memref<1x128xf32, #tpu.memory_space<vmem>>, vector<1x128xf32>
    %80 = vector.broadcast %79 : vector<1x128xf32> to vector<16x128xf32>
    %81 = arith.addf %78, %80 : vector<16x128xf32>
    %cst_75 = arith.constant 0.000000e+00 : f32
    %82 = vector.broadcast %cst_75 : f32 to vector<16x128xf32>
    %83 = arith.maximumf %81, %82 : vector<16x128xf32>
    %84 = arith.truncf %83 : vector<16x128xf32> to vector<16x128xbf16>
    %c0_76 = arith.constant 0 : index
    %c0_77 = arith.constant 0 : index
    %85 = vector.load %arg11[%c0_76, %c0_77] : memref<128x5xbf16, #tpu.memory_space<vmem>>, vector<128x5xbf16>
    %cst_78 = arith.constant dense<0.000000e+00> : vector<16x5xf32>
    %86 = tpu.matmul %84, %85, %cst_78 {dimension_numbers = #tpu.dot_dimension_numbers<[1], [0], [0], [1], [0, 0, 1, 1], [], []>} : vector<16x128xbf16>, vector<128x5xbf16>, vector<16x5xf32> -> vector<16x5xf32>
    %c0_79 = arith.constant 0 : index
    %c0_80 = arith.constant 0 : index
    %87 = vector.load %arg12[%c0_79, %c0_80] : memref<1x5xf32, #tpu.memory_space<vmem>>, vector<1x5xf32>
    %88 = vector.broadcast %87 : vector<1x5xf32> to vector<16x5xf32>
    %89 = arith.addf %86, %88 : vector<16x5xf32>
    %c2_81 = arith.constant 2 : index
    %c0_82 = arith.constant 0 : index
    %c0_83 = arith.constant 0 : index
    %90 = vector.load %arg14[%c2_81, %c0_82, %c0_83] : memref<6x16x5xf32, #tpu.memory_space<vmem>>, vector<1x16x5xf32>
    %91 = vector.shape_cast %90 : vector<1x16x5xf32> to vector<16x5xf32>
    %92 = vector.shape_cast %89 : vector<16x5xf32> to vector<1x16x5xf32>
    tpu.vector_store %arg14[%c2_81, %c0_82, %c0_83], %92 {strides = array<i32>} : memref<6x16x5xf32, #tpu.memory_space<vmem>>, vector<1x16x5xf32>,
    %93 = arith.addf %15, %32 : vector<16x128xf32>
    %cst_84 = arith.constant 0.000000e+00 : f32
    %94 = vector.broadcast %cst_84 : f32 to vector<16x128xf32>
    %95 = arith.maximumf %93, %94 : vector<16x128xf32>
    %96 = arith.truncf %95 : vector<16x128xf32> to vector<16x128xbf16>
    %c0_85 = arith.constant 0 : index
    %c0_86 = arith.constant 0 : index
    %97 = vector.load %arg9[%c0_85, %c0_86] : memref<128x128xbf16, #tpu.memory_space<vmem>>, vector<128x128xbf16>
    %cst_87 = arith.constant dense<0.000000e+00> : vector<16x128xf32>
    %98 = tpu.matmul %96, %97, %cst_87 {dimension_numbers = #tpu.dot_dimension_numbers<[1], [0], [0], [1], [0, 0, 1, 1], [], []>} : vector<16x128xbf16>, vector<128x128xbf16>, vector<16x128xf32> -> vector<16x128xf32>
    %c0_88 = arith.constant 0 : index
    %c0_89 = arith.constant 0 : index
    %99 = vector.load %arg10[%c0_88, %c0_89] : memref<1x128xf32, #tpu.memory_space<vmem>>, vector<1x128xf32>
    %100 = vector.broadcast %99 : vector<1x128xf32> to vector<16x128xf32>
    %101 = arith.addf %98, %100 : vector<16x128xf32>
    %cst_90 = arith.constant 0.000000e+00 : f32
    %102 = vector.broadcast %cst_90 : f32 to vector<16x128xf32>
    %103 = arith.maximumf %101, %102 : vector<16x128xf32>
    %104 = arith.truncf %103 : vector<16x128xf32> to vector<16x128xbf16>
    %c0_91 = arith.constant 0 : index
    %c0_92 = arith.constant 0 : index
    %105 = vector.load %arg11[%c0_91, %c0_92] : memref<128x5xbf16, #tpu.memory_space<vmem>>, vector<128x5xbf16>
    %cst_93 = arith.constant dense<0.000000e+00> : vector<16x5xf32>
    %106 = tpu.matmul %104, %105, %cst_93 {dimension_numbers = #tpu.dot_dimension_numbers<[1], [0], [0], [1], [0, 0, 1, 1], [], []>} : vector<16x128xbf16>, vector<128x5xbf16>, vector<16x5xf32> -> vector<16x5xf32>
    %c0_94 = arith.constant 0 : index
    %c0_95 = arith.constant 0 : index
    %107 = vector.load %arg12[%c0_94, %c0_95] : memref<1x5xf32, #tpu.memory_space<vmem>>, vector<1x5xf32>
    %108 = vector.broadcast %107 : vector<1x5xf32> to vector<16x5xf32>
    %109 = arith.addf %106, %108 : vector<16x5xf32>
    %c3 = arith.constant 3 : index
    %c0_96 = arith.constant 0 : index
    %c0_97 = arith.constant 0 : index
    %110 = vector.load %arg14[%c3, %c0_96, %c0_97] : memref<6x16x5xf32, #tpu.memory_space<vmem>>, vector<1x16x5xf32>
    %111 = vector.shape_cast %110 : vector<1x16x5xf32> to vector<16x5xf32>
    %112 = vector.shape_cast %109 : vector<16x5xf32> to vector<1x16x5xf32>
    tpu.vector_store %arg14[%c3, %c0_96, %c0_97], %112 {strides = array<i32>} : memref<6x16x5xf32, #tpu.memory_space<vmem>>, vector<1x16x5xf32>,
    %113 = arith.addf %20, %24 : vector<16x128xf32>
    %cst_98 = arith.constant 0.000000e+00 : f32
    %114 = vector.broadcast %cst_98 : f32 to vector<16x128xf32>
    %115 = arith.maximumf %113, %114 : vector<16x128xf32>
    %116 = arith.truncf %115 : vector<16x128xf32> to vector<16x128xbf16>
    %c0_99 = arith.constant 0 : index
    %c0_100 = arith.constant 0 : index
    %117 = vector.load %arg9[%c0_99, %c0_100] : memref<128x128xbf16, #tpu.memory_space<vmem>>, vector<128x128xbf16>
    %cst_101 = arith.constant dense<0.000000e+00> : vector<16x128xf32>
    %118 = tpu.matmul %116, %117, %cst_101 {dimension_numbers = #tpu.dot_dimension_numbers<[1], [0], [0], [1], [0, 0, 1, 1], [], []>} : vector<16x128xbf16>, vector<128x128xbf16>, vector<16x128xf32> -> vector<16x128xf32>
    %c0_102 = arith.constant 0 : index
    %c0_103 = arith.constant 0 : index
    %119 = vector.load %arg10[%c0_102, %c0_103] : memref<1x128xf32, #tpu.memory_space<vmem>>, vector<1x128xf32>
    %120 = vector.broadcast %119 : vector<1x128xf32> to vector<16x128xf32>
    %121 = arith.addf %118, %120 : vector<16x128xf32>
    %cst_104 = arith.constant 0.000000e+00 : f32
    %122 = vector.broadcast %cst_104 : f32 to vector<16x128xf32>
    %123 = arith.maximumf %121, %122 : vector<16x128xf32>
    %124 = arith.truncf %123 : vector<16x128xf32> to vector<16x128xbf16>
    %c0_105 = arith.constant 0 : index
    %c0_106 = arith.constant 0 : index
    %125 = vector.load %arg11[%c0_105, %c0_106] : memref<128x5xbf16, #tpu.memory_space<vmem>>, vector<128x5xbf16>
    %cst_107 = arith.constant dense<0.000000e+00> : vector<16x5xf32>
    %126 = tpu.matmul %124, %125, %cst_107 {dimension_numbers = #tpu.dot_dimension_numbers<[1], [0], [0], [1], [0, 0, 1, 1], [], []>} : vector<16x128xbf16>, vector<128x5xbf16>, vector<16x5xf32> -> vector<16x5xf32>
    %c0_108 = arith.constant 0 : index
    %c0_109 = arith.constant 0 : index
    %127 = vector.load %arg12[%c0_108, %c0_109] : memref<1x5xf32, #tpu.memory_space<vmem>>, vector<1x5xf32>
    %128 = vector.broadcast %127 : vector<1x5xf32> to vector<16x5xf32>
    %129 = arith.addf %126, %128 : vector<16x5xf32>
    %c4 = arith.constant 4 : index
    %c0_110 = arith.constant 0 : index
    %c0_111 = arith.constant 0 : index
    %130 = vector.load %arg14[%c4, %c0_110, %c0_111] : memref<6x16x5xf32, #tpu.memory_space<vmem>>, vector<1x16x5xf32>
    %131 = vector.shape_cast %130 : vector<1x16x5xf32> to vector<16x5xf32>
    %132 = vector.shape_cast %129 : vector<16x5xf32> to vector<1x16x5xf32>
    tpu.vector_store %arg14[%c4, %c0_110, %c0_111], %132 {strides = array<i32>} : memref<6x16x5xf32, #tpu.memory_space<vmem>>, vector<1x16x5xf32>,
    %133 = arith.addf %20, %28 : vector<16x128xf32>
    %cst_112 = arith.constant 0.000000e+00 : f32
    %134 = vector.broadcast %cst_112 : f32 to vector<16x128xf32>
    %135 = arith.maximumf %133, %134 : vector<16x128xf32>
    %136 = arith.truncf %135 : vector<16x128xf32> to vector<16x128xbf16>
    %c0_113 = arith.constant 0 : index
    %c0_114 = arith.constant 0 : index
    %137 = vector.load %arg9[%c0_113, %c0_114] : memref<128x128xbf16, #tpu.memory_space<vmem>>, vector<128x128xbf16>
    %cst_115 = arith.constant dense<0.000000e+00> : vector<16x128xf32>
    %138 = tpu.matmul %136, %137, %cst_115 {dimension_numbers = #tpu.dot_dimension_numbers<[1], [0], [0], [1], [0, 0, 1, 1], [], []>} : vector<16x128xbf16>, vector<128x128xbf16>, vector<16x128xf32> -> vector<16x128xf32>
    %c0_116 = arith.constant 0 : index
    %c0_117 = arith.constant 0 : index
    %139 = vector.load %arg10[%c0_116, %c0_117] : memref<1x128xf32, #tpu.memory_space<vmem>>, vector<1x128xf32>
    %140 = vector.broadcast %139 : vector<1x128xf32> to vector<16x128xf32>
    %141 = arith.addf %138, %140 : vector<16x128xf32>
    %cst_118 = arith.constant 0.000000e+00 : f32
    %142 = vector.broadcast %cst_118 : f32 to vector<16x128xf32>
    %143 = arith.maximumf %141, %142 : vector<16x128xf32>
    %144 = arith.truncf %143 : vector<16x128xf32> to vector<16x128xbf16>
    %c0_119 = arith.constant 0 : index
    %c0_120 = arith.constant 0 : index
    %145 = vector.load %arg11[%c0_119, %c0_120] : memref<128x5xbf16, #tpu.memory_space<vmem>>, vector<128x5xbf16>
    %cst_121 = arith.constant dense<0.000000e+00> : vector<16x5xf32>
    %146 = tpu.matmul %144, %145, %cst_121 {dimension_numbers = #tpu.dot_dimension_numbers<[1], [0], [0], [1], [0, 0, 1, 1], [], []>} : vector<16x128xbf16>, vector<128x5xbf16>, vector<16x5xf32> -> vector<16x5xf32>
    %c0_122 = arith.constant 0 : index
    %c0_123 = arith.constant 0 : index
    %147 = vector.load %arg12[%c0_122, %c0_123] : memref<1x5xf32, #tpu.memory_space<vmem>>, vector<1x5xf32>
    %148 = vector.broadcast %147 : vector<1x5xf32> to vector<16x5xf32>
    %149 = arith.addf %146, %148 : vector<16x5xf32>
    %c5 = arith.constant 5 : index
    %c0_124 = arith.constant 0 : index
    %c0_125 = arith.constant 0 : index
    %150 = vector.load %arg14[%c5, %c0_124, %c0_125] : memref<6x16x5xf32, #tpu.memory_space<vmem>>, vector<1x16x5xf32>
    %151 = vector.shape_cast %150 : vector<1x16x5xf32> to vector<16x5xf32>
    %152 = vector.shape_cast %149 : vector<16x5xf32> to vector<1x16x5xf32>
    tpu.vector_store %arg14[%c5, %c0_124, %c0_125], %152 {strides = array<i32>} : memref<6x16x5xf32, #tpu.memory_space<vmem>>, vector<1x16x5xf32>,
    %c0_i32 = arith.constant 0 : i32
    %c16_i32 = arith.constant 16 : i32
    %153 = arith.muli %c0_i32, %c16_i32 : i32
    %154 = tpu.assume_multiple %153, 16 : i32
    %c0_126 = arith.constant 0 : index
    %155 = arith.index_cast %154 : i32 to index
    %c0_127 = arith.constant 0 : index
    %156 = vector.load %arg4[%c0_126, %155, %c0_127] : memref<3x16x5xf32, #tpu.memory_space<vmem>>, vector<1x16x5xf32>
    %157 = vector.shape_cast %156 : vector<1x16x5xf32> to vector<16x5xf32>
    %c1_128 = arith.constant 1 : index
    %158 = arith.index_cast %154 : i32 to index
    %c0_129 = arith.constant 0 : index
    %159 = vector.load %arg4[%c1_128, %158, %c0_129] : memref<3x16x5xf32, #tpu.memory_space<vmem>>, vector<1x16x5xf32>
    %160 = vector.shape_cast %159 : vector<1x16x5xf32> to vector<16x5xf32>
    %c2_130 = arith.constant 2 : index
    %161 = arith.index_cast %154 : i32 to index
    %c0_131 = arith.constant 0 : index
    %162 = vector.load %arg4[%c2_130, %161, %c0_131] : memref<3x16x5xf32, #tpu.memory_space<vmem>>, vector<1x16x5xf32>
    %163 = vector.shape_cast %162 : vector<1x16x5xf32> to vector<16x5xf32>
    %cst_132 = arith.constant 0.000000e+00 : f32
    %164 = vector.broadcast %cst_132 : f32 to vector<16x5xf32>
    %cst_133 = arith.constant 0.000000e+00 : f32
    %165 = vector.broadcast %cst_133 : f32 to vector<16x5xf32>
    %cst_134 = arith.constant 0.000000e+00 : f32
    %166 = vector.broadcast %cst_134 : f32 to vector<16x5xf32>
    %cst_135 = arith.constant 0.000000e+00 : f32
    %167 = vector.broadcast %cst_135 : f32 to vector<16x1xf32>
    %cst_136 = arith.constant 0.000000e+00 : f32
    %168 = vector.broadcast %cst_136 : f32 to vector<16x1xf32>
    %cst_137 = arith.constant 0.000000e+00 : f32
    %169 = vector.broadcast %cst_137 : f32 to vector<16x1xf32>
    %cst_138 = arith.constant 0.000000e+00 : f32
    %170 = vector.broadcast %cst_138 : f32 to vector<16x1xf32>
    %c0_139 = arith.constant 0 : index
    %171 = arith.index_cast %154 : i32 to index
    %c0_140 = arith.constant 0 : index
    %172 = vector.load %arg14[%c0_139, %171, %c0_140] : memref<6x16x5xf32, #tpu.memory_space<vmem>>, vector<1x16x5xf32>
    %173 = vector.shape_cast %172 : vector<1x16x5xf32> to vector<16x5xf32>
    %174 = arith.mulf %173, %157 : vector<16x5xf32>
    %cst_141 = arith.constant dense<0.000000e+00> : vector<16xf32>
    %175 = vector.multi_reduction <add>, %174, %cst_141 [1] : vector<16x5xf32> to vector<16xf32>
    %176 = vector.shape_cast %175 : vector<16xf32> to vector<16x1xf32>
    %177 = arith.addf %164, %173 : vector<16x5xf32>
    %178 = arith.addf %167, %176 : vector<16x1xf32>
    %179 = arith.addf %168, %176 : vector<16x1xf32>
    %180 = arith.addf %170, %176 : vector<16x1xf32>
    %c1_142 = arith.constant 1 : index
    %181 = arith.index_cast %154 : i32 to index
    %c0_143 = arith.constant 0 : index
    %182 = vector.load %arg14[%c1_142, %181, %c0_143] : memref<6x16x5xf32, #tpu.memory_space<vmem>>, vector<1x16x5xf32>
    %183 = vector.shape_cast %182 : vector<1x16x5xf32> to vector<16x5xf32>
    %184 = arith.mulf %183, %157 : vector<16x5xf32>
    %cst_144 = arith.constant dense<0.000000e+00> : vector<16xf32>
    %185 = vector.multi_reduction <add>, %184, %cst_144 [1] : vector<16x5xf32> to vector<16xf32>
    %186 = vector.shape_cast %185 : vector<16xf32> to vector<16x1xf32>
    %187 = arith.addf %177, %183 : vector<16x5xf32>
    %188 = arith.addf %178, %186 : vector<16x1xf32>
    %189 = arith.addf %169, %186 : vector<16x1xf32>
    %190 = arith.addf %180, %186 : vector<16x1xf32>
    %c2_145 = arith.constant 2 : index
    %191 = arith.index_cast %154 : i32 to index
    %c0_146 = arith.constant 0 : index
    %192 = vector.load %arg14[%c2_145, %191, %c0_146] : memref<6x16x5xf32, #tpu.memory_space<vmem>>, vector<1x16x5xf32>
    %193 = vector.shape_cast %192 : vector<1x16x5xf32> to vector<16x5xf32>
    %194 = arith.mulf %193, %160 : vector<16x5xf32>
    %cst_147 = arith.constant dense<0.000000e+00> : vector<16xf32>
    %195 = vector.multi_reduction <add>, %194, %cst_147 [1] : vector<16x5xf32> to vector<16xf32>
    %196 = vector.shape_cast %195 : vector<16xf32> to vector<16x1xf32>
    %197 = arith.addf %165, %193 : vector<16x5xf32>
    %198 = arith.addf %179, %196 : vector<16x1xf32>
    %199 = arith.addf %188, %196 : vector<16x1xf32>
    %200 = arith.addf %190, %196 : vector<16x1xf32>
    %c3_148 = arith.constant 3 : index
    %201 = arith.index_cast %154 : i32 to index
    %c0_149 = arith.constant 0 : index
    %202 = vector.load %arg14[%c3_148, %201, %c0_149] : memref<6x16x5xf32, #tpu.memory_space<vmem>>, vector<1x16x5xf32>
    %203 = vector.shape_cast %202 : vector<1x16x5xf32> to vector<16x5xf32>
    %204 = arith.mulf %203, %160 : vector<16x5xf32>
    %cst_150 = arith.constant dense<0.000000e+00> : vector<16xf32>
    %205 = vector.multi_reduction <add>, %204, %cst_150 [1] : vector<16x5xf32> to vector<16xf32>
    %206 = vector.shape_cast %205 : vector<16xf32> to vector<16x1xf32>
    %207 = arith.addf %197, %203 : vector<16x5xf32>
    %208 = arith.addf %198, %206 : vector<16x1xf32>
    %209 = arith.addf %189, %206 : vector<16x1xf32>
    %210 = arith.addf %200, %206 : vector<16x1xf32>
    %c4_151 = arith.constant 4 : index
    %211 = arith.index_cast %154 : i32 to index
    %c0_152 = arith.constant 0 : index
    %212 = vector.load %arg14[%c4_151, %211, %c0_152] : memref<6x16x5xf32, #tpu.memory_space<vmem>>, vector<1x16x5xf32>
    %213 = vector.shape_cast %212 : vector<1x16x5xf32> to vector<16x5xf32>
    %214 = arith.mulf %213, %163 : vector<16x5xf32>
    %cst_153 = arith.constant dense<0.000000e+00> : vector<16xf32>
    %215 = vector.multi_reduction <add>, %214, %cst_153 [1] : vector<16x5xf32> to vector<16xf32>
    %216 = vector.shape_cast %215 : vector<16xf32> to vector<16x1xf32>
    %217 = arith.addf %166, %213 : vector<16x5xf32>
    %218 = arith.addf %209, %216 : vector<16x1xf32>
    %219 = arith.addf %199, %216 : vector<16x1xf32>
    %220 = arith.addf %210, %216 : vector<16x1xf32>
    %c5_154 = arith.constant 5 : index
    %221 = arith.index_cast %154 : i32 to index
    %c0_155 = arith.constant 0 : index
    %222 = vector.load %arg14[%c5_154, %221, %c0_155] : memref<6x16x5xf32, #tpu.memory_space<vmem>>, vector<1x16x5xf32>
    %223 = vector.shape_cast %222 : vector<1x16x5xf32> to vector<16x5xf32>
    %224 = arith.mulf %223, %163 : vector<16x5xf32>
    %cst_156 = arith.constant dense<0.000000e+00> : vector<16xf32>
    %225 = vector.multi_reduction <add>, %224, %cst_156 [1] : vector<16x5xf32> to vector<16xf32>
    %226 = vector.shape_cast %225 : vector<16xf32> to vector<16x1xf32>
    %227 = arith.addf %217, %223 : vector<16x5xf32>
    %228 = arith.addf %218, %226 : vector<16x1xf32>
    %229 = arith.addf %208, %226 : vector<16x1xf32>
    %230 = arith.addf %220, %226 : vector<16x1xf32>
    %231 = arith.subf %230, %219 : vector<16x1xf32>
    %cst_157 = arith.constant 2.000000e+00 : f32
    %232 = vector.broadcast %cst_157 : f32 to vector<16x5xf32>
    %233 = arith.mulf %232, %187 : vector<16x5xf32>
    %234 = vector.broadcast %231 : vector<16x1xf32> to vector<16x5xf32>
    %235 = arith.addf %234, %233 : vector<16x5xf32>
    %c0_158 = arith.constant 0 : index
    %236 = arith.index_cast %154 : i32 to index
    %c0_159 = arith.constant 0 : index
    %237 = vector.load %arg13[%c0_158, %236, %c0_159] : memref<3x16x5xf32, #tpu.memory_space<vmem>>, vector<1x16x5xf32>
    %238 = vector.shape_cast %237 : vector<1x16x5xf32> to vector<16x5xf32>
    %239 = vector.shape_cast %235 : vector<16x5xf32> to vector<1x16x5xf32>
    tpu.vector_store %arg13[%c0_158, %236, %c0_159], %239 {strides = array<i32>} : memref<3x16x5xf32, #tpu.memory_space<vmem>>, vector<1x16x5xf32>,
    %240 = arith.subf %230, %229 : vector<16x1xf32>
    %cst_160 = arith.constant 2.000000e+00 : f32
    %241 = vector.broadcast %cst_160 : f32 to vector<16x5xf32>
    %242 = arith.mulf %241, %207 : vector<16x5xf32>
    %243 = vector.broadcast %240 : vector<16x1xf32> to vector<16x5xf32>
    %244 = arith.addf %243, %242 : vector<16x5xf32>
    %c1_161 = arith.constant 1 : index
    %245 = arith.index_cast %154 : i32 to index
    %c0_162 = arith.constant 0 : index
    %246 = vector.load %arg13[%c1_161, %245, %c0_162] : memref<3x16x5xf32, #tpu.memory_space<vmem>>, vector<1x16x5xf32>
    %247 = vector.shape_cast %246 : vector<1x16x5xf32> to vector<16x5xf32>
    %248 = vector.shape_cast %244 : vector<16x5xf32> to vector<1x16x5xf32>
    tpu.vector_store %arg13[%c1_161, %245, %c0_162], %248 {strides = array<i32>} : memref<3x16x5xf32, #tpu.memory_space<vmem>>, vector<1x16x5xf32>,
    %249 = arith.subf %230, %228 : vector<16x1xf32>
    %cst_163 = arith.constant 2.000000e+00 : f32
    %250 = vector.broadcast %cst_163 : f32 to vector<16x5xf32>
    %251 = arith.mulf %250, %227 : vector<16x5xf32>
    %252 = vector.broadcast %249 : vector<16x1xf32> to vector<16x5xf32>
    %253 = arith.addf %252, %251 : vector<16x5xf32>
    %c2_164 = arith.constant 2 : index
    %254 = arith.index_cast %154 : i32 to index
    %c0_165 = arith.constant 0 : index
    %255 = vector.load %arg13[%c2_164, %254, %c0_165] : memref<3x16x5xf32, #tpu.memory_space<vmem>>, vector<1x16x5xf32>
    %256 = vector.shape_cast %255 : vector<1x16x5xf32> to vector<16x5xf32>
    %257 = vector.shape_cast %253 : vector<16x5xf32> to vector<1x16x5xf32>
    tpu.vector_store %arg13[%c2_164, %254, %c0_165], %257 {strides = array<i32>} : memref<3x16x5xf32, #tpu.memory_space<vmem>>, vector<1x16x5xf32>,
    %c1_i32 = arith.constant 1 : i32
    return
  }
  func.func @transform_0(%arg0: i32) -> (i32, i32) {
    %c0_i32 = arith.constant 0 : i32
    %c0_i32_0 = arith.constant 0 : i32
    return %arg0, %c0_i32 : i32, i32
  }
  func.func @transform_1(%arg0: i32) -> (i32, i32, i32) {
    %c0_i32 = arith.constant 0 : i32
    %c0_i32_0 = arith.constant 0 : i32
    %c0_i32_1 = arith.constant 0 : i32
    return %c0_i32, %arg0, %c0_i32_0 : i32, i32, i32
  }
  func.func @transform_2(%arg0: i32) -> (i32, i32, i32) {
    %c0_i32 = arith.constant 0 : i32
    %c0_i32_0 = arith.constant 0 : i32
    %c0_i32_1 = arith.constant 0 : i32
    return %c0_i32, %arg0, %c0_i32_0 : i32, i32, i32
  }
  func.func @transform_3(%arg0: i32) -> (i32, i32, i32) {
    %c0_i32 = arith.constant 0 : i32
    %c0_i32_0 = arith.constant 0 : i32
    %c0_i32_1 = arith.constant 0 : i32
    return %c0_i32, %arg0, %c0_i32_0 : i32, i32, i32
  }
  func.func @transform_4(%arg0: i32) -> (i32, i32) {
    %c0_i32 = arith.constant 0 : i32
    %c0_i32_0 = arith.constant 0 : i32
    %c0_i32_1 = arith.constant 0 : i32
    return %c0_i32, %c0_i32_0 : i32, i32
  }
  func.func @transform_5(%arg0: i32) -> (i32, i32) {
    %c0_i32 = arith.constant 0 : i32
    %c0_i32_0 = arith.constant 0 : i32
    %c0_i32_1 = arith.constant 0 : i32
    return %c0_i32, %c0_i32_0 : i32, i32
  }
  func.func @transform_6(%arg0: i32) -> (i32, i32) {
    %c0_i32 = arith.constant 0 : i32
    %c0_i32_0 = arith.constant 0 : i32
    %c0_i32_1 = arith.constant 0 : i32
    return %c0_i32, %c0_i32_0 : i32, i32
  }
  func.func @transform_7(%arg0: i32) -> (i32, i32) {
    %c0_i32 = arith.constant 0 : i32
    %c0_i32_0 = arith.constant 0 : i32
    %c0_i32_1 = arith.constant 0 : i32
    return %c0_i32, %c0_i32_0 : i32, i32
  }
  func.func @transform_8(%arg0: i32) -> (i32, i32) {
    %c0_i32 = arith.constant 0 : i32
    %c0_i32_0 = arith.constant 0 : i32
    %c0_i32_1 = arith.constant 0 : i32
    return %c0_i32, %c0_i32_0 : i32, i32
  }
  func.func @transform_9(%arg0: i32) -> (i32, i32) {
    %c0_i32 = arith.constant 0 : i32
    %c0_i32_0 = arith.constant 0 : i32
    %c0_i32_1 = arith.constant 0 : i32
    return %c0_i32, %c0_i32_0 : i32, i32
  }
  func.func @transform_10(%arg0: i32) -> (i32, i32) {
    %c0_i32 = arith.constant 0 : i32
    %c0_i32_0 = arith.constant 0 : i32
    %c0_i32_1 = arith.constant 0 : i32
    return %c0_i32, %c0_i32_0 : i32, i32
  }
  func.func @transform_11(%arg0: i32) -> (i32, i32) {
    %c0_i32 = arith.constant 0 : i32
    %c0_i32_0 = arith.constant 0 : i32
    %c0_i32_1 = arith.constant 0 : i32
    return %c0_i32, %c0_i32_0 : i32, i32
  }
  func.func @transform_12(%arg0: i32) -> (i32, i32, i32) {
    %c0_i32 = arith.constant 0 : i32
    %c0_i32_0 = arith.constant 0 : i32
    %c0_i32_1 = arith.constant 0 : i32
    return %c0_i32, %arg0, %c0_i32_0 : i32, i32, i32
  }
}

</mosaic_0001>

<llo_original>
// kernel: tpu_custom_call.1
$region0: #{tpu_custom_call.1}
  #allocation0 [shape = 'u32[]', space=smem, size = 0x4, offset = 0x4, fixed_abs, tag = 'smem constant byte address 0x4 - core index']
  #allocation1 [shape = 'u32[144,128]{1,0:T(1,128)}', space=vmem, size = 0x12000, scoped, tag = 'internal scratch']
  #allocation2 [shape = 'f32[6,16,5]{2,1,0:T(8,128)}', space=vmem, size = 0xc000, scoped, tag = 'scratch operand']
  %s0 = inlined_call_operand.vmem [shape: bf16[32,12], index: 0, kind: input, shape index: {}]
  %s1 = inlined_call_operand.vmem [shape: bf16[3,32,18], index: 1, kind: input, shape index: {}]
  %s2 = inlined_call_operand.vmem [shape: bf16[3,32,13], index: 2, kind: input, shape index: {}]
  %s3 = inlined_call_operand.vmem [shape: f32[3,32,5], index: 3, kind: input, shape index: {}]
  %s4 = inlined_call_operand.vmem [shape: bf16[12,128], index: 4, kind: input, shape index: {}]
  %s5 = inlined_call_operand.vmem [shape: bf16[18,128], index: 5, kind: input, shape index: {}]
  %s6 = inlined_call_operand.vmem [shape: bf16[13,128], index: 6, kind: input, shape index: {}]
  %s7 = inlined_call_operand.vmem [shape: f32[1,128], index: 7, kind: input, shape index: {}]
  %s8 = inlined_call_operand.vmem [shape: bf16[128,128], index: 8, kind: input, shape index: {}]
  %s9 = inlined_call_operand.vmem [shape: f32[1,128], index: 9, kind: input, shape index: {}]
  %s10 = inlined_call_operand.vmem [shape: bf16[128,5], index: 10, kind: input, shape index: {}]
  %s11 = inlined_call_operand.vmem [shape: f32[1,5], index: 11, kind: input, shape index: {}]
  %s12 = inlined_call_operand.vmem [shape: f32[3,32,5], index: 12, kind: output, shape index: {}]
  %s13 = sld [smem:[#allocation0]]
  $region235: #{tpu_custom_call.1} parent=0
    _
  %s15 = ssub.s32 1, %s13
  %s16 = scalar_select 0, %s15, %s13
  $region1: #{tpu_custom_call.1} parent=0
    #allocation3 [shape = 'u8[24576]{0}', space=vmem, size = 0x6000, scoped, tag = 'input window, operand 1']
    #allocation4 [shape = 'u8[24576]{0}', space=vmem, size = 0x6000, scoped, tag = 'input window, operand 2']
    #allocation5 [shape = 'u8[49152]{0}', space=vmem, size = 0xc000, scoped, tag = 'input window, operand 3']
    #allocation6 [shape = 'u8[49152]{0}', space=vmem, size = 0xc000, scoped, tag = 'output window, operand 0']
    loop: start=0, step=1, limit=4
    $region2: #{tpu_custom_call.1} parent=1 // loop_pre_header
      _
    $region3: #{tpu_custom_call.1} parent=1 // loop_header
      %s18 = sphi 0, %s22
      %p19 = scmp.ge.s32.totalorder %s18, 4
      %s28 = sphi 0, %s30
      %s31 = sphi 0, %s28
      %s32 = sphi 0, %s31
      %s48 = sphi 0, %s32
      %s54 = sphi 0, %s56
      %s57 = sphi 0, %s54
      %s58 = sphi 0, %s57
      %s74 = sphi 0, %s58
      %s80 = sphi 0, %s82
      %s83 = sphi 0, %s80
      %s84 = sphi 0, %s83
      %s100 = sphi 0, %s84
      %s106 = sphi 0, %s108
      %s109 = sphi 0, %s106
      %s110 = sphi 0, %s109
      %s126 = sphi 0, %s110
      %s130 = sphi 0, %s130
      %s132 = sphi 0, %s130
      %s133 = sphi 0, %s132
      %s147 = sphi 0, %s133
      %s151 = sphi 0, %s151
      %s153 = sphi 0, %s151
      %s154 = sphi 0, %s153
      %s168 = sphi 0, %s154
      %s172 = sphi 0, %s172
      %s174 = sphi 0, %s172
      %s175 = sphi 0, %s174
      %s189 = sphi 0, %s175
      %s193 = sphi 0, %s193
      %s195 = sphi 0, %s193
      %s196 = sphi 0, %s195
      %s210 = sphi 0, %s196
      %s214 = sphi 0, %s214
      %s216 = sphi 0, %s214
      %s217 = sphi 0, %s216
      %s231 = sphi 0, %s217
      %s235 = sphi 0, %s235
      %s237 = sphi 0, %s235
      %s238 = sphi 0, %s237
      %s252 = sphi 0, %s238
      %s256 = sphi 0, %s256
      %s258 = sphi 0, %s256
      %s259 = sphi 0, %s258
      %s273 = sphi 0, %s259
      %s277 = sphi 0, %s277
      %s279 = sphi 0, %s277
      %s280 = sphi 0, %s279
      %s294 = sphi 0, %s280
      %s300 = sphi 0, %s302
      %s303 = sphi 0, %s300
      %s304 = sphi 0, %s303
      %s320 = sphi 0, %s304
    $region4: #{tpu_custom_call.1} parent=1 // loop_header_branch
      %21 = sbr.rel (%p19) target = $region8
    $region5: #{tpu_custom_call.1} parent=1 // loop_body
      %s23 = ssub.s32 %s18, 1
      %s24 = ssub.s32 %s18, 2
      %s25 = sadd.s32 %s18, 1
      %s26 = ssub.s32 %s18, %s25
      %p27 = scmp.eq.s32.totalorder %s26, 0
      %s29 = sadd.s32 %s28, 1
      %s30 = scalar_select %p27, %s28, %s29
      %p33 = pneg %p27
      %p34 = scmp.eq.s32.totalorder %s18, 1
      %p35 = por %p33, %p34
      %p36 = scmp.ne.s32.totalorder %s28, %s31
      %p37 = scmp.eq.s32.totalorder %s18, 0
      %p38 = por %p36, %p37
      %p39 = scmp.ne.s32.totalorder %s28, %s31
      %p40 = scmp.eq.s32.totalorder %s23, 1
      %p41 = por %p39, %p40
      %p42 = scmp.ne.s32.totalorder %s31, %s32
      %p43 = scmp.eq.s32.totalorder %s23, 0
      %p44 = por %p42, %p43
      %p45 = scmp.ne.s32.totalorder %s31, %s32
      %p46 = scmp.eq.s32.totalorder %s24, 1
      %p47 = por %p45, %p46
      %p49 = scmp.ne.s32.totalorder %s32, %s48
      %p50 = scmp.eq.s32.totalorder %s24, 0
      %p51 = por %p49, %p50
      %s52 = ssub.s32 %s18, %s25
      %p53 = scmp.eq.s32.totalorder %s52, 0
      %s55 = sadd.s32 %s54, 1
      %s56 = scalar_select %p53, %s54, %s55
      %p59 = pneg %p53
      %p60 = scmp.eq.s32.totalorder %s18, 1
      %p61 = por %p59, %p60
      %p62 = scmp.ne.s32.totalorder %s54, %s57
      %p63 = scmp.eq.s32.totalorder %s18, 0
      %p64 = por %p62, %p63
      %p65 = scmp.ne.s32.totalorder %s54, %s57
      %p66 = scmp.eq.s32.totalorder %s23, 1
      %p67 = por %p65, %p66
      %p68 = scmp.ne.s32.totalorder %s57, %s58
      %p69 = scmp.eq.s32.totalorder %s23, 0
      %p70 = por %p68, %p69
      %p71 = scmp.ne.s32.totalorder %s57, %s58
      %p72 = scmp.eq.s32.totalorder %s24, 1
      %p73 = por %p71, %p72
      %p75 = scmp.ne.s32.totalorder %s58, %s74
      %p76 = scmp.eq.s32.totalorder %s24, 0
      %p77 = por %p75, %p76
      %s78 = ssub.s32 %s18, %s25
      %p79 = scmp.eq.s32.totalorder %s78, 0
      %s81 = sadd.s32 %s80, 1
      %s82 = scalar_select %p79, %s80, %s81
      %p85 = pneg %p79
      %p86 = scmp.eq.s32.totalorder %s18, 1
      %p87 = por %p85, %p86
      %p88 = scmp.ne.s32.totalorder %s80, %s83
      %p89 = scmp.eq.s32.totalorder %s18, 0
      %p90 = por %p88, %p89
      %p91 = scmp.ne.s32.totalorder %s80, %s83
      %p92 = scmp.eq.s32.totalorder %s23, 1
      %p93 = por %p91, %p92
      %p94 = scmp.ne.s32.totalorder %s83, %s84
      %p95 = scmp.eq.s32.totalorder %s23, 0
      %p96 = por %p94, %p95
      %p97 = scmp.ne.s32.totalorder %s83, %s84
      %p98 = scmp.eq.s32.totalorder %s24, 1
      %p99 = por %p97, %p98
      %p101 = scmp.ne.s32.totalorder %s84, %s100
      %p102 = scmp.eq.s32.totalorder %s24, 0
      %p103 = por %p101, %p102
      %s104 = ssub.s32 %s18, %s25
      %p105 = scmp.eq.s32.totalorder %s104, 0
      %s107 = sadd.s32 %s106, 1
      %s108 = scalar_select %p105, %s106, %s107
      %p111 = pneg %p105
      %p112 = scmp.eq.s32.totalorder %s18, 1
      %p113 = por %p111, %p112
      %p114 = scmp.ne.s32.totalorder %s106, %s109
      %p115 = scmp.eq.s32.totalorder %s18, 0
      %p116 = por %p114, %p115
      %p117 = scmp.ne.s32.totalorder %s106, %s109
      %p118 = scmp.eq.s32.totalorder %s23, 1
      %p119 = por %p117, %p118
      %p120 = scmp.ne.s32.totalorder %s109, %s110
      %p121 = scmp.eq.s32.totalorder %s23, 0
      %p122 = por %p120, %p121
      %p123 = scmp.ne.s32.totalorder %s109, %s110
      %p124 = scmp.eq.s32.totalorder %s24, 1
      %p125 = por %p123, %p124
      %p127 = scmp.ne.s32.totalorder %s110, %s126
      %p128 = scmp.eq.s32.totalorder %s24, 0
      %p129 = por %p127, %p128
      %s131 = sadd.s32 %s130, 1
      %p134 = scmp.eq.s32.totalorder %s18, 1
      %p135 = scmp.ne.s32.totalorder %s130, %s132
      %p136 = scmp.eq.s32.totalorder %s18, 0
      %p137 = por %p135, %p136
      %p138 = scmp.ne.s32.totalorder %s130, %s132
      %p139 = scmp.eq.s32.totalorder %s23, 1
      %p140 = por %p138, %p139
      %p141 = scmp.ne.s32.totalorder %s132, %s133
      %p142 = scmp.eq.s32.totalorder %s23, 0
      %p143 = por %p141, %p142
      %p144 = scmp.ne.s32.totalorder %s132, %s133
      %p145 = scmp.eq.s32.totalorder %s24, 1
      %p146 = por %p144, %p145
      %p148 = scmp.ne.s32.totalorder %s133, %s147
      %p149 = scmp.eq.s32.totalorder %s24, 0
      %p150 = por %p148, %p149
      %s152 = sadd.s32 %s151, 1
      %p155 = scmp.eq.s32.totalorder %s18, 1
      %p156 = scmp.ne.s32.totalorder %s151, %s153
      %p157 = scmp.eq.s32.totalorder %s18, 0
      %p158 = por %p156, %p157
      %p159 = scmp.ne.s32.totalorder %s151, %s153
      %p160 = scmp.eq.s32.totalorder %s23, 1
      %p161 = por %p159, %p160
      %p162 = scmp.ne.s32.totalorder %s153, %s154
      %p163 = scmp.eq.s32.totalorder %s23, 0
      %p164 = por %p162, %p163
      %p165 = scmp.ne.s32.totalorder %s153, %s154
      %p166 = scmp.eq.s32.totalorder %s24, 1
      %p167 = por %p165, %p166
      %p169 = scmp.ne.s32.totalorder %s154, %s168
      %p170 = scmp.eq.s32.totalorder %s24, 0
      %p171 = por %p169, %p170
      %s173 = sadd.s32 %s172, 1
      %p176 = scmp.eq.s32.totalorder %s18, 1
      %p177 = scmp.ne.s32.totalorder %s172, %s174
      %p178 = scmp.eq.s32.totalorder %s18, 0
      %p179 = por %p177, %p178
      %p180 = scmp.ne.s32.totalorder %s172, %s174
      %p181 = scmp.eq.s32.totalorder %s23, 1
      %p182 = por %p180, %p181
      %p183 = scmp.ne.s32.totalorder %s174, %s175
      %p184 = scmp.eq.s32.totalorder %s23, 0
      %p185 = por %p183, %p184
      %p186 = scmp.ne.s32.totalorder %s174, %s175
      %p187 = scmp.eq.s32.totalorder %s24, 1
      %p188 = por %p186, %p187
      %p190 = scmp.ne.s32.totalorder %s175, %s189
      %p191 = scmp.eq.s32.totalorder %s24, 0
      %p192 = por %p190, %p191
      %s194 = sadd.s32 %s193, 1
      %p197 = scmp.eq.s32.totalorder %s18, 1
      %p198 = scmp.ne.s32.totalorder %s193, %s195
      %p199 = scmp.eq.s32.totalorder %s18, 0
      %p200 = por %p198, %p199
      %p201 = scmp.ne.s32.totalorder %s193, %s195
      %p202 = scmp.eq.s32.totalorder %s23, 1
      %p203 = por %p201, %p202
      %p204 = scmp.ne.s32.totalorder %s195, %s196
      %p205 = scmp.eq.s32.totalorder %s23, 0
      %p206 = por %p204, %p205
      %p207 = scmp.ne.s32.totalorder %s195, %s196
      %p208 = scmp.eq.s32.totalorder %s24, 1
      %p209 = por %p207, %p208
      %p211 = scmp.ne.s32.totalorder %s196, %s210
      %p212 = scmp.eq.s32.totalorder %s24, 0
      %p213 = por %p211, %p212
      %s215 = sadd.s32 %s214, 1
      %p218 = scmp.eq.s32.totalorder %s18, 1
      %p219 = scmp.ne.s32.totalorder %s214, %s216
      %p220 = scmp.eq.s32.totalorder %s18, 0
      %p221 = por %p219, %p220
      %p222 = scmp.ne.s32.totalorder %s214, %s216
      %p223 = scmp.eq.s32.totalorder %s23, 1
      %p224 = por %p222, %p223
      %p225 = scmp.ne.s32.totalorder %s216, %s217
      %p226 = scmp.eq.s32.totalorder %s23, 0
      %p227 = por %p225, %p226
      %p228 = scmp.ne.s32.totalorder %s216, %s217
      %p229 = scmp.eq.s32.totalorder %s24, 1
      %p230 = por %p228, %p229
      %p232 = scmp.ne.s32.totalorder %s217, %s231
      %p233 = scmp.eq.s32.totalorder %s24, 0
      %p234 = por %p232, %p233
      %s236 = sadd.s32 %s235, 1
      %p239 = scmp.eq.s32.totalorder %s18, 1
      %p240 = scmp.ne.s32.totalorder %s235, %s237
      %p241 = scmp.eq.s32.totalorder %s18, 0
      %p242 = por %p240, %p241
      %p243 = scmp.ne.s32.totalorder %s235, %s237
      %p244 = scmp.eq.s32.totalorder %s23, 1
      %p245 = por %p243, %p244
      %p246 = scmp.ne.s32.totalorder %s237, %s238
      %p247 = scmp.eq.s32.totalorder %s23, 0
      %p248 = por %p246, %p247
      %p249 = scmp.ne.s32.totalorder %s237, %s238
      %p250 = scmp.eq.s32.totalorder %s24, 1
      %p251 = por %p249, %p250
      %p253 = scmp.ne.s32.totalorder %s238, %s252
      %p254 = scmp.eq.s32.totalorder %s24, 0
      %p255 = por %p253, %p254
      %s257 = sadd.s32 %s256, 1
      %p260 = scmp.eq.s32.totalorder %s18, 1
      %p261 = scmp.ne.s32.totalorder %s256, %s258
      %p262 = scmp.eq.s32.totalorder %s18, 0
      %p263 = por %p261, %p262
      %p264 = scmp.ne.s32.totalorder %s256, %s258
      %p265 = scmp.eq.s32.totalorder %s23, 1
      %p266 = por %p264, %p265
      %p267 = scmp.ne.s32.totalorder %s258, %s259
      %p268 = scmp.eq.s32.totalorder %s23, 0
      %p269 = por %p267, %p268
      %p270 = scmp.ne.s32.totalorder %s258, %s259
      %p271 = scmp.eq.s32.totalorder %s24, 1
      %p272 = por %p270, %p271
      %p274 = scmp.ne.s32.totalorder %s259, %s273
      %p275 = scmp.eq.s32.totalorder %s24, 0
      %p276 = por %p274, %p275
      %s278 = sadd.s32 %s277, 1
      %p281 = scmp.eq.s32.totalorder %s18, 1
      %p282 = scmp.ne.s32.totalorder %s277, %s279
      %p283 = scmp.eq.s32.totalorder %s18, 0
      %p284 = por %p282, %p283
      %p285 = scmp.ne.s32.totalorder %s277, %s279
      %p286 = scmp.eq.s32.totalorder %s23, 1
      %p287 = por %p285, %p286
      %p288 = scmp.ne.s32.totalorder %s279, %s280
      %p289 = scmp.eq.s32.totalorder %s23, 0
      %p290 = por %p288, %p289
      %p291 = scmp.ne.s32.totalorder %s279, %s280
      %p292 = scmp.eq.s32.totalorder %s24, 1
      %p293 = por %p291, %p292
      %p295 = scmp.ne.s32.totalorder %s280, %s294
      %p296 = scmp.eq.s32.totalorder %s24, 0
      %p297 = por %p295, %p296
      %s298 = ssub.s32 %s18, %s25
      %p299 = scmp.eq.s32.totalorder %s298, 0
      %s301 = sadd.s32 %s300, 1
      %s302 = scalar_select %p299, %s300, %s301
      %p305 = pneg %p299
      %p306 = scmp.eq.s32.totalorder %s18, 1
      %p307 = por %p305, %p306
      %p308 = scmp.ne.s32.totalorder %s300, %s303
      %p309 = scmp.eq.s32.totalorder %s18, 0
      %p310 = por %p308, %p309
      %p311 = scmp.ne.s32.totalorder %s300, %s303
      %p312 = scmp.eq.s32.totalorder %s23, 1
      %p313 = por %p311, %p312
      %p314 = scmp.ne.s32.totalorder %s303, %s304
      %p315 = scmp.eq.s32.totalorder %s23, 0
      %p316 = por %p314, %p315
      %p317 = scmp.ne.s32.totalorder %s303, %s304
      %p318 = scmp.eq.s32.totalorder %s24, 1
      %p319 = por %p317, %p318
      %p321 = scmp.ne.s32.totalorder %s304, %s320
      %p322 = scmp.eq.s32.totalorder %s24, 0
      %p323 = por %p321, %p322
      %p324 = scmp.le.s32.totalorder 1, %s18
      %p325 = scmp.lt.s32.totalorder %s18, 3
      %p326 = pnand %p324, %p325
      %p327 = pneg %p326
      // Predicated region
      $region9: #{tpu_custom_call.1} parent=5 // pred_check
        _
      $region10: #{tpu_custom_call.1} parent=5 // pred_check_branch
        %329 = sbr.rel (%p326) target = $region12
      $region11: #{tpu_custom_call.1} parent=5 // pred_region
        %s330 = ssub.s32 %s18, 1
        // Predicated region
        $region13: #{tpu_custom_call.1} parent=11 // pred_check
          %p331 = pneg %p143
        $region14: #{tpu_custom_call.1} parent=11 // pred_check_branch
          %333 = sbr.rel (%p331) target = $region16
        $region15: #{tpu_custom_call.1} parent=11 // pred_region
          _
        $region16: #{tpu_custom_call.1} parent=11 // pred_fallthru
          _
        // Predicated region
        $region17: #{tpu_custom_call.1} parent=11 // pred_check
          %p334 = pneg %p164
        $region18: #{tpu_custom_call.1} parent=11 // pred_check_branch
          %336 = sbr.rel (%p334) target = $region20
        $region19: #{tpu_custom_call.1} parent=11 // pred_region
          _
        $region20: #{tpu_custom_call.1} parent=11 // pred_fallthru
          _
        // Predicated region
        $region21: #{tpu_custom_call.1} parent=11 // pred_check
          %p337 = pneg %p185
        $region22: #{tpu_custom_call.1} parent=11 // pred_check_branch
          %339 = sbr.rel (%p337) target = $region24
        $region23: #{tpu_custom_call.1} parent=11 // pred_region
          _
        $region24: #{tpu_custom_call.1} parent=11 // pred_fallthru
          _
        // Predicated region
        $region25: #{tpu_custom_call.1} parent=11 // pred_check
          %p340 = pneg %p206
        $region26: #{tpu_custom_call.1} parent=11 // pred_check_branch
          %342 = sbr.rel (%p340) target = $region28
        $region27: #{tpu_custom_call.1} parent=11 // pred_region
          _
        $region28: #{tpu_custom_call.1} parent=11 // pred_fallthru
          _
        // Predicated region
        $region29: #{tpu_custom_call.1} parent=11 // pred_check
          %p343 = pneg %p227
        $region30: #{tpu_custom_call.1} parent=11 // pred_check_branch
          %345 = sbr.rel (%p343) target = $region32
        $region31: #{tpu_custom_call.1} parent=11 // pred_region
          _
        $region32: #{tpu_custom_call.1} parent=11 // pred_fallthru
          _
        // Predicated region
        $region33: #{tpu_custom_call.1} parent=11 // pred_check
          %p346 = pneg %p248
        $region34: #{tpu_custom_call.1} parent=11 // pred_check_branch
          %348 = sbr.rel (%p346) target = $region36
        $region35: #{tpu_custom_call.1} parent=11 // pred_region
          _
        $region36: #{tpu_custom_call.1} parent=11 // pred_fallthru
          _
        // Predicated region
        $region37: #{tpu_custom_call.1} parent=11 // pred_check
          %p349 = pneg %p269
        $region38: #{tpu_custom_call.1} parent=11 // pred_check_branch
          %351 = sbr.rel (%p349) target = $region40
        $region39: #{tpu_custom_call.1} parent=11 // pred_region
          _
        $region40: #{tpu_custom_call.1} parent=11 // pred_fallthru
          _
        // Predicated region
        $region41: #{tpu_custom_call.1} parent=11 // pred_check
          %p352 = pneg %p290
        $region42: #{tpu_custom_call.1} parent=11 // pred_check_branch
          %354 = sbr.rel (%p352) target = $region44
        $region43: #{tpu_custom_call.1} parent=11 // pred_region
          _
        $region44: #{tpu_custom_call.1} parent=11 // pred_fallthru
          _
      $region12: #{tpu_custom_call.1} parent=5 // pred_fallthru
        _
      %p355 = scmp.lt.s32.totalorder %s18, 2
      // Predicated region
      $region45: #{tpu_custom_call.1} parent=5 // pred_check
        %p356 = pneg %p355
      $region46: #{tpu_custom_call.1} parent=5 // pred_check_branch
        %358 = sbr.rel (%p356) target = $region48
      $region47: #{tpu_custom_call.1} parent=5 // pred_region
        // Predicated region
        $region49: #{tpu_custom_call.1} parent=47 // pred_check
          %p359 = pneg %p38
        $region50: #{tpu_custom_call.1} parent=47 // pred_check_branch
          %361 = sbr.rel (%p359) target = $region52
        $region51: #{tpu_custom_call.1} parent=47 // pred_region
          %s362 = smul.u32 2, %s18
          %p363 = scmp.lt.s32.totalorder %s362, 3
          %s364 = scalar_select %p363, %s362, 3
          %s365 = smul.addr %s364, 4
          %s366 = scalar_lea.vmem %s0, %s365
          %s367 = smul.u32 2, %s18
        $region52: #{tpu_custom_call.1} parent=47 // pred_fallthru
          _
        // Predicated region
        $region53: #{tpu_custom_call.1} parent=47 // pred_check
          %p368 = pneg %p64
        $region54: #{tpu_custom_call.1} parent=47 // pred_check_branch
          %370 = sbr.rel (%p368) target = $region56
        $region55: #{tpu_custom_call.1} parent=47 // pred_region
          %s371 = sand.u32 %s54, 1
          %s372 = sand.u32 %s54, 1
          %s373 = smul.addr %s372, 24
          %s374 = scalar_lea.vmem [#allocation3], %s373
          %s375 = smul.u32 2, %s18
          %s376 = smul.addr %s375, 4
          %s377 = scalar_lea.vmem %s1, %s376
          // Predicated region
          $region57: #{tpu_custom_call.1} parent=55 // pred_check
            _
          $region58: #{tpu_custom_call.1} parent=55 // pred_check_branch
            %379 = sbr.rel (0) target = $region60
          $region59: #{tpu_custom_call.1} parent=55 // pred_region
            // Predicated region
            $region61: #{tpu_custom_call.1} parent=59 // pred_check
              _
            $region62: #{tpu_custom_call.1} parent=59 // pred_check_branch
              %381 = sbr.rel target = $region64
            $region63: #{tpu_custom_call.1} parent=59 // pred_region
              // Predicated region
              $region76: #{tpu_custom_call.1} parent=63 // pred_check
                _
              $region77: #{tpu_custom_call.1} parent=63 // pred_check_branch
                %407 = sbr.rel (0) target = $region79
              $region78: #{tpu_custom_call.1} parent=63 // pred_region
                loop: start=0, step=1, limit=1
                $region80: #{tpu_custom_call.1} parent=78 // loop_pre_header
                  _
                $region81: #{tpu_custom_call.1} parent=78 // loop_header
                  %s409 = sphi 0, %s413
                  %p410 = scmp.ge.s32.totalorder %s409, 1
                  %s414 = sphi %s377, %s377
                  %s415 = sphi %s374, %s374
                $region82: #{tpu_custom_call.1} parent=78 // loop_header_branch
                  %412 = sbr.rel (%p410) target = $region86
                $region83: #{tpu_custom_call.1} parent=78 // loop_body
                  _
                $region84: #{tpu_custom_call.1} parent=78 // loop_footer
                  %s413 = sadd.s32 1, %s409
                $region85: #{tpu_custom_call.1} parent=78 // loop_footer_branch
                  %408 = sbr.rel target = $region81
                $region86: #{tpu_custom_call.1} parent=78 // loop_exit
                  _
                %s417 = ssub.s32 16, 1
                loop: start=0, step=1, limit=1
                $region87: #{tpu_custom_call.1} parent=78 // loop_pre_header
                  _
                $region88: #{tpu_custom_call.1} parent=78 // loop_header
                  %s419 = sphi 0, %s423
                  %p420 = scmp.ge.s32.totalorder %s419, 1
                  %s424 = sphi %s377, %s377
                  %s425 = sphi %s374, %s374
                $region89: #{tpu_custom_call.1} parent=78 // loop_header_branch
                  %422 = sbr.rel (%p420) target = $region93
                $region90: #{tpu_custom_call.1} parent=78 // loop_body
                  %v426 = vld [vmem:[%s424] sm:%s417]
                  %427 = vst [vmem:[%s425] sm:%s417] %v426
                  %v428 = vld [vmem:[%s424 + $0x4] sm:%s417]
                  %429 = vst [vmem:[%s425 + $0x4] sm:%s417] %v428
                  %v430 = vld [vmem:[%s424 + $0x10] sm:%s417]
                  %431 = vst [vmem:[%s425 + $0x8] sm:%s417] %v430
                  %v432 = vld [vmem:[%s424 + $0x14] sm:%s417]
                  %433 = vst [vmem:[%s425 + $0xc] sm:%s417] %v432
                  %v434 = vld [vmem:[%s424 + $0x20] sm:%s417]
                  %435 = vst [vmem:[%s425 + $0x10] sm:%s417] %v434
                  %v436 = vld [vmem:[%s424 + $0x24] sm:%s417]
                  %437 = vst [vmem:[%s425 + $0x14] sm:%s417] %v436
                $region91: #{tpu_custom_call.1} parent=78 // loop_footer
                  %s423 = sadd.s32 1, %s419
                $region92: #{tpu_custom_call.1} parent=78 // loop_footer_branch
                  %418 = sbr.rel target = $region88
                $region93: #{tpu_custom_call.1} parent=78 // loop_exit
                  _
              $region79: #{tpu_custom_call.1} parent=63 // pred_fallthru
                _
            $region64: #{tpu_custom_call.1} parent=59 // pred_fallthru
              _
            // Predicated region
            $region65: #{tpu_custom_call.1} parent=59 // pred_check
              _
            $region66: #{tpu_custom_call.1} parent=59 // pred_check_branch
              %383 = sbr.rel (0) target = $region68
            $region67: #{tpu_custom_call.1} parent=59 // pred_region
              %s385 = ssub.s32 16, 1
              loop: start=0, step=1, limit=1
              $region69: #{tpu_custom_call.1} parent=67 // loop_pre_header
                _
              $region70: #{tpu_custom_call.1} parent=67 // loop_header
                %s387 = sphi 0, %s391
                %p388 = scmp.ge.s32.totalorder %s387, 1
                %s392 = sphi %s377, %s377
                %s393 = sphi %s374, %s374
              $region71: #{tpu_custom_call.1} parent=67 // loop_header_branch
                %390 = sbr.rel (%p388) target = $region75
              $region72: #{tpu_custom_call.1} parent=67 // loop_body
                %v394 = vld [vmem:[%s392] sm:%s385]
                %395 = vst [vmem:[%s393] sm:%s385] %v394
                %v396 = vld [vmem:[%s392 + $0x4] sm:%s385]
                %397 = vst [vmem:[%s393 + $0x4] sm:%s385] %v396
                %v398 = vld [vmem:[%s392 + $0x10] sm:%s385]
                %399 = vst [vmem:[%s393 + $0x8] sm:%s385] %v398
                %v400 = vld [vmem:[%s392 + $0x14] sm:%s385]
                %401 = vst [vmem:[%s393 + $0xc] sm:%s385] %v400
                %v402 = vld [vmem:[%s392 + $0x20] sm:%s385]
                %403 = vst [vmem:[%s393 + $0x10] sm:%s385] %v402
                %v404 = vld [vmem:[%s392 + $0x24] sm:%s385]
                %405 = vst [vmem:[%s393 + $0x14] sm:%s385] %v404
              $region73: #{tpu_custom_call.1} parent=67 // loop_footer
                %s391 = sadd.s32 1, %s387
              $region74: #{tpu_custom_call.1} parent=67 // loop_footer_branch
                %386 = sbr.rel target = $region70
              $region75: #{tpu_custom_call.1} parent=67 // loop_exit
                _
            $region68: #{tpu_custom_call.1} parent=59 // pred_fallthru
              _
          $region60: #{tpu_custom_call.1} parent=55 // pred_fallthru
            _
          %438 = vnop
        $region56: #{tpu_custom_call.1} parent=47 // pred_fallthru
          _
        // Predicated region
        $region94: #{tpu_custom_call.1} parent=47 // pred_check
          %p439 = pneg %p90
        $region95: #{tpu_custom_call.1} parent=47 // pred_check_branch
          %441 = sbr.rel (%p439) target = $region97
        $region96: #{tpu_custom_call.1} parent=47 // pred_region
          %s442 = sand.u32 %s80, 1
          %s443 = sand.u32 %s80, 1
          %s444 = smul.addr %s443, 24
          %s445 = scalar_lea.vmem [#allocation4], %s444
          %s446 = smul.u32 2, %s18
          %s447 = smul.addr %s446, 4
          %s448 = scalar_lea.vmem %s2, %s447
          // Predicated region
          $region98: #{tpu_custom_call.1} parent=96 // pred_check
            _
          $region99: #{tpu_custom_call.1} parent=96 // pred_check_branch
            %450 = sbr.rel (0) target = $region101
          $region100: #{tpu_custom_call.1} parent=96 // pred_region
            // Predicated region
            $region102: #{tpu_custom_call.1} parent=100 // pred_check
              _
            $region103: #{tpu_custom_call.1} parent=100 // pred_check_branch
              %452 = sbr.rel target = $region105
            $region104: #{tpu_custom_call.1} parent=100 // pred_region
              // Predicated region
              $region117: #{tpu_custom_call.1} parent=104 // pred_check
                _
              $region118: #{tpu_custom_call.1} parent=104 // pred_check_branch
                %478 = sbr.rel (0) target = $region120
              $region119: #{tpu_custom_call.1} parent=104 // pred_region
                loop: start=0, step=1, limit=1
                $region121: #{tpu_custom_call.1} parent=119 // loop_pre_header
                  _
                $region122: #{tpu_custom_call.1} parent=119 // loop_header
                  %s480 = sphi 0, %s484
                  %p481 = scmp.ge.s32.totalorder %s480, 1
                  %s485 = sphi %s448, %s448
                  %s486 = sphi %s445, %s445
                $region123: #{tpu_custom_call.1} parent=119 // loop_header_branch
                  %483 = sbr.rel (%p481) target = $region127
                $region124: #{tpu_custom_call.1} parent=119 // loop_body
                  _
                $region125: #{tpu_custom_call.1} parent=119 // loop_footer
                  %s484 = sadd.s32 1, %s480
                $region126: #{tpu_custom_call.1} parent=119 // loop_footer_branch
                  %479 = sbr.rel target = $region122
                $region127: #{tpu_custom_call.1} parent=119 // loop_exit
                  _
                %s488 = ssub.s32 16, 1
                loop: start=0, step=1, limit=1
                $region128: #{tpu_custom_call.1} parent=119 // loop_pre_header
                  _
                $region129: #{tpu_custom_call.1} parent=119 // loop_header
                  %s490 = sphi 0, %s494
                  %p491 = scmp.ge.s32.totalorder %s490, 1
                  %s495 = sphi %s448, %s448
                  %s496 = sphi %s445, %s445
                $region130: #{tpu_custom_call.1} parent=119 // loop_header_branch
                  %493 = sbr.rel (%p491) target = $region134
                $region131: #{tpu_custom_call.1} parent=119 // loop_body
                  %v497 = vld [vmem:[%s495] sm:%s488]
                  %498 = vst [vmem:[%s496] sm:%s488] %v497
                  %v499 = vld [vmem:[%s495 + $0x4] sm:%s488]
                  %500 = vst [vmem:[%s496 + $0x4] sm:%s488] %v499
                  %v501 = vld [vmem:[%s495 + $0x10] sm:%s488]
                  %502 = vst [vmem:[%s496 + $0x8] sm:%s488] %v501
                  %v503 = vld [vmem:[%s495 + $0x14] sm:%s488]
                  %504 = vst [vmem:[%s496 + $0xc] sm:%s488] %v503
                  %v505 = vld [vmem:[%s495 + $0x20] sm:%s488]
                  %506 = vst [vmem:[%s496 + $0x10] sm:%s488] %v505
                  %v507 = vld [vmem:[%s495 + $0x24] sm:%s488]
                  %508 = vst [vmem:[%s496 + $0x14] sm:%s488] %v507
                $region132: #{tpu_custom_call.1} parent=119 // loop_footer
                  %s494 = sadd.s32 1, %s490
                $region133: #{tpu_custom_call.1} parent=119 // loop_footer_branch
                  %489 = sbr.rel target = $region129
                $region134: #{tpu_custom_call.1} parent=119 // loop_exit
                  _
              $region120: #{tpu_custom_call.1} parent=104 // pred_fallthru
                _
            $region105: #{tpu_custom_call.1} parent=100 // pred_fallthru
              _
            // Predicated region
            $region106: #{tpu_custom_call.1} parent=100 // pred_check
              _
            $region107: #{tpu_custom_call.1} parent=100 // pred_check_branch
              %454 = sbr.rel (0) target = $region109
            $region108: #{tpu_custom_call.1} parent=100 // pred_region
              %s456 = ssub.s32 16, 1
              loop: start=0, step=1, limit=1
              $region110: #{tpu_custom_call.1} parent=108 // loop_pre_header
                _
              $region111: #{tpu_custom_call.1} parent=108 // loop_header
                %s458 = sphi 0, %s462
                %p459 = scmp.ge.s32.totalorder %s458, 1
                %s463 = sphi %s448, %s448
                %s464 = sphi %s445, %s445
              $region112: #{tpu_custom_call.1} parent=108 // loop_header_branch
                %461 = sbr.rel (%p459) target = $region116
              $region113: #{tpu_custom_call.1} parent=108 // loop_body
                %v465 = vld [vmem:[%s463] sm:%s456]
                %466 = vst [vmem:[%s464] sm:%s456] %v465
                %v467 = vld [vmem:[%s463 + $0x4] sm:%s456]
                %468 = vst [vmem:[%s464 + $0x4] sm:%s456] %v467
                %v469 = vld [vmem:[%s463 + $0x10] sm:%s456]
                %470 = vst [vmem:[%s464 + $0x8] sm:%s456] %v469
                %v471 = vld [vmem:[%s463 + $0x14] sm:%s456]
                %472 = vst [vmem:[%s464 + $0xc] sm:%s456] %v471
                %v473 = vld [vmem:[%s463 + $0x20] sm:%s456]
                %474 = vst [vmem:[%s464 + $0x10] sm:%s456] %v473
                %v475 = vld [vmem:[%s463 + $0x24] sm:%s456]
                %476 = vst [vmem:[%s464 + $0x14] sm:%s456] %v475
              $region114: #{tpu_custom_call.1} parent=108 // loop_footer
                %s462 = sadd.s32 1, %s458
              $region115: #{tpu_custom_call.1} parent=108 // loop_footer_branch
                %457 = sbr.rel target = $region111
              $region116: #{tpu_custom_call.1} parent=108 // loop_exit
                _
            $region109: #{tpu_custom_call.1} parent=100 // pred_fallthru
              _
          $region101: #{tpu_custom_call.1} parent=96 // pred_fallthru
            _
          %509 = vnop
        $region97: #{tpu_custom_call.1} parent=47 // pred_fallthru
          _
        // Predicated region
        $region135: #{tpu_custom_call.1} parent=47 // pred_check
          %p510 = pneg %p116
        $region136: #{tpu_custom_call.1} parent=47 // pred_check_branch
          %512 = sbr.rel (%p510) target = $region138
        $region137: #{tpu_custom_call.1} parent=47 // pred_region
          %s513 = sand.u32 %s106, 1
          %s514 = sand.u32 %s106, 1
          %s515 = smul.addr %s514, 48
          %s516 = scalar_lea.vmem [#allocation5], %s515
          %s517 = smul.u32 2, %s18
          %s518 = smul.addr %s517, 8
          %s519 = scalar_lea.vmem %s3, %s518
          // Predicated region
          $region139: #{tpu_custom_call.1} parent=137 // pred_check
            _
          $region140: #{tpu_custom_call.1} parent=137 // pred_check_branch
            %521 = sbr.rel (0) target = $region142
          $region141: #{tpu_custom_call.1} parent=137 // pred_region
            // Predicated region
            $region143: #{tpu_custom_call.1} parent=141 // pred_check
              _
            $region144: #{tpu_custom_call.1} parent=141 // pred_check_branch
              %523 = sbr.rel (0) target = $region146
            $region145: #{tpu_custom_call.1} parent=141 // pred_region
              // Predicated region
              $region158: #{tpu_custom_call.1} parent=145 // pred_check
                _
              $region159: #{tpu_custom_call.1} parent=145 // pred_check_branch
                %549 = sbr.rel (0) target = $region161
              $region160: #{tpu_custom_call.1} parent=145 // pred_region
                loop: start=0, step=1, limit=1
                $region162: #{tpu_custom_call.1} parent=160 // loop_pre_header
                  _
                $region163: #{tpu_custom_call.1} parent=160 // loop_header
                  %s551 = sphi 0, %s555
                  %p552 = scmp.ge.s32.totalorder %s551, 1
                  %s556 = sphi %s519, %s519
                  %s557 = sphi %s516, %s516
                $region164: #{tpu_custom_call.1} parent=160 // loop_header_branch
                  %554 = sbr.rel (%p552) target = $region168
                $region165: #{tpu_custom_call.1} parent=160 // loop_body
                  %v558 = vld [vmem:[%s556] sm:$0xff]
                  %559 = vst [vmem:[%s557] sm:$0xff] %v558
                  %v560 = vld [vmem:[%s556 + $0x8] sm:$0xff]
                  %561 = vst [vmem:[%s557 + $0x8] sm:$0xff] %v560
                  %v562 = vld [vmem:[%s556 + $0x20] sm:$0xff]
                  %563 = vst [vmem:[%s557 + $0x10] sm:$0xff] %v562
                  %v564 = vld [vmem:[%s556 + $0x28] sm:$0xff]
                  %565 = vst [vmem:[%s557 + $0x18] sm:$0xff] %v564
                  %v566 = vld [vmem:[%s556 + $0x40] sm:$0xff]
                  %567 = vst [vmem:[%s557 + $0x20] sm:$0xff] %v566
                  %v568 = vld [vmem:[%s556 + $0x48] sm:$0xff]
                  %569 = vst [vmem:[%s557 + $0x28] sm:$0xff] %v568
                $region166: #{tpu_custom_call.1} parent=160 // loop_footer
                  %s555 = sadd.s32 1, %s551
                $region167: #{tpu_custom_call.1} parent=160 // loop_footer_branch
                  %550 = sbr.rel target = $region163
                $region168: #{tpu_custom_call.1} parent=160 // loop_exit
                  _
              $region161: #{tpu_custom_call.1} parent=145 // pred_fallthru
                _
              // Predicated region
              $region169: #{tpu_custom_call.1} parent=145 // pred_check
                _
              $region170: #{tpu_custom_call.1} parent=145 // pred_check_branch
                %571 = sbr.rel target = $region172
              $region171: #{tpu_custom_call.1} parent=145 // pred_region
                _
              $region172: #{tpu_custom_call.1} parent=145 // pred_fallthru
                _
            $region146: #{tpu_custom_call.1} parent=141 // pred_fallthru
              _
            // Predicated region
            $region147: #{tpu_custom_call.1} parent=141 // pred_check
              _
            $region148: #{tpu_custom_call.1} parent=141 // pred_check_branch
              %525 = sbr.rel target = $region150
            $region149: #{tpu_custom_call.1} parent=141 // pred_region
              %s527 = ssub.s32 256, 1
              loop: start=0, step=1, limit=1
              $region151: #{tpu_custom_call.1} parent=149 // loop_pre_header
                _
              $region152: #{tpu_custom_call.1} parent=149 // loop_header
                %s529 = sphi 0, %s533
                %p530 = scmp.ge.s32.totalorder %s529, 1
                %s534 = sphi %s519, %s519
                %s535 = sphi %s516, %s516
              $region153: #{tpu_custom_call.1} parent=149 // loop_header_branch
                %532 = sbr.rel (%p530) target = $region157
              $region154: #{tpu_custom_call.1} parent=149 // loop_body
                %v536 = vld [vmem:[%s534] sm:%s527]
                %537 = vst [vmem:[%s535] sm:%s527] %v536
                %v538 = vld [vmem:[%s534 + $0x8] sm:%s527]
                %539 = vst [vmem:[%s535 + $0x8] sm:%s527] %v538
                %v540 = vld [vmem:[%s534 + $0x20] sm:%s527]
                %541 = vst [vmem:[%s535 + $0x10] sm:%s527] %v540
                %v542 = vld [vmem:[%s534 + $0x28] sm:%s527]
                %543 = vst [vmem:[%s535 + $0x18] sm:%s527] %v542
                %v544 = vld [vmem:[%s534 + $0x40] sm:%s527]
                %545 = vst [vmem:[%s535 + $0x20] sm:%s527] %v544
                %v546 = vld [vmem:[%s534 + $0x48] sm:%s527]
                %547 = vst [vmem:[%s535 + $0x28] sm:%s527] %v546
              $region155: #{tpu_custom_call.1} parent=149 // loop_footer
                %s533 = sadd.s32 1, %s529
              $region156: #{tpu_custom_call.1} parent=149 // loop_footer_branch
                %528 = sbr.rel target = $region152
              $region157: #{tpu_custom_call.1} parent=149 // loop_exit
                _
            $region150: #{tpu_custom_call.1} parent=141 // pred_fallthru
              _
          $region142: #{tpu_custom_call.1} parent=137 // pred_fallthru
            _
          %572 = vnop
        $region138: #{tpu_custom_call.1} parent=47 // pred_fallthru
          _
      $region48: #{tpu_custom_call.1} parent=5 // pred_fallthru
        _
      %p573 = scmp.le.s32.totalorder 1, %s18
      %p574 = scmp.lt.s32.totalorder %s18, 3
      %p575 = pnand %p573, %p574
      %p576 = pneg %p575
      // Predicated region
      $region173: #{tpu_custom_call.1} parent=5 // pred_check
        _
      $region174: #{tpu_custom_call.1} parent=5 // pred_check_branch
        %578 = sbr.rel (%p575) target = $region176
      $region175: #{tpu_custom_call.1} parent=5 // pred_region
        %s579 = ssub.s32 %s18, 1
        %s580 = sand.u32 %s57, 1
        %s581 = sand.u32 %s57, 1
        %s582 = smul.addr %s581, 24
        %s583 = scalar_lea.vmem [#allocation3], %s582
        // Predicated region
        $region177: #{tpu_custom_call.1} parent=175 // pred_check
          %p584 = pneg %p70
        $region178: #{tpu_custom_call.1} parent=175 // pred_check_branch
          %586 = sbr.rel (%p584) target = $region180
        $region179: #{tpu_custom_call.1} parent=175 // pred_region
          _
        $region180: #{tpu_custom_call.1} parent=175 // pred_fallthru
          _
        %s587 = sand.u32 %s83, 1
        %s588 = sand.u32 %s83, 1
        %s589 = smul.addr %s588, 24
        %s590 = scalar_lea.vmem [#allocation4], %s589
        // Predicated region
        $region181: #{tpu_custom_call.1} parent=175 // pred_check
          %p591 = pneg %p96
        $region182: #{tpu_custom_call.1} parent=175 // pred_check_branch
          %593 = sbr.rel (%p591) target = $region184
        $region183: #{tpu_custom_call.1} parent=175 // pred_region
          _
        $region184: #{tpu_custom_call.1} parent=175 // pred_fallthru
          _
        %s594 = sand.u32 %s109, 1
        %s595 = sand.u32 %s109, 1
        %s596 = smul.addr %s595, 48
        %s597 = scalar_lea.vmem [#allocation5], %s596
        // Predicated region
        $region185: #{tpu_custom_call.1} parent=175 // pred_check
          %p598 = pneg %p122
        $region186: #{tpu_custom_call.1} parent=175 // pred_check_branch
          %600 = sbr.rel (%p598) target = $region188
        $region187: #{tpu_custom_call.1} parent=175 // pred_region
          _
        $region188: #{tpu_custom_call.1} parent=175 // pred_fallthru
          _
        %s601 = smul.u32 2, %s23
        %p602 = scmp.lt.s32.totalorder %s601, 3
        %s603 = scalar_select %p602, %s601, 3
        %s604 = smul.addr %s603, 4
        %s605 = scalar_lea.vmem %s0, %s604
        %p606 = pneg %p44
        %p607 = pneg %p41
        %s608 = sand.u32 %s57, 1
        %s609 = sand.u32 %s57, 1
        %s610 = smul.addr %s609, 24
        %s611 = scalar_lea.vmem [#allocation3], %s610
        %p612 = pneg %p70
        %p613 = pneg %p67
        %s614 = sand.u32 %s83, 1
        %s615 = sand.u32 %s83, 1
        %s616 = smul.addr %s615, 24
        %s617 = scalar_lea.vmem [#allocation4], %s616
        %p618 = pneg %p96
        %p619 = pneg %p93
        %s620 = sand.u32 %s109, 1
        %s621 = sand.u32 %s109, 1
        %s622 = smul.addr %s621, 48
        %s623 = scalar_lea.vmem [#allocation5], %s622
        %p624 = pneg %p122
        %p625 = pneg %p119
        %p626 = pneg %p143
        %p627 = pneg %p140
        %p628 = pneg %p164
        %p629 = pneg %p161
        %p630 = pneg %p185
        %p631 = pneg %p182
        %p632 = pneg %p206
        %p633 = pneg %p203
        %p634 = pneg %p227
        %p635 = pneg %p224
        %p636 = pneg %p248
        %p637 = pneg %p245
        %p638 = pneg %p269
        %p639 = pneg %p266
        %p640 = pneg %p290
        %p641 = pneg %p287
        %p642 = pneg %p316
        %p643 = pneg %p313
        %s644 = sand.u32 %s303, 1
        %s645 = sand.u32 %s303, 1
        %s646 = smul.addr %s645, 48
        %s647 = scalar_lea.vmem [#allocation6], %s646
        %s648 = smul.u32 2, %s23
        %p649 = scmp.lt.s32.totalorder %s648, 3
        %s650 = scalar_select %p649, %s648, 3
        %s651 = smul.addr %s650, 4
        %s652 = scalar_lea.vmem %s0, %s651
        %s653 = smul.u32 2, %s23
        %s654 = smul.u32 2, %s23
        %s655 = smul.u32 2, %s23
        %s656 = smul.u32 2, %s23
        %s657 = smul.u32 2, %s23
        %v659 = vld [vmem:[%s652] sm:$0xf]
        %v660 = vld [vmem:[%s652 + $0x4] sm:$0xf]
        %v661 = vld [vmem:[%s4] sm:$0xf]
        %v662 = vld [vmem:[%s4 + $0x4] sm:$0x3]
        %v663 = vld [vmem:[%s7] sm:$0x1]
        %v665 = vlaneseq
        %v666 = vshrl.u32 %v665, 7
        %v667 = vsub.s32 0, %v666
        %v668 = vrot.slane %v663, %v667
        %v672 = vunpack.c.l.b16 %v659
        %v673 = vunpack.c.l.b16 %v660
        %v674 = vpack.c.b16 %v673, %v672
        %v677 = vunpack.c.l.b16 %v661
        %v678 = vunpack.c.l.b16 %v662
        %v679 = vpack.c.b16 %v678, %v677
        %vm680 = vcmask 97280
        %v682 = vsel %vm680, %v674, 0
        %vm684 = vcmask 1045504
        %v686 = vsel %vm684, %v679, 0
        %688 = vmatprep.subr.bf16.mxu0 0
        %689 = vmatpush1.bf16.msra.mxu0 0
        %690 = vmatprep.subr.bf16.mxu0 0
        %691 = vmatpush1.bf16.msra.mxu0 0
        %692 = vmatprep.subr.bf16.mxu0 0
        %693 = vmatpush1.bf16.msra.mxu0 0
        %694 = vmatprep.subr.bf16.mxu0 0
        %695 = vmatpush1.bf16.msra.mxu0 0
        %696 = vmatprep.subr.bf16.mxu0 0
        %697 = vmatpush1.bf16.msra.mxu0 0
        %698 = vmatprep.subr.bf16.mxu0 0
        %699 = vmatpush1.bf16.msra.mxu0 0
        %700 = vmatprep.subr.bf16.mxu0 0
        %701 = vmatpush1.bf16.msra.mxu0 0
        %702 = vmatprep.subr.bf16.mxu0 0
        %703 = vmatpush1.bf16.msra.mxu0 %v686
        %704 = vmatprep.subr.bf16.mxu0 0
        %705 = vmatpush2.bf16.msra.mxu0 0
        %706 = vmatprep.subr.bf16.mxu0 0
        %707 = vmatpush2.bf16.msra.mxu0 0
        %708 = vmatprep.subr.bf16.mxu0 0
        %709 = vmatpush2.bf16.msra.mxu0 0
        %710 = vmatprep.subr.bf16.mxu0 0
        %711 = vmatpush2.bf16.msra.mxu0 0
        %712 = vmatprep.subr.bf16.mxu0 0
        %713 = vmatpush2.bf16.msra.mxu0 0
        %714 = vmatprep.subr.bf16.mxu0 0
        %715 = vmatpush2.bf16.msra.mxu0 0
        %716 = vmatprep.subr.bf16.mxu0 0
        %717 = vmatpush2.bf16.msra.mxu0 0
        %718 = vmatprep.subr.bf16.mxu0 0
        %719 = vmatpush2.bf16.msra.mxu0 0
        %720 = vmatprep.mubr.bf16.mxu0 0
        %721 = vmatmul.mubr.bf16.gmra.mxu0 %v682
        %v722 = vpop.f32.mrf.mxu0
        %v723 = vadd.f32 %v668, %v722
        %v724 = vpop.f32.mrf.mxu0
        %v725 = vpop.f32.mrf.mxu0
        %v726 = vadd.f32 %v668, %v725
        %v727 = vpop.f32.mrf.mxu0
        %728 = vdwg.mxu0
        %v729 = vld [vmem:[%s583] sm:$0xf]
        %v730 = vld [vmem:[%s583 + $0x4] sm:$0xf]
        %v731 = vld [vmem:[%s5] sm:$0xf]
        %v732 = vld [vmem:[%s5 + $0x4] sm:$0xf]
        %v733 = vld [vmem:[%s5 + $0x8] sm:$0x1]
        %v736 = vunpack.c.l.b16 %v729
        %v737 = vunpack.c.l.b16 %v730
        %v738 = vpack.c.b16 %v737, %v736
        %v742 = vunpack.c.l.b16 %v731
        %v743 = vunpack.c.l.b16 %v732
        %v744 = vunpack.c.l.b16 %v733
        %v745 = vpack.c.b16 %v743, %v742
        %v746 = vpack.c.b16 %v744, %v744
        %vm748 = vcmask 146432
        %v750 = vsel %vm748, %v738, 0
        %vm752 = vcmask 1040384
        %v754 = vsel %vm752, %v746, 0
        %756 = vmatprep.subr.bf16.mxu0 0
        %757 = vmatpush1.bf16.msra.mxu0 0
        %758 = vmatprep.subr.bf16.mxu0 0
        %759 = vmatpush1.bf16.msra.mxu0 0
        %760 = vmatprep.subr.bf16.mxu0 0
        %761 = vmatpush1.bf16.msra.mxu0 0
        %762 = vmatprep.subr.bf16.mxu0 0
        %763 = vmatpush1.bf16.msra.mxu0 0
        %764 = vmatprep.subr.bf16.mxu0 0
        %765 = vmatpush1.bf16.msra.mxu0 0
        %766 = vmatprep.subr.bf16.mxu0 0
        %767 = vmatpush1.bf16.msra.mxu0 0
        %768 = vmatprep.subr.bf16.mxu0 0
        %769 = vmatpush1.bf16.msra.mxu0 %v754
        %770 = vmatprep.subr.bf16.mxu0 0
        %771 = vmatpush1.bf16.msra.mxu0 %v745
        %772 = vmatprep.subr.bf16.mxu0 0
        %773 = vmatpush2.bf16.msra.mxu0 0
        %774 = vmatprep.subr.bf16.mxu0 0
        %775 = vmatpush2.bf16.msra.mxu0 0
        %776 = vmatprep.subr.bf16.mxu0 0
        %777 = vmatpush2.bf16.msra.mxu0 0
        %778 = vmatprep.subr.bf16.mxu0 0
        %779 = vmatpush2.bf16.msra.mxu0 0
        %780 = vmatprep.subr.bf16.mxu0 0
        %781 = vmatpush2.bf16.msra.mxu0 0
        %782 = vmatprep.subr.bf16.mxu0 0
        %783 = vmatpush2.bf16.msra.mxu0 0
        %784 = vmatprep.subr.bf16.mxu0 0
        %785 = vmatpush2.bf16.msra.mxu0 0
        %786 = vmatprep.subr.bf16.mxu0 0
        %787 = vmatpush2.bf16.msra.mxu0 0
        %788 = vmatprep.mubr.bf16.mxu0 0
        %789 = vmatmul.mubr.bf16.gmra.mxu0 %v750
        %v790 = vpop.f32.mrf.mxu0
        %v791 = vadd.f32 0.0, %v790
        %v792 = vpop.f32.mrf.mxu0
        %v793 = vpop.f32.mrf.mxu0
        %v794 = vadd.f32 0.0, %v793
        %v795 = vpop.f32.mrf.mxu0
        %796 = vdwg.mxu0
        %v797 = vadd.f32 %v723, %v791
        %v798 = vadd.f32 %v726, %v794
        %s799 = scalar_lea.vmem %s583, 8 [#allocation3]
        %v800 = vld [vmem:[%s799] sm:$0xf]
        %v801 = vld [vmem:[%s799 + $0x4] sm:$0xf]
        %v804 = vunpack.c.l.b16 %v800
        %v805 = vunpack.c.l.b16 %v801
        %v806 = vpack.c.b16 %v805, %v804
        %v808 = vsel %vm748, %v806, 0
        %810 = vmatprep.subr.bf16.mxu0 0
        %811 = vmatpush1.bf16.msra.mxu0 0
        %812 = vmatprep.subr.bf16.mxu0 0
        %813 = vmatpush1.bf16.msra.mxu0 0
        %814 = vmatprep.subr.bf16.mxu0 0
        %815 = vmatpush1.bf16.msra.mxu0 0
        %816 = vmatprep.subr.bf16.mxu0 0
        %817 = vmatpush1.bf16.msra.mxu0 0
        %818 = vmatprep.subr.bf16.mxu0 0
        %819 = vmatpush1.bf16.msra.mxu0 0
        %820 = vmatprep.subr.bf16.mxu0 0
        %821 = vmatpush1.bf16.msra.mxu0 0
        %822 = vmatprep.subr.bf16.mxu0 0
        %823 = vmatpush1.bf16.msra.mxu0 %v754
        %824 = vmatprep.subr.bf16.mxu0 0
        %825 = vmatpush1.bf16.msra.mxu0 %v745
        %826 = vmatprep.subr.bf16.mxu0 0
        %827 = vmatpush2.bf16.msra.mxu0 0
        %828 = vmatprep.subr.bf16.mxu0 0
        %829 = vmatpush2.bf16.msra.mxu0 0
        %830 = vmatprep.subr.bf16.mxu0 0
        %831 = vmatpush2.bf16.msra.mxu0 0
        %832 = vmatprep.subr.bf16.mxu0 0
        %833 = vmatpush2.bf16.msra.mxu0 0
        %834 = vmatprep.subr.bf16.mxu0 0
        %835 = vmatpush2.bf16.msra.mxu0 0
        %836 = vmatprep.subr.bf16.mxu0 0
        %837 = vmatpush2.bf16.msra.mxu0 0
        %838 = vmatprep.subr.bf16.mxu0 0
        %839 = vmatpush2.bf16.msra.mxu0 0
        %840 = vmatprep.subr.bf16.mxu0 0
        %841 = vmatpush2.bf16.msra.mxu0 0
        %842 = vmatprep.mubr.bf16.mxu0 0
        %843 = vmatmul.mubr.bf16.gmra.mxu0 %v808
        %v844 = vpop.f32.mrf.mxu0
        %v845 = vadd.f32 0.0, %v844
        %v846 = vpop.f32.mrf.mxu0
        %v847 = vpop.f32.mrf.mxu0
        %v848 = vadd.f32 0.0, %v847
        %v849 = vpop.f32.mrf.mxu0
        %850 = vdwg.mxu0
        %v851 = vadd.f32 %v723, %v845
        %v852 = vadd.f32 %v726, %v848
        %s853 = scalar_lea.vmem %s583, 16 [#allocation3]
        %v854 = vld [vmem:[%s853] sm:$0xf]
        %v855 = vld [vmem:[%s853 + $0x4] sm:$0xf]
        %v858 = vunpack.c.l.b16 %v854
        %v859 = vunpack.c.l.b16 %v855
        %v860 = vpack.c.b16 %v859, %v858
        %v862 = vsel %vm748, %v860, 0
        %864 = vmatprep.subr.bf16.mxu0 0
        %865 = vmatpush1.bf16.msra.mxu0 0
        %866 = vmatprep.subr.bf16.mxu0 0
        %867 = vmatpush1.bf16.msra.mxu0 0
        %868 = vmatprep.subr.bf16.mxu0 0
        %869 = vmatpush1.bf16.msra.mxu0 0
        %870 = vmatprep.subr.bf16.mxu0 0
        %871 = vmatpush1.bf16.msra.mxu0 0
        %872 = vmatprep.subr.bf16.mxu0 0
        %873 = vmatpush1.bf16.msra.mxu0 0
        %874 = vmatprep.subr.bf16.mxu0 0
        %875 = vmatpush1.bf16.msra.mxu0 0
        %876 = vmatprep.subr.bf16.mxu0 0
        %877 = vmatpush1.bf16.msra.mxu0 %v754
        %878 = vmatprep.subr.bf16.mxu0 0
        %879 = vmatpush1.bf16.msra.mxu0 %v745
        %880 = vmatprep.subr.bf16.mxu0 0
        %881 = vmatpush2.bf16.msra.mxu0 0
        %882 = vmatprep.subr.bf16.mxu0 0
        %883 = vmatpush2.bf16.msra.mxu0 0
        %884 = vmatprep.subr.bf16.mxu0 0
        %885 = vmatpush2.bf16.msra.mxu0 0
        %886 = vmatprep.subr.bf16.mxu0 0
        %887 = vmatpush2.bf16.msra.mxu0 0
        %888 = vmatprep.subr.bf16.mxu0 0
        %889 = vmatpush2.bf16.msra.mxu0 0
        %890 = vmatprep.subr.bf16.mxu0 0
        %891 = vmatpush2.bf16.msra.mxu0 0
        %892 = vmatprep.subr.bf16.mxu0 0
        %893 = vmatpush2.bf16.msra.mxu0 0
        %894 = vmatprep.subr.bf16.mxu0 0
        %895 = vmatpush2.bf16.msra.mxu0 0
        %896 = vmatprep.mubr.bf16.mxu0 0
        %897 = vmatmul.mubr.bf16.gmra.mxu0 %v862
        %v898 = vpop.f32.mrf.mxu0
        %v899 = vadd.f32 0.0, %v898
        %v900 = vpop.f32.mrf.mxu0
        %v901 = vpop.f32.mrf.mxu0
        %v902 = vadd.f32 0.0, %v901
        %v903 = vpop.f32.mrf.mxu0
        %904 = vdwg.mxu0
        %v905 = vadd.f32 %v723, %v899
        %v906 = vadd.f32 %v726, %v902
        %v907 = vld [vmem:[%s590] sm:$0xf]
        %v908 = vld [vmem:[%s590 + $0x4] sm:$0xf]
        %v909 = vld [vmem:[%s6] sm:$0xf]
        %v910 = vld [vmem:[%s6 + $0x4] sm:$0x7]
        %v913 = vunpack.c.l.b16 %v907
        %v914 = vunpack.c.l.b16 %v908
        %v915 = vpack.c.b16 %v914, %v913
        %v918 = vunpack.c.l.b16 %v909
        %v919 = vunpack.c.l.b16 %v910
        %v920 = vpack.c.b16 %v919, %v918
        %vm921 = vcmask 105472
        %v923 = vsel %vm921, %v915, 0
        %vm925 = vcmask 1046528
        %v926 = vsel %vm684, 4294967295, 65535
        %v927 = vsel %vm925, %v926, 0
        %v929 = vand.u32 %v920, %v927
        %931 = vmatprep.subr.bf16.mxu0 0
        %932 = vmatpush1.bf16.msra.mxu0 0
        %933 = vmatprep.subr.bf16.mxu0 0
        %934 = vmatpush1.bf16.msra.mxu0 0
        %935 = vmatprep.subr.bf16.mxu0 0
        %936 = vmatpush1.bf16.msra.mxu0 0
        %937 = vmatprep.subr.bf16.mxu0 0
        %938 = vmatpush1.bf16.msra.mxu0 0
        %939 = vmatprep.subr.bf16.mxu0 0
        %940 = vmatpush1.bf16.msra.mxu0 0
        %941 = vmatprep.subr.bf16.mxu0 0
        %942 = vmatpush1.bf16.msra.mxu0 0
        %943 = vmatprep.subr.bf16.mxu0 0
        %944 = vmatpush1.bf16.msra.mxu0 0
        %945 = vmatprep.subr.bf16.mxu0 0
        %946 = vmatpush1.bf16.msra.mxu0 %v929
        %947 = vmatprep.subr.bf16.mxu0 0
        %948 = vmatpush2.bf16.msra.mxu0 0
        %949 = vmatprep.subr.bf16.mxu0 0
        %950 = vmatpush2.bf16.msra.mxu0 0
        %951 = vmatprep.subr.bf16.mxu0 0
        %952 = vmatpush2.bf16.msra.mxu0 0
        %953 = vmatprep.subr.bf16.mxu0 0
        %954 = vmatpush2.bf16.msra.mxu0 0
        %955 = vmatprep.subr.bf16.mxu0 0
        %956 = vmatpush2.bf16.msra.mxu0 0
        %957 = vmatprep.subr.bf16.mxu0 0
        %958 = vmatpush2.bf16.msra.mxu0 0
        %959 = vmatprep.subr.bf16.mxu0 0
        %960 = vmatpush2.bf16.msra.mxu0 0
        %961 = vmatprep.subr.bf16.mxu0 0
        %962 = vmatpush2.bf16.msra.mxu0 0
        %963 = vmatprep.mubr.bf16.mxu0 0
        %964 = vmatmul.mubr.bf16.gmra.mxu0 %v923
        %v965 = vpop.f32.mrf.mxu0
        %v966 = vadd.f32 0.0, %v965
        %v967 = vpop.f32.mrf.mxu0
        %v968 = vpop.f32.mrf.mxu0
        %v969 = vadd.f32 0.0, %v968
        %v970 = vpop.f32.mrf.mxu0
        %971 = vdwg.mxu0
        %s972 = scalar_lea.vmem %s590, 8 [#allocation4]
        %v973 = vld [vmem:[%s972] sm:$0xf]
        %v974 = vld [vmem:[%s972 + $0x4] sm:$0xf]
        %v977 = vunpack.c.l.b16 %v973
        %v978 = vunpack.c.l.b16 %v974
        %v979 = vpack.c.b16 %v978, %v977
        %v981 = vsel %vm921, %v979, 0
        %983 = vmatprep.subr.bf16.mxu0 0
        %984 = vmatpush1.bf16.msra.mxu0 0
        %985 = vmatprep.subr.bf16.mxu0 0
        %986 = vmatpush1.bf16.msra.mxu0 0
        %987 = vmatprep.subr.bf16.mxu0 0
        %988 = vmatpush1.bf16.msra.mxu0 0
        %989 = vmatprep.subr.bf16.mxu0 0
        %990 = vmatpush1.bf16.msra.mxu0 0
        %991 = vmatprep.subr.bf16.mxu0 0
        %992 = vmatpush1.bf16.msra.mxu0 0
        %993 = vmatprep.subr.bf16.mxu0 0
        %994 = vmatpush1.bf16.msra.mxu0 0
        %995 = vmatprep.subr.bf16.mxu0 0
        %996 = vmatpush1.bf16.msra.mxu0 0
        %997 = vmatprep.subr.bf16.mxu0 0
        %998 = vmatpush1.bf16.msra.mxu0 %v929
        %999 = vmatprep.subr.bf16.mxu0 0
        %1000 = vmatpush2.bf16.msra.mxu0 0
        %1001 = vmatprep.subr.bf16.mxu0 0
        %1002 = vmatpush2.bf16.msra.mxu0 0
        %1003 = vmatprep.subr.bf16.mxu0 0
        %1004 = vmatpush2.bf16.msra.mxu0 0
        %1005 = vmatprep.subr.bf16.mxu0 0
        %1006 = vmatpush2.bf16.msra.mxu0 0
        %1007 = vmatprep.subr.bf16.mxu0 0
        %1008 = vmatpush2.bf16.msra.mxu0 0
        %1009 = vmatprep.subr.bf16.mxu0 0
        %1010 = vmatpush2.bf16.msra.mxu0 0
        %1011 = vmatprep.subr.bf16.mxu0 0
        %1012 = vmatpush2.bf16.msra.mxu0 0
        %1013 = vmatprep.subr.bf16.mxu0 0
        %1014 = vmatpush2.bf16.msra.mxu0 0
        %1015 = vmatprep.mubr.bf16.mxu0 0
        %1016 = vmatmul.mubr.bf16.gmra.mxu0 %v981
        %v1017 = vpop.f32.mrf.mxu0
        %v1018 = vadd.f32 0.0, %v1017
        %v1019 = vpop.f32.mrf.mxu0
        %v1020 = vpop.f32.mrf.mxu0
        %v1021 = vadd.f32 0.0, %v1020
        %v1022 = vpop.f32.mrf.mxu0
        %1023 = vdwg.mxu0
        %s1024 = scalar_lea.vmem %s590, 16 [#allocation4]
        %v1025 = vld [vmem:[%s1024] sm:$0xf]
        %v1026 = vld [vmem:[%s1024 + $0x4] sm:$0xf]
        %v1029 = vunpack.c.l.b16 %v1025
        %v1030 = vunpack.c.l.b16 %v1026
        %v1031 = vpack.c.b16 %v1030, %v1029
        %v1033 = vsel %vm921, %v1031, 0
        %1035 = vmatprep.subr.bf16.mxu0 0
        %1036 = vmatpush1.bf16.msra.mxu0 0
        %1037 = vmatprep.subr.bf16.mxu0 0
        %1038 = vmatpush1.bf16.msra.mxu0 0
        %1039 = vmatprep.subr.bf16.mxu0 0
        %1040 = vmatpush1.bf16.msra.mxu0 0
        %1041 = vmatprep.subr.bf16.mxu0 0
        %1042 = vmatpush1.bf16.msra.mxu0 0
        %1043 = vmatprep.subr.bf16.mxu0 0
        %1044 = vmatpush1.bf16.msra.mxu0 0
        %1045 = vmatprep.subr.bf16.mxu0 0
        %1046 = vmatpush1.bf16.msra.mxu0 0
        %1047 = vmatprep.subr.bf16.mxu0 0
        %1048 = vmatpush1.bf16.msra.mxu0 0
        %1049 = vmatprep.subr.bf16.mxu0 0
        %1050 = vmatpush1.bf16.msra.mxu0 %v929
        %1051 = vmatprep.subr.bf16.mxu0 0
        %1052 = vmatpush2.bf16.msra.mxu0 0
        %1053 = vmatprep.subr.bf16.mxu0 0
        %1054 = vmatpush2.bf16.msra.mxu0 0
        %1055 = vmatprep.subr.bf16.mxu0 0
        %1056 = vmatpush2.bf16.msra.mxu0 0
        %1057 = vmatprep.subr.bf16.mxu0 0
        %1058 = vmatpush2.bf16.msra.mxu0 0
        %1059 = vmatprep.subr.bf16.mxu0 0
        %1060 = vmatpush2.bf16.msra.mxu0 0
        %1061 = vmatprep.subr.bf16.mxu0 0
        %1062 = vmatpush2.bf16.msra.mxu0 0
        %1063 = vmatprep.subr.bf16.mxu0 0
        %1064 = vmatpush2.bf16.msra.mxu0 0
        %1065 = vmatprep.subr.bf16.mxu0 0
        %1066 = vmatpush2.bf16.msra.mxu0 0
        %1067 = vmatprep.mubr.bf16.mxu0 0
        %1068 = vmatmul.mubr.bf16.gmra.mxu0 %v1033
        %v1069 = vpop.f32.mrf.mxu0
        %v1070 = vadd.f32 0.0, %v1069
        %v1071 = vpop.f32.mrf.mxu0
        %v1072 = vpop.f32.mrf.mxu0
        %v1073 = vadd.f32 0.0, %v1072
        %v1074 = vpop.f32.mrf.mxu0
        %1075 = vdwg.mxu0
        %v1076 = vadd.f32 %v797, %v1018
        %v1077 = vadd.f32 %v798, %v1021
        %v1078 = vmax.f32 %v1076, 0.0
        %v1079 = vmax.f32 %v1077, 0.0
        %v1080 = vpack.c.bf16 %v1079, %v1078
        %v1081 = vld [vmem:[%s8] sm:$0xf]
        %v1082 = vld [vmem:[%s8 + $0x4] sm:$0xf]
        %v1083 = vld [vmem:[%s8 + $0x8] sm:$0xf]
        %v1084 = vld [vmem:[%s8 + $0xc] sm:$0xf]
        %v1085 = vld [vmem:[%s8 + $0x10] sm:$0xf]
        %v1086 = vld [vmem:[%s8 + $0x14] sm:$0xf]
        %v1087 = vld [vmem:[%s8 + $0x18] sm:$0xf]
        %v1088 = vld [vmem:[%s8 + $0x1c] sm:$0xf]
        %v1089 = vld [vmem:[%s8 + $0x20] sm:$0xf]
        %v1090 = vld [vmem:[%s8 + $0x24] sm:$0xf]
        %v1091 = vld [vmem:[%s8 + $0x28] sm:$0xf]
        %v1092 = vld [vmem:[%s8 + $0x2c] sm:$0xf]
        %v1093 = vld [vmem:[%s8 + $0x30] sm:$0xf]
        %v1094 = vld [vmem:[%s8 + $0x34] sm:$0xf]
        %v1095 = vld [vmem:[%s8 + $0x38] sm:$0xf]
        %v1096 = vld [vmem:[%s8 + $0x3c] sm:$0xf]
        %v1097 = vld [vmem:[%s9] sm:$0x1]
        %v1099 = vlaneseq
        %v1100 = vshrl.u32 %v1099, 7
        %v1101 = vsub.s32 0, %v1100
        %v1102 = vrot.slane %v1097, %v1101
        %v1120 = vunpack.c.l.b16 %v1081
        %v1121 = vunpack.c.l.b16 %v1082
        %v1122 = vunpack.c.l.b16 %v1083
        %v1123 = vunpack.c.l.b16 %v1084
        %v1124 = vunpack.c.l.b16 %v1085
        %v1125 = vunpack.c.l.b16 %v1086
        %v1126 = vunpack.c.l.b16 %v1087
        %v1127 = vunpack.c.l.b16 %v1088
        %v1128 = vunpack.c.l.b16 %v1089
        %v1129 = vunpack.c.l.b16 %v1090
        %v1130 = vunpack.c.l.b16 %v1091
        %v1131 = vunpack.c.l.b16 %v1092
        %v1132 = vunpack.c.l.b16 %v1093
        %v1133 = vunpack.c.l.b16 %v1094
        %v1134 = vunpack.c.l.b16 %v1095
        %v1135 = vunpack.c.l.b16 %v1096
        %v1136 = vpack.c.b16 %v1121, %v1120
        %v1137 = vpack.c.b16 %v1123, %v1122
        %v1138 = vpack.c.b16 %v1125, %v1124
        %v1139 = vpack.c.b16 %v1127, %v1126
        %v1140 = vpack.c.b16 %v1129, %v1128
        %v1141 = vpack.c.b16 %v1131, %v1130
        %v1142 = vpack.c.b16 %v1133, %v1132
        %v1143 = vpack.c.b16 %v1135, %v1134
        %1152 = vmatprep.subr.bf16.mxu0 0
        %1153 = vmatpush1.bf16.msra.mxu0 %v1143
        %1154 = vmatprep.subr.bf16.mxu0 0
        %1155 = vmatpush1.bf16.msra.mxu0 %v1142
        %1156 = vmatprep.subr.bf16.mxu0 0
        %1157 = vmatpush1.bf16.msra.mxu0 %v1141
        %1158 = vmatprep.subr.bf16.mxu0 0
        %1159 = vmatpush1.bf16.msra.mxu0 %v1140
        %1160 = vmatprep.subr.bf16.mxu0 0
        %1161 = vmatpush1.bf16.msra.mxu0 %v1139
        %1162 = vmatprep.subr.bf16.mxu0 0
        %1163 = vmatpush1.bf16.msra.mxu0 %v1138
        %1164 = vmatprep.subr.bf16.mxu0 0
        %1165 = vmatpush1.bf16.msra.mxu0 %v1137
        %1166 = vmatprep.subr.bf16.mxu0 0
        %1167 = vmatpush1.bf16.msra.mxu0 %v1136
        %1168 = vmatprep.subr.bf16.mxu0 0
        %1169 = vmatpush2.bf16.msra.mxu0 0
        %1170 = vmatprep.subr.bf16.mxu0 0
        %1171 = vmatpush2.bf16.msra.mxu0 0
        %1172 = vmatprep.subr.bf16.mxu0 0
        %1173 = vmatpush2.bf16.msra.mxu0 0
        %1174 = vmatprep.subr.bf16.mxu0 0
        %1175 = vmatpush2.bf16.msra.mxu0 0
        %1176 = vmatprep.subr.bf16.mxu0 0
        %1177 = vmatpush2.bf16.msra.mxu0 0
        %1178 = vmatprep.subr.bf16.mxu0 0
        %1179 = vmatpush2.bf16.msra.mxu0 0
        %1180 = vmatprep.subr.bf16.mxu0 0
        %1181 = vmatpush2.bf16.msra.mxu0 0
        %1182 = vmatprep.subr.bf16.mxu0 0
        %1183 = vmatpush2.bf16.msra.mxu0 0
        %1184 = vmatprep.mubr.bf16.mxu0 0
        %1185 = vmatmul.mubr.bf16.gmra.mxu0 %v1080
        %v1186 = vpop.f32.mrf.mxu0
        %v1187 = vadd.f32 %v1102, %v1186
        %v1188 = vpop.f32.mrf.mxu0
        %v1189 = vpop.f32.mrf.mxu0
        %v1190 = vadd.f32 %v1102, %v1189
        %v1191 = vpop.f32.mrf.mxu0
        %1192 = vdwg.mxu0
        %v1193 = vmax.f32 %v1187, 0.0
        %v1194 = vmax.f32 %v1190, 0.0
        %v1195 = vpack.c.bf16 %v1194, %v1193
        %v1196 = vld [vmem:[%s10] sm:$0xf]
        %v1197 = vld [vmem:[%s10 + $0x4] sm:$0xf]
        %v1198 = vld [vmem:[%s10 + $0x8] sm:$0xf]
        %v1199 = vld [vmem:[%s10 + $0xc] sm:$0xf]
        %v1200 = vld [vmem:[%s10 + $0x10] sm:$0xf]
        %v1201 = vld [vmem:[%s10 + $0x14] sm:$0xf]
        %v1202 = vld [vmem:[%s10 + $0x18] sm:$0xf]
        %v1203 = vld [vmem:[%s10 + $0x1c] sm:$0xf]
        %v1204 = vld [vmem:[%s10 + $0x20] sm:$0xf]
        %v1205 = vld [vmem:[%s10 + $0x24] sm:$0xf]
        %v1206 = vld [vmem:[%s10 + $0x28] sm:$0xf]
        %v1207 = vld [vmem:[%s10 + $0x2c] sm:$0xf]
        %v1208 = vld [vmem:[%s10 + $0x30] sm:$0xf]
        %v1209 = vld [vmem:[%s10 + $0x34] sm:$0xf]
        %v1210 = vld [vmem:[%s10 + $0x38] sm:$0xf]
        %v1211 = vld [vmem:[%s10 + $0x3c] sm:$0xf]
        %v1212 = vld [vmem:[%s11] sm:$0x1]
        %v1214 = vlaneseq
        %v1215 = vshrl.u32 %v1214, 7
        %v1216 = vsub.s32 0, %v1215
        %v1217 = vrot.slane %v1212, %v1216
        %v1235 = vunpack.c.l.b16 %v1196
        %v1236 = vunpack.c.l.b16 %v1197
        %v1237 = vunpack.c.l.b16 %v1198
        %v1238 = vunpack.c.l.b16 %v1199
        %v1239 = vunpack.c.l.b16 %v1200
        %v1240 = vunpack.c.l.b16 %v1201
        %v1241 = vunpack.c.l.b16 %v1202
        %v1242 = vunpack.c.l.b16 %v1203
        %v1243 = vunpack.c.l.b16 %v1204
        %v1244 = vunpack.c.l.b16 %v1205
        %v1245 = vunpack.c.l.b16 %v1206
        %v1246 = vunpack.c.l.b16 %v1207
        %v1247 = vunpack.c.l.b16 %v1208
        %v1248 = vunpack.c.l.b16 %v1209
        %v1249 = vunpack.c.l.b16 %v1210
        %v1250 = vunpack.c.l.b16 %v1211
        %v1251 = vpack.c.b16 %v1236, %v1235
        %v1252 = vpack.c.b16 %v1238, %v1237
        %v1253 = vpack.c.b16 %v1240, %v1239
        %v1254 = vpack.c.b16 %v1242, %v1241
        %v1255 = vpack.c.b16 %v1244, %v1243
        %v1256 = vpack.c.b16 %v1246, %v1245
        %v1257 = vpack.c.b16 %v1248, %v1247
        %v1258 = vpack.c.b16 %v1250, %v1249
        %1267 = vmatprep.subr.bf16.mxu0 0
        %1268 = vmatpush1.bf16.msra.mxu0 %v1258
        %1269 = vmatprep.subr.bf16.mxu0 0
        %1270 = vmatpush1.bf16.msra.mxu0 %v1257
        %1271 = vmatprep.subr.bf16.mxu0 0
        %1272 = vmatpush1.bf16.msra.mxu0 %v1256
        %1273 = vmatprep.subr.bf16.mxu0 0
        %1274 = vmatpush1.bf16.msra.mxu0 %v1255
        %1275 = vmatprep.subr.bf16.mxu0 0
        %1276 = vmatpush1.bf16.msra.mxu0 %v1254
        %1277 = vmatprep.subr.bf16.mxu0 0
        %1278 = vmatpush1.bf16.msra.mxu0 %v1253
        %1279 = vmatprep.subr.bf16.mxu0 0
        %1280 = vmatpush1.bf16.msra.mxu0 %v1252
        %1281 = vmatprep.subr.bf16.mxu0 0
        %1282 = vmatpush1.bf16.msra.mxu0 %v1251
        %1283 = vmatprep.subr.bf16.mxu0 0
        %1284 = vmatpush2.bf16.msra.mxu0 0
        %1285 = vmatprep.subr.bf16.mxu0 0
        %1286 = vmatpush2.bf16.msra.mxu0 0
        %1287 = vmatprep.subr.bf16.mxu0 0
        %1288 = vmatpush2.bf16.msra.mxu0 0
        %1289 = vmatprep.subr.bf16.mxu0 0
        %1290 = vmatpush2.bf16.msra.mxu0 0
        %1291 = vmatprep.subr.bf16.mxu0 0
        %1292 = vmatpush2.bf16.msra.mxu0 0
        %1293 = vmatprep.subr.bf16.mxu0 0
        %1294 = vmatpush2.bf16.msra.mxu0 0
        %1295 = vmatprep.subr.bf16.mxu0 0
        %1296 = vmatpush2.bf16.msra.mxu0 0
        %1297 = vmatprep.subr.bf16.mxu0 0
        %1298 = vmatpush2.bf16.msra.mxu0 0
        %1299 = vmatprep.mubr.bf16.mxu0 0
        %1300 = vmatmul.mubr.bf16.gmra.mxu0 %v1195
        %v1301 = vpop.f32.mrf.mxu0
        %v1302 = vadd.f32 %v1217, %v1301
        %v1303 = vpop.f32.mrf.mxu0
        %v1304 = vpop.f32.mrf.mxu0
        %v1305 = vadd.f32 %v1217, %v1304
        %v1306 = vpop.f32.mrf.mxu0
        %1307 = vdwg.mxu0
        %vm1308 = vcmask 39936
        %1309 = vst.msk [vmem:[#allocation2] sm:$0xff] %vm1308, %v1302
        %1310 = vst.msk [vmem:[#allocation2 + $0x8] sm:$0xff] %vm1308, %v1305
        %v1311 = vadd.f32 %v797, %v1070
        %v1312 = vadd.f32 %v798, %v1073
        %v1313 = vmax.f32 %v1311, 0.0
        %v1314 = vmax.f32 %v1312, 0.0
        %v1315 = vpack.c.bf16 %v1314, %v1313
        %v1316 = vld [vmem:[%s8] sm:$0xf]
        %v1317 = vld [vmem:[%s8 + $0x4] sm:$0xf]
        %v1318 = vld [vmem:[%s8 + $0x8] sm:$0xf]
        %v1319 = vld [vmem:[%s8 + $0xc] sm:$0xf]
        %v1320 = vld [vmem:[%s8 + $0x10] sm:$0xf]
        %v1321 = vld [vmem:[%s8 + $0x14] sm:$0xf]
        %v1322 = vld [vmem:[%s8 + $0x18] sm:$0xf]
        %v1323 = vld [vmem:[%s8 + $0x1c] sm:$0xf]
        %v1324 = vld [vmem:[%s8 + $0x20] sm:$0xf]
        %v1325 = vld [vmem:[%s8 + $0x24] sm:$0xf]
        %v1326 = vld [vmem:[%s8 + $0x28] sm:$0xf]
        %v1327 = vld [vmem:[%s8 + $0x2c] sm:$0xf]
        %v1328 = vld [vmem:[%s8 + $0x30] sm:$0xf]
        %v1329 = vld [vmem:[%s8 + $0x34] sm:$0xf]
        %v1330 = vld [vmem:[%s8 + $0x38] sm:$0xf]
        %v1331 = vld [vmem:[%s8 + $0x3c] sm:$0xf]
        %v1332 = vld [vmem:[%s9] sm:$0x1]
        %v1334 = vlaneseq
        %v1335 = vshrl.u32 %v1334, 7
        %v1336 = vsub.s32 0, %v1335
        %v1337 = vrot.slane %v1332, %v1336
        %v1355 = vunpack.c.l.b16 %v1316
        %v1356 = vunpack.c.l.b16 %v1317
        %v1357 = vunpack.c.l.b16 %v1318
        %v1358 = vunpack.c.l.b16 %v1319
        %v1359 = vunpack.c.l.b16 %v1320
        %v1360 = vunpack.c.l.b16 %v1321
        %v1361 = vunpack.c.l.b16 %v1322
        %v1362 = vunpack.c.l.b16 %v1323
        %v1363 = vunpack.c.l.b16 %v1324
        %v1364 = vunpack.c.l.b16 %v1325
        %v1365 = vunpack.c.l.b16 %v1326
        %v1366 = vunpack.c.l.b16 %v1327
        %v1367 = vunpack.c.l.b16 %v1328
        %v1368 = vunpack.c.l.b16 %v1329
        %v1369 = vunpack.c.l.b16 %v1330
        %v1370 = vunpack.c.l.b16 %v1331
        %v1371 = vpack.c.b16 %v1356, %v1355
        %v1372 = vpack.c.b16 %v1358, %v1357
        %v1373 = vpack.c.b16 %v1360, %v1359
        %v1374 = vpack.c.b16 %v1362, %v1361
        %v1375 = vpack.c.b16 %v1364, %v1363
        %v1376 = vpack.c.b16 %v1366, %v1365
        %v1377 = vpack.c.b16 %v1368, %v1367
        %v1378 = vpack.c.b16 %v1370, %v1369
        %1387 = vmatprep.subr.bf16.mxu0 0
        %1388 = vmatpush1.bf16.msra.mxu0 %v1378
        %1389 = vmatprep.subr.bf16.mxu0 0
        %1390 = vmatpush1.bf16.msra.mxu0 %v1377
        %1391 = vmatprep.subr.bf16.mxu0 0
        %1392 = vmatpush1.bf16.msra.mxu0 %v1376
        %1393 = vmatprep.subr.bf16.mxu0 0
        %1394 = vmatpush1.bf16.msra.mxu0 %v1375
        %1395 = vmatprep.subr.bf16.mxu0 0
        %1396 = vmatpush1.bf16.msra.mxu0 %v1374
        %1397 = vmatprep.subr.bf16.mxu0 0
        %1398 = vmatpush1.bf16.msra.mxu0 %v1373
        %1399 = vmatprep.subr.bf16.mxu0 0
        %1400 = vmatpush1.bf16.msra.mxu0 %v1372
        %1401 = vmatprep.subr.bf16.mxu0 0
        %1402 = vmatpush1.bf16.msra.mxu0 %v1371
        %1403 = vmatprep.subr.bf16.mxu0 0
        %1404 = vmatpush2.bf16.msra.mxu0 0
        %1405 = vmatprep.subr.bf16.mxu0 0
        %1406 = vmatpush2.bf16.msra.mxu0 0
        %1407 = vmatprep.subr.bf16.mxu0 0
        %1408 = vmatpush2.bf16.msra.mxu0 0
        %1409 = vmatprep.subr.bf16.mxu0 0
        %1410 = vmatpush2.bf16.msra.mxu0 0
        %1411 = vmatprep.subr.bf16.mxu0 0
        %1412 = vmatpush2.bf16.msra.mxu0 0
        %1413 = vmatprep.subr.bf16.mxu0 0
        %1414 = vmatpush2.bf16.msra.mxu0 0
        %1415 = vmatprep.subr.bf16.mxu0 0
        %1416 = vmatpush2.bf16.msra.mxu0 0
        %1417 = vmatprep.subr.bf16.mxu0 0
        %1418 = vmatpush2.bf16.msra.mxu0 0
        %1419 = vmatprep.mubr.bf16.mxu0 0
        %1420 = vmatmul.mubr.bf16.gmra.mxu0 %v1315
        %v1421 = vpop.f32.mrf.mxu0
        %v1422 = vadd.f32 %v1337, %v1421
        %v1423 = vpop.f32.mrf.mxu0
        %v1424 = vpop.f32.mrf.mxu0
        %v1425 = vadd.f32 %v1337, %v1424
        %v1426 = vpop.f32.mrf.mxu0
        %1427 = vdwg.mxu0
        %v1428 = vmax.f32 %v1422, 0.0
        %v1429 = vmax.f32 %v1425, 0.0
        %v1430 = vpack.c.bf16 %v1429, %v1428
        %v1431 = vld [vmem:[%s10] sm:$0xf]
        %v1432 = vld [vmem:[%s10 + $0x4] sm:$0xf]
        %v1433 = vld [vmem:[%s10 + $0x8] sm:$0xf]
        %v1434 = vld [vmem:[%s10 + $0xc] sm:$0xf]
        %v1435 = vld [vmem:[%s10 + $0x10] sm:$0xf]
        %v1436 = vld [vmem:[%s10 + $0x14] sm:$0xf]
        %v1437 = vld [vmem:[%s10 + $0x18] sm:$0xf]
        %v1438 = vld [vmem:[%s10 + $0x1c] sm:$0xf]
        %v1439 = vld [vmem:[%s10 + $0x20] sm:$0xf]
        %v1440 = vld [vmem:[%s10 + $0x24] sm:$0xf]
        %v1441 = vld [vmem:[%s10 + $0x28] sm:$0xf]
        %v1442 = vld [vmem:[%s10 + $0x2c] sm:$0xf]
        %v1443 = vld [vmem:[%s10 + $0x30] sm:$0xf]
        %v1444 = vld [vmem:[%s10 + $0x34] sm:$0xf]
        %v1445 = vld [vmem:[%s10 + $0x38] sm:$0xf]
        %v1446 = vld [vmem:[%s10 + $0x3c] sm:$0xf]
        %v1447 = vld [vmem:[%s11] sm:$0x1]
        %v1449 = vlaneseq
        %v1450 = vshrl.u32 %v1449, 7
        %v1451 = vsub.s32 0, %v1450
        %v1452 = vrot.slane %v1447, %v1451
        %v1470 = vunpack.c.l.b16 %v1431
        %v1471 = vunpack.c.l.b16 %v1432
        %v1472 = vunpack.c.l.b16 %v1433
        %v1473 = vunpack.c.l.b16 %v1434
        %v1474 = vunpack.c.l.b16 %v1435
        %v1475 = vunpack.c.l.b16 %v1436
        %v1476 = vunpack.c.l.b16 %v1437
        %v1477 = vunpack.c.l.b16 %v1438
        %v1478 = vunpack.c.l.b16 %v1439
        %v1479 = vunpack.c.l.b16 %v1440
        %v1480 = vunpack.c.l.b16 %v1441
        %v1481 = vunpack.c.l.b16 %v1442
        %v1482 = vunpack.c.l.b16 %v1443
        %v1483 = vunpack.c.l.b16 %v1444
        %v1484 = vunpack.c.l.b16 %v1445
        %v1485 = vunpack.c.l.b16 %v1446
        %v1486 = vpack.c.b16 %v1471, %v1470
        %v1487 = vpack.c.b16 %v1473, %v1472
        %v1488 = vpack.c.b16 %v1475, %v1474
        %v1489 = vpack.c.b16 %v1477, %v1476
        %v1490 = vpack.c.b16 %v1479, %v1478
        %v1491 = vpack.c.b16 %v1481, %v1480
        %v1492 = vpack.c.b16 %v1483, %v1482
        %v1493 = vpack.c.b16 %v1485, %v1484
        %1502 = vmatprep.subr.bf16.mxu0 0
        %1503 = vmatpush1.bf16.msra.mxu0 %v1493
        %1504 = vmatprep.subr.bf16.mxu0 0
        %1505 = vmatpush1.bf16.msra.mxu0 %v1492
        %1506 = vmatprep.subr.bf16.mxu0 0
        %1507 = vmatpush1.bf16.msra.mxu0 %v1491
        %1508 = vmatprep.subr.bf16.mxu0 0
        %1509 = vmatpush1.bf16.msra.mxu0 %v1490
        %1510 = vmatprep.subr.bf16.mxu0 0
        %1511 = vmatpush1.bf16.msra.mxu0 %v1489
        %1512 = vmatprep.subr.bf16.mxu0 0
        %1513 = vmatpush1.bf16.msra.mxu0 %v1488
        %1514 = vmatprep.subr.bf16.mxu0 0
        %1515 = vmatpush1.bf16.msra.mxu0 %v1487
        %1516 = vmatprep.subr.bf16.mxu0 0
        %1517 = vmatpush1.bf16.msra.mxu0 %v1486
        %1518 = vmatprep.subr.bf16.mxu0 0
        %1519 = vmatpush2.bf16.msra.mxu0 0
        %1520 = vmatprep.subr.bf16.mxu0 0
        %1521 = vmatpush2.bf16.msra.mxu0 0
        %1522 = vmatprep.subr.bf16.mxu0 0
        %1523 = vmatpush2.bf16.msra.mxu0 0
        %1524 = vmatprep.subr.bf16.mxu0 0
        %1525 = vmatpush2.bf16.msra.mxu0 0
        %1526 = vmatprep.subr.bf16.mxu0 0
        %1527 = vmatpush2.bf16.msra.mxu0 0
        %1528 = vmatprep.subr.bf16.mxu0 0
        %1529 = vmatpush2.bf16.msra.mxu0 0
        %1530 = vmatprep.subr.bf16.mxu0 0
        %1531 = vmatpush2.bf16.msra.mxu0 0
        %1532 = vmatprep.subr.bf16.mxu0 0
        %1533 = vmatpush2.bf16.msra.mxu0 0
        %1534 = vmatprep.mubr.bf16.mxu0 0
        %1535 = vmatmul.mubr.bf16.gmra.mxu0 %v1430
        %v1536 = vpop.f32.mrf.mxu0
        %v1537 = vadd.f32 %v1452, %v1536
        %v1538 = vpop.f32.mrf.mxu0
        %v1539 = vpop.f32.mrf.mxu0
        %v1540 = vadd.f32 %v1452, %v1539
        %v1541 = vpop.f32.mrf.mxu0
        %1542 = vdwg.mxu0
        %s1543 = scalar_lea.vmem [#allocation2], 16
        %1544 = vst.msk [vmem:[%s1543] sm:$0xff] %vm1308, %v1537
        %1545 = vst.msk [vmem:[%s1543 + $0x8] sm:$0xff] %vm1308, %v1540
        %v1546 = vadd.f32 %v851, %v966
        %v1547 = vadd.f32 %v852, %v969
        %v1548 = vmax.f32 %v1546, 0.0
        %v1549 = vmax.f32 %v1547, 0.0
        %v1550 = vpack.c.bf16 %v1549, %v1548
        %v1551 = vld [vmem:[%s8] sm:$0xf]
        %v1552 = vld [vmem:[%s8 + $0x4] sm:$0xf]
        %v1553 = vld [vmem:[%s8 + $0x8] sm:$0xf]
        %v1554 = vld [vmem:[%s8 + $0xc] sm:$0xf]
        %v1555 = vld [vmem:[%s8 + $0x10] sm:$0xf]
        %v1556 = vld [vmem:[%s8 + $0x14] sm:$0xf]
        %v1557 = vld [vmem:[%s8 + $0x18] sm:$0xf]
        %v1558 = vld [vmem:[%s8 + $0x1c] sm:$0xf]
        %v1559 = vld [vmem:[%s8 + $0x20] sm:$0xf]
        %v1560 = vld [vmem:[%s8 + $0x24] sm:$0xf]
        %v1561 = vld [vmem:[%s8 + $0x28] sm:$0xf]
        %v1562 = vld [vmem:[%s8 + $0x2c] sm:$0xf]
        %v1563 = vld [vmem:[%s8 + $0x30] sm:$0xf]
        %v1564 = vld [vmem:[%s8 + $0x34] sm:$0xf]
        %v1565 = vld [vmem:[%s8 + $0x38] sm:$0xf]
        %v1566 = vld [vmem:[%s8 + $0x3c] sm:$0xf]
        %v1567 = vld [vmem:[%s9] sm:$0x1]
        %v1569 = vlaneseq
        %v1570 = vshrl.u32 %v1569, 7
        %v1571 = vsub.s32 0, %v1570
        %v1572 = vrot.slane %v1567, %v1571
        %v1590 = vunpack.c.l.b16 %v1551
        %v1591 = vunpack.c.l.b16 %v1552
        %v1592 = vunpack.c.l.b16 %v1553
        %v1593 = vunpack.c.l.b16 %v1554
        %v1594 = vunpack.c.l.b16 %v1555
        %v1595 = vunpack.c.l.b16 %v1556
        %v1596 = vunpack.c.l.b16 %v1557
        %v1597 = vunpack.c.l.b16 %v1558
        %v1598 = vunpack.c.l.b16 %v1559
        %v1599 = vunpack.c.l.b16 %v1560
        %v1600 = vunpack.c.l.b16 %v1561
        %v1601 = vunpack.c.l.b16 %v1562
        %v1602 = vunpack.c.l.b16 %v1563
        %v1603 = vunpack.c.l.b16 %v1564
        %v1604 = vunpack.c.l.b16 %v1565
        %v1605 = vunpack.c.l.b16 %v1566
        %v1606 = vpack.c.b16 %v1591, %v1590
        %v1607 = vpack.c.b16 %v1593, %v1592
        %v1608 = vpack.c.b16 %v1595, %v1594
        %v1609 = vpack.c.b16 %v1597, %v1596
        %v1610 = vpack.c.b16 %v1599, %v1598
        %v1611 = vpack.c.b16 %v1601, %v1600
        %v1612 = vpack.c.b16 %v1603, %v1602
        %v1613 = vpack.c.b16 %v1605, %v1604
        %1622 = vmatprep.subr.bf16.mxu0 0
        %1623 = vmatpush1.bf16.msra.mxu0 %v1613
        %1624 = vmatprep.subr.bf16.mxu0 0
        %1625 = vmatpush1.bf16.msra.mxu0 %v1612
        %1626 = vmatprep.subr.bf16.mxu0 0
        %1627 = vmatpush1.bf16.msra.mxu0 %v1611
        %1628 = vmatprep.subr.bf16.mxu0 0
        %1629 = vmatpush1.bf16.msra.mxu0 %v1610
        %1630 = vmatprep.subr.bf16.mxu0 0
        %1631 = vmatpush1.bf16.msra.mxu0 %v1609
        %1632 = vmatprep.subr.bf16.mxu0 0
        %1633 = vmatpush1.bf16.msra.mxu0 %v1608
        %1634 = vmatprep.subr.bf16.mxu0 0
        %1635 = vmatpush1.bf16.msra.mxu0 %v1607
        %1636 = vmatprep.subr.bf16.mxu0 0
        %1637 = vmatpush1.bf16.msra.mxu0 %v1606
        %1638 = vmatprep.subr.bf16.mxu0 0
        %1639 = vmatpush2.bf16.msra.mxu0 0
        %1640 = vmatprep.subr.bf16.mxu0 0
        %1641 = vmatpush2.bf16.msra.mxu0 0
        %1642 = vmatprep.subr.bf16.mxu0 0
        %1643 = vmatpush2.bf16.msra.mxu0 0
        %1644 = vmatprep.subr.bf16.mxu0 0
        %1645 = vmatpush2.bf16.msra.mxu0 0
        %1646 = vmatprep.subr.bf16.mxu0 0
        %1647 = vmatpush2.bf16.msra.mxu0 0
        %1648 = vmatprep.subr.bf16.mxu0 0
        %1649 = vmatpush2.bf16.msra.mxu0 0
        %1650 = vmatprep.subr.bf16.mxu0 0
        %1651 = vmatpush2.bf16.msra.mxu0 0
        %1652 = vmatprep.subr.bf16.mxu0 0
        %1653 = vmatpush2.bf16.msra.mxu0 0
        %1654 = vmatprep.mubr.bf16.mxu0 0
        %1655 = vmatmul.mubr.bf16.gmra.mxu0 %v1550
        %v1656 = vpop.f32.mrf.mxu0
        %v1657 = vadd.f32 %v1572, %v1656
        %v1658 = vpop.f32.mrf.mxu0
        %v1659 = vpop.f32.mrf.mxu0
        %v1660 = vadd.f32 %v1572, %v1659
        %v1661 = vpop.f32.mrf.mxu0
        %1662 = vdwg.mxu0
        %v1663 = vmax.f32 %v1657, 0.0
        %v1664 = vmax.f32 %v1660, 0.0
        %v1665 = vpack.c.bf16 %v1664, %v1663
        %v1666 = vld [vmem:[%s10] sm:$0xf]
        %v1667 = vld [vmem:[%s10 + $0x4] sm:$0xf]
        %v1668 = vld [vmem:[%s10 + $0x8] sm:$0xf]
        %v1669 = vld [vmem:[%s10 + $0xc] sm:$0xf]
        %v1670 = vld [vmem:[%s10 + $0x10] sm:$0xf]
        %v1671 = vld [vmem:[%s10 + $0x14] sm:$0xf]
        %v1672 = vld [vmem:[%s10 + $0x18] sm:$0xf]
        %v1673 = vld [vmem:[%s10 + $0x1c] sm:$0xf]
        %v1674 = vld [vmem:[%s10 + $0x20] sm:$0xf]
        %v1675 = vld [vmem:[%s10 + $0x24] sm:$0xf]
        %v1676 = vld [vmem:[%s10 + $0x28] sm:$0xf]
        %v1677 = vld [vmem:[%s10 + $0x2c] sm:$0xf]
        %v1678 = vld [vmem:[%s10 + $0x30] sm:$0xf]
        %v1679 = vld [vmem:[%s10 + $0x34] sm:$0xf]
        %v1680 = vld [vmem:[%s10 + $0x38] sm:$0xf]
        %v1681 = vld [vmem:[%s10 + $0x3c] sm:$0xf]
        %v1682 = vld [vmem:[%s11] sm:$0x1]
        %v1684 = vlaneseq
        %v1685 = vshrl.u32 %v1684, 7
        %v1686 = vsub.s32 0, %v1685
        %v1687 = vrot.slane %v1682, %v1686
        %v1705 = vunpack.c.l.b16 %v1666
        %v1706 = vunpack.c.l.b16 %v1667
        %v1707 = vunpack.c.l.b16 %v1668
        %v1708 = vunpack.c.l.b16 %v1669
        %v1709 = vunpack.c.l.b16 %v1670
        %v1710 = vunpack.c.l.b16 %v1671
        %v1711 = vunpack.c.l.b16 %v1672
        %v1712 = vunpack.c.l.b16 %v1673
        %v1713 = vunpack.c.l.b16 %v1674
        %v1714 = vunpack.c.l.b16 %v1675
        %v1715 = vunpack.c.l.b16 %v1676
        %v1716 = vunpack.c.l.b16 %v1677
        %v1717 = vunpack.c.l.b16 %v1678
        %v1718 = vunpack.c.l.b16 %v1679
        %v1719 = vunpack.c.l.b16 %v1680
        %v1720 = vunpack.c.l.b16 %v1681
        %v1721 = vpack.c.b16 %v1706, %v1705
        %v1722 = vpack.c.b16 %v1708, %v1707
        %v1723 = vpack.c.b16 %v1710, %v1709
        %v1724 = vpack.c.b16 %v1712, %v1711
        %v1725 = vpack.c.b16 %v1714, %v1713
        %v1726 = vpack.c.b16 %v1716, %v1715
        %v1727 = vpack.c.b16 %v1718, %v1717
        %v1728 = vpack.c.b16 %v1720, %v1719
        %1737 = vmatprep.subr.bf16.mxu0 0
        %1738 = vmatpush1.bf16.msra.mxu0 %v1728
        %1739 = vmatprep.subr.bf16.mxu0 0
        %1740 = vmatpush1.bf16.msra.mxu0 %v1727
        %1741 = vmatprep.subr.bf16.mxu0 0
        %1742 = vmatpush1.bf16.msra.mxu0 %v1726
        %1743 = vmatprep.subr.bf16.mxu0 0
        %1744 = vmatpush1.bf16.msra.mxu0 %v1725
        %1745 = vmatprep.subr.bf16.mxu0 0
        %1746 = vmatpush1.bf16.msra.mxu0 %v1724
        %1747 = vmatprep.subr.bf16.mxu0 0
        %1748 = vmatpush1.bf16.msra.mxu0 %v1723
        %1749 = vmatprep.subr.bf16.mxu0 0
        %1750 = vmatpush1.bf16.msra.mxu0 %v1722
        %1751 = vmatprep.subr.bf16.mxu0 0
        %1752 = vmatpush1.bf16.msra.mxu0 %v1721
        %1753 = vmatprep.subr.bf16.mxu0 0
        %1754 = vmatpush2.bf16.msra.mxu0 0
        %1755 = vmatprep.subr.bf16.mxu0 0
        %1756 = vmatpush2.bf16.msra.mxu0 0
        %1757 = vmatprep.subr.bf16.mxu0 0
        %1758 = vmatpush2.bf16.msra.mxu0 0
        %1759 = vmatprep.subr.bf16.mxu0 0
        %1760 = vmatpush2.bf16.msra.mxu0 0
        %1761 = vmatprep.subr.bf16.mxu0 0
        %1762 = vmatpush2.bf16.msra.mxu0 0
        %1763 = vmatprep.subr.bf16.mxu0 0
        %1764 = vmatpush2.bf16.msra.mxu0 0
        %1765 = vmatprep.subr.bf16.mxu0 0
        %1766 = vmatpush2.bf16.msra.mxu0 0
        %1767 = vmatprep.subr.bf16.mxu0 0
        %1768 = vmatpush2.bf16.msra.mxu0 0
        %1769 = vmatprep.mubr.bf16.mxu0 0
        %1770 = vmatmul.mubr.bf16.gmra.mxu0 %v1665
        %v1771 = vpop.f32.mrf.mxu0
        %v1772 = vadd.f32 %v1687, %v1771
        %v1773 = vpop.f32.mrf.mxu0
        %v1774 = vpop.f32.mrf.mxu0
        %v1775 = vadd.f32 %v1687, %v1774
        %v1776 = vpop.f32.mrf.mxu0
        %1777 = vdwg.mxu0
        %s1778 = scalar_lea.vmem [#allocation2], 32
        %1779 = vst.msk [vmem:[%s1778] sm:$0xff] %vm1308, %v1772
        %1780 = vst.msk [vmem:[%s1778 + $0x8] sm:$0xff] %vm1308, %v1775
        %v1781 = vadd.f32 %v851, %v1070
        %v1782 = vadd.f32 %v852, %v1073
        %v1783 = vmax.f32 %v1781, 0.0
        %v1784 = vmax.f32 %v1782, 0.0
        %v1785 = vpack.c.bf16 %v1784, %v1783
        %v1786 = vld [vmem:[%s8] sm:$0xf]
        %v1787 = vld [vmem:[%s8 + $0x4] sm:$0xf]
        %v1788 = vld [vmem:[%s8 + $0x8] sm:$0xf]
        %v1789 = vld [vmem:[%s8 + $0xc] sm:$0xf]
        %v1790 = vld [vmem:[%s8 + $0x10] sm:$0xf]
        %v1791 = vld [vmem:[%s8 + $0x14] sm:$0xf]
        %v1792 = vld [vmem:[%s8 + $0x18] sm:$0xf]
        %v1793 = vld [vmem:[%s8 + $0x1c] sm:$0xf]
        %v1794 = vld [vmem:[%s8 + $0x20] sm:$0xf]
        %v1795 = vld [vmem:[%s8 + $0x24] sm:$0xf]
        %v1796 = vld [vmem:[%s8 + $0x28] sm:$0xf]
        %v1797 = vld [vmem:[%s8 + $0x2c] sm:$0xf]
        %v1798 = vld [vmem:[%s8 + $0x30] sm:$0xf]
        %v1799 = vld [vmem:[%s8 + $0x34] sm:$0xf]
        %v1800 = vld [vmem:[%s8 + $0x38] sm:$0xf]
        %v1801 = vld [vmem:[%s8 + $0x3c] sm:$0xf]
        %v1802 = vld [vmem:[%s9] sm:$0x1]
        %v1804 = vlaneseq
        %v1805 = vshrl.u32 %v1804, 7
        %v1806 = vsub.s32 0, %v1805
        %v1807 = vrot.slane %v1802, %v1806
        %v1825 = vunpack.c.l.b16 %v1786
        %v1826 = vunpack.c.l.b16 %v1787
        %v1827 = vunpack.c.l.b16 %v1788
        %v1828 = vunpack.c.l.b16 %v1789
        %v1829 = vunpack.c.l.b16 %v1790
        %v1830 = vunpack.c.l.b16 %v1791
        %v1831 = vunpack.c.l.b16 %v1792
        %v1832 = vunpack.c.l.b16 %v1793
        %v1833 = vunpack.c.l.b16 %v1794
        %v1834 = vunpack.c.l.b16 %v1795
        %v1835 = vunpack.c.l.b16 %v1796
        %v1836 = vunpack.c.l.b16 %v1797
        %v1837 = vunpack.c.l.b16 %v1798
        %v1838 = vunpack.c.l.b16 %v1799
        %v1839 = vunpack.c.l.b16 %v1800
        %v1840 = vunpack.c.l.b16 %v1801
        %v1841 = vpack.c.b16 %v1826, %v1825
        %v1842 = vpack.c.b16 %v1828, %v1827
        %v1843 = vpack.c.b16 %v1830, %v1829
        %v1844 = vpack.c.b16 %v1832, %v1831
        %v1845 = vpack.c.b16 %v1834, %v1833
        %v1846 = vpack.c.b16 %v1836, %v1835
        %v1847 = vpack.c.b16 %v1838, %v1837
        %v1848 = vpack.c.b16 %v1840, %v1839
        %1857 = vmatprep.subr.bf16.mxu0 0
        %1858 = vmatpush1.bf16.msra.mxu0 %v1848
        %1859 = vmatprep.subr.bf16.mxu0 0
        %1860 = vmatpush1.bf16.msra.mxu0 %v1847
        %1861 = vmatprep.subr.bf16.mxu0 0
        %1862 = vmatpush1.bf16.msra.mxu0 %v1846
        %1863 = vmatprep.subr.bf16.mxu0 0
        %1864 = vmatpush1.bf16.msra.mxu0 %v1845
        %1865 = vmatprep.subr.bf16.mxu0 0
        %1866 = vmatpush1.bf16.msra.mxu0 %v1844
        %1867 = vmatprep.subr.bf16.mxu0 0
        %1868 = vmatpush1.bf16.msra.mxu0 %v1843
        %1869 = vmatprep.subr.bf16.mxu0 0
        %1870 = vmatpush1.bf16.msra.mxu0 %v1842
        %1871 = vmatprep.subr.bf16.mxu0 0
        %1872 = vmatpush1.bf16.msra.mxu0 %v1841
        %1873 = vmatprep.subr.bf16.mxu0 0
        %1874 = vmatpush2.bf16.msra.mxu0 0
        %1875 = vmatprep.subr.bf16.mxu0 0
        %1876 = vmatpush2.bf16.msra.mxu0 0
        %1877 = vmatprep.subr.bf16.mxu0 0
        %1878 = vmatpush2.bf16.msra.mxu0 0
        %1879 = vmatprep.subr.bf16.mxu0 0
        %1880 = vmatpush2.bf16.msra.mxu0 0
        %1881 = vmatprep.subr.bf16.mxu0 0
        %1882 = vmatpush2.bf16.msra.mxu0 0
        %1883 = vmatprep.subr.bf16.mxu0 0
        %1884 = vmatpush2.bf16.msra.mxu0 0
        %1885 = vmatprep.subr.bf16.mxu0 0
        %1886 = vmatpush2.bf16.msra.mxu0 0
        %1887 = vmatprep.subr.bf16.mxu0 0
        %1888 = vmatpush2.bf16.msra.mxu0 0
        %1889 = vmatprep.mubr.bf16.mxu0 0
        %1890 = vmatmul.mubr.bf16.gmra.mxu0 %v1785
        %v1891 = vpop.f32.mrf.mxu0
        %v1892 = vadd.f32 %v1807, %v1891
        %v1893 = vpop.f32.mrf.mxu0
        %v1894 = vpop.f32.mrf.mxu0
        %v1895 = vadd.f32 %v1807, %v1894
        %v1896 = vpop.f32.mrf.mxu0
        %1897 = vdwg.mxu0
        %v1898 = vmax.f32 %v1892, 0.0
        %v1899 = vmax.f32 %v1895, 0.0
        %v1900 = vpack.c.bf16 %v1899, %v1898
        %v1901 = vld [vmem:[%s10] sm:$0xf]
        %v1902 = vld [vmem:[%s10 + $0x4] sm:$0xf]
        %v1903 = vld [vmem:[%s10 + $0x8] sm:$0xf]
        %v1904 = vld [vmem:[%s10 + $0xc] sm:$0xf]
        %v1905 = vld [vmem:[%s10 + $0x10] sm:$0xf]
        %v1906 = vld [vmem:[%s10 + $0x14] sm:$0xf]
        %v1907 = vld [vmem:[%s10 + $0x18] sm:$0xf]
        %v1908 = vld [vmem:[%s10 + $0x1c] sm:$0xf]
        %v1909 = vld [vmem:[%s10 + $0x20] sm:$0xf]
        %v1910 = vld [vmem:[%s10 + $0x24] sm:$0xf]
        %v1911 = vld [vmem:[%s10 + $0x28] sm:$0xf]
        %v1912 = vld [vmem:[%s10 + $0x2c] sm:$0xf]
        %v1913 = vld [vmem:[%s10 + $0x30] sm:$0xf]
        %v1914 = vld [vmem:[%s10 + $0x34] sm:$0xf]
        %v1915 = vld [vmem:[%s10 + $0x38] sm:$0xf]
        %v1916 = vld [vmem:[%s10 + $0x3c] sm:$0xf]
        %v1917 = vld [vmem:[%s11] sm:$0x1]
        %v1919 = vlaneseq
        %v1920 = vshrl.u32 %v1919, 7
        %v1921 = vsub.s32 0, %v1920
        %v1922 = vrot.slane %v1917, %v1921
        %v1940 = vunpack.c.l.b16 %v1901
        %v1941 = vunpack.c.l.b16 %v1902
        %v1942 = vunpack.c.l.b16 %v1903
        %v1943 = vunpack.c.l.b16 %v1904
        %v1944 = vunpack.c.l.b16 %v1905
        %v1945 = vunpack.c.l.b16 %v1906
        %v1946 = vunpack.c.l.b16 %v1907
        %v1947 = vunpack.c.l.b16 %v1908
        %v1948 = vunpack.c.l.b16 %v1909
        %v1949 = vunpack.c.l.b16 %v1910
        %v1950 = vunpack.c.l.b16 %v1911
        %v1951 = vunpack.c.l.b16 %v1912
        %v1952 = vunpack.c.l.b16 %v1913
        %v1953 = vunpack.c.l.b16 %v1914
        %v1954 = vunpack.c.l.b16 %v1915
        %v1955 = vunpack.c.l.b16 %v1916
        %v1956 = vpack.c.b16 %v1941, %v1940
        %v1957 = vpack.c.b16 %v1943, %v1942
        %v1958 = vpack.c.b16 %v1945, %v1944
        %v1959 = vpack.c.b16 %v1947, %v1946
        %v1960 = vpack.c.b16 %v1949, %v1948
        %v1961 = vpack.c.b16 %v1951, %v1950
        %v1962 = vpack.c.b16 %v1953, %v1952
        %v1963 = vpack.c.b16 %v1955, %v1954
        %1972 = vmatprep.subr.bf16.mxu0 0
        %1973 = vmatpush1.bf16.msra.mxu0 %v1963
        %1974 = vmatprep.subr.bf16.mxu0 0
        %1975 = vmatpush1.bf16.msra.mxu0 %v1962
        %1976 = vmatprep.subr.bf16.mxu0 0
        %1977 = vmatpush1.bf16.msra.mxu0 %v1961
        %1978 = vmatprep.subr.bf16.mxu0 0
        %1979 = vmatpush1.bf16.msra.mxu0 %v1960
        %1980 = vmatprep.subr.bf16.mxu0 0
        %1981 = vmatpush1.bf16.msra.mxu0 %v1959
        %1982 = vmatprep.subr.bf16.mxu0 0
        %1983 = vmatpush1.bf16.msra.mxu0 %v1958
        %1984 = vmatprep.subr.bf16.mxu0 0
        %1985 = vmatpush1.bf16.msra.mxu0 %v1957
        %1986 = vmatprep.subr.bf16.mxu0 0
        %1987 = vmatpush1.bf16.msra.mxu0 %v1956
        %1988 = vmatprep.subr.bf16.mxu0 0
        %1989 = vmatpush2.bf16.msra.mxu0 0
        %1990 = vmatprep.subr.bf16.mxu0 0
        %1991 = vmatpush2.bf16.msra.mxu0 0
        %1992 = vmatprep.subr.bf16.mxu0 0
        %1993 = vmatpush2.bf16.msra.mxu0 0
        %1994 = vmatprep.subr.bf16.mxu0 0
        %1995 = vmatpush2.bf16.msra.mxu0 0
        %1996 = vmatprep.subr.bf16.mxu0 0
        %1997 = vmatpush2.bf16.msra.mxu0 0
        %1998 = vmatprep.subr.bf16.mxu0 0
        %1999 = vmatpush2.bf16.msra.mxu0 0
        %2000 = vmatprep.subr.bf16.mxu0 0
        %2001 = vmatpush2.bf16.msra.mxu0 0
        %2002 = vmatprep.subr.bf16.mxu0 0
        %2003 = vmatpush2.bf16.msra.mxu0 0
        %2004 = vmatprep.mubr.bf16.mxu0 0
        %2005 = vmatmul.mubr.bf16.gmra.mxu0 %v1900
        %v2006 = vpop.f32.mrf.mxu0
        %v2007 = vadd.f32 %v1922, %v2006
        %v2008 = vpop.f32.mrf.mxu0
        %v2009 = vpop.f32.mrf.mxu0
        %v2010 = vadd.f32 %v1922, %v2009
        %v2011 = vpop.f32.mrf.mxu0
        %2012 = vdwg.mxu0
        %s2013 = scalar_lea.vmem [#allocation2], 48
        %2014 = vst.msk [vmem:[%s2013] sm:$0xff] %vm1308, %v2007
        %2015 = vst.msk [vmem:[%s2013 + $0x8] sm:$0xff] %vm1308, %v2010
        %v2016 = vadd.f32 %v905, %v966
        %v2017 = vadd.f32 %v906, %v969
        %v2018 = vmax.f32 %v2016, 0.0
        %v2019 = vmax.f32 %v2017, 0.0
        %v2020 = vpack.c.bf16 %v2019, %v2018
        %v2021 = vld [vmem:[%s8] sm:$0xf]
        %v2022 = vld [vmem:[%s8 + $0x4] sm:$0xf]
        %v2023 = vld [vmem:[%s8 + $0x8] sm:$0xf]
        %v2024 = vld [vmem:[%s8 + $0xc] sm:$0xf]
        %v2025 = vld [vmem:[%s8 + $0x10] sm:$0xf]
        %v2026 = vld [vmem:[%s8 + $0x14] sm:$0xf]
        %v2027 = vld [vmem:[%s8 + $0x18] sm:$0xf]
        %v2028 = vld [vmem:[%s8 + $0x1c] sm:$0xf]
        %v2029 = vld [vmem:[%s8 + $0x20] sm:$0xf]
        %v2030 = vld [vmem:[%s8 + $0x24] sm:$0xf]
        %v2031 = vld [vmem:[%s8 + $0x28] sm:$0xf]
        %v2032 = vld [vmem:[%s8 + $0x2c] sm:$0xf]
        %v2033 = vld [vmem:[%s8 + $0x30] sm:$0xf]
        %v2034 = vld [vmem:[%s8 + $0x34] sm:$0xf]
        %v2035 = vld [vmem:[%s8 + $0x38] sm:$0xf]
        %v2036 = vld [vmem:[%s8 + $0x3c] sm:$0xf]
        %v2037 = vld [vmem:[%s9] sm:$0x1]
        %v2039 = vlaneseq
        %v2040 = vshrl.u32 %v2039, 7
        %v2041 = vsub.s32 0, %v2040
        %v2042 = vrot.slane %v2037, %v2041
        %v2060 = vunpack.c.l.b16 %v2021
        %v2061 = vunpack.c.l.b16 %v2022
        %v2062 = vunpack.c.l.b16 %v2023
        %v2063 = vunpack.c.l.b16 %v2024
        %v2064 = vunpack.c.l.b16 %v2025
        %v2065 = vunpack.c.l.b16 %v2026
        %v2066 = vunpack.c.l.b16 %v2027
        %v2067 = vunpack.c.l.b16 %v2028
        %v2068 = vunpack.c.l.b16 %v2029
        %v2069 = vunpack.c.l.b16 %v2030
        %v2070 = vunpack.c.l.b16 %v2031
        %v2071 = vunpack.c.l.b16 %v2032
        %v2072 = vunpack.c.l.b16 %v2033
        %v2073 = vunpack.c.l.b16 %v2034
        %v2074 = vunpack.c.l.b16 %v2035
        %v2075 = vunpack.c.l.b16 %v2036
        %v2076 = vpack.c.b16 %v2061, %v2060
        %v2077 = vpack.c.b16 %v2063, %v2062
        %v2078 = vpack.c.b16 %v2065, %v2064
        %v2079 = vpack.c.b16 %v2067, %v2066
        %v2080 = vpack.c.b16 %v2069, %v2068
        %v2081 = vpack.c.b16 %v2071, %v2070
        %v2082 = vpack.c.b16 %v2073, %v2072
        %v2083 = vpack.c.b16 %v2075, %v2074
        %2092 = vmatprep.subr.bf16.mxu0 0
        %2093 = vmatpush1.bf16.msra.mxu0 %v2083
        %2094 = vmatprep.subr.bf16.mxu0 0
        %2095 = vmatpush1.bf16.msra.mxu0 %v2082
        %2096 = vmatprep.subr.bf16.mxu0 0
        %2097 = vmatpush1.bf16.msra.mxu0 %v2081
        %2098 = vmatprep.subr.bf16.mxu0 0
        %2099 = vmatpush1.bf16.msra.mxu0 %v2080
        %2100 = vmatprep.subr.bf16.mxu0 0
        %2101 = vmatpush1.bf16.msra.mxu0 %v2079
        %2102 = vmatprep.subr.bf16.mxu0 0
        %2103 = vmatpush1.bf16.msra.mxu0 %v2078
        %2104 = vmatprep.subr.bf16.mxu0 0
        %2105 = vmatpush1.bf16.msra.mxu0 %v2077
        %2106 = vmatprep.subr.bf16.mxu0 0
        %2107 = vmatpush1.bf16.msra.mxu0 %v2076
        %2108 = vmatprep.subr.bf16.mxu0 0
        %2109 = vmatpush2.bf16.msra.mxu0 0
        %2110 = vmatprep.subr.bf16.mxu0 0
        %2111 = vmatpush2.bf16.msra.mxu0 0
        %2112 = vmatprep.subr.bf16.mxu0 0
        %2113 = vmatpush2.bf16.msra.mxu0 0
        %2114 = vmatprep.subr.bf16.mxu0 0
        %2115 = vmatpush2.bf16.msra.mxu0 0
        %2116 = vmatprep.subr.bf16.mxu0 0
        %2117 = vmatpush2.bf16.msra.mxu0 0
        %2118 = vmatprep.subr.bf16.mxu0 0
        %2119 = vmatpush2.bf16.msra.mxu0 0
        %2120 = vmatprep.subr.bf16.mxu0 0
        %2121 = vmatpush2.bf16.msra.mxu0 0
        %2122 = vmatprep.subr.bf16.mxu0 0
        %2123 = vmatpush2.bf16.msra.mxu0 0
        %2124 = vmatprep.mubr.bf16.mxu0 0
        %2125 = vmatmul.mubr.bf16.gmra.mxu0 %v2020
        %v2126 = vpop.f32.mrf.mxu0
        %v2127 = vadd.f32 %v2042, %v2126
        %v2128 = vpop.f32.mrf.mxu0
        %v2129 = vpop.f32.mrf.mxu0
        %v2130 = vadd.f32 %v2042, %v2129
        %v2131 = vpop.f32.mrf.mxu0
        %2132 = vdwg.mxu0
        %v2133 = vmax.f32 %v2127, 0.0
        %v2134 = vmax.f32 %v2130, 0.0
        %v2135 = vpack.c.bf16 %v2134, %v2133
        %v2136 = vld [vmem:[%s10] sm:$0xf]
        %v2137 = vld [vmem:[%s10 + $0x4] sm:$0xf]
        %v2138 = vld [vmem:[%s10 + $0x8] sm:$0xf]
        %v2139 = vld [vmem:[%s10 + $0xc] sm:$0xf]
        %v2140 = vld [vmem:[%s10 + $0x10] sm:$0xf]
        %v2141 = vld [vmem:[%s10 + $0x14] sm:$0xf]
        %v2142 = vld [vmem:[%s10 + $0x18] sm:$0xf]
        %v2143 = vld [vmem:[%s10 + $0x1c] sm:$0xf]
        %v2144 = vld [vmem:[%s10 + $0x20] sm:$0xf]
        %v2145 = vld [vmem:[%s10 + $0x24] sm:$0xf]
        %v2146 = vld [vmem:[%s10 + $0x28] sm:$0xf]
        %v2147 = vld [vmem:[%s10 + $0x2c] sm:$0xf]
        %v2148 = vld [vmem:[%s10 + $0x30] sm:$0xf]
        %v2149 = vld [vmem:[%s10 + $0x34] sm:$0xf]
        %v2150 = vld [vmem:[%s10 + $0x38] sm:$0xf]
        %v2151 = vld [vmem:[%s10 + $0x3c] sm:$0xf]
        %v2152 = vld [vmem:[%s11] sm:$0x1]
        %v2154 = vlaneseq
        %v2155 = vshrl.u32 %v2154, 7
        %v2156 = vsub.s32 0, %v2155
        %v2157 = vrot.slane %v2152, %v2156
        %v2175 = vunpack.c.l.b16 %v2136
        %v2176 = vunpack.c.l.b16 %v2137
        %v2177 = vunpack.c.l.b16 %v2138
        %v2178 = vunpack.c.l.b16 %v2139
        %v2179 = vunpack.c.l.b16 %v2140
        %v2180 = vunpack.c.l.b16 %v2141
        %v2181 = vunpack.c.l.b16 %v2142
        %v2182 = vunpack.c.l.b16 %v2143
        %v2183 = vunpack.c.l.b16 %v2144
        %v2184 = vunpack.c.l.b16 %v2145
        %v2185 = vunpack.c.l.b16 %v2146
        %v2186 = vunpack.c.l.b16 %v2147
        %v2187 = vunpack.c.l.b16 %v2148
        %v2188 = vunpack.c.l.b16 %v2149
        %v2189 = vunpack.c.l.b16 %v2150
        %v2190 = vunpack.c.l.b16 %v2151
        %v2191 = vpack.c.b16 %v2176, %v2175
        %v2192 = vpack.c.b16 %v2178, %v2177
        %v2193 = vpack.c.b16 %v2180, %v2179
        %v2194 = vpack.c.b16 %v2182, %v2181
        %v2195 = vpack.c.b16 %v2184, %v2183
        %v2196 = vpack.c.b16 %v2186, %v2185
        %v2197 = vpack.c.b16 %v2188, %v2187
        %v2198 = vpack.c.b16 %v2190, %v2189
        %2207 = vmatprep.subr.bf16.mxu0 0
        %2208 = vmatpush1.bf16.msra.mxu0 %v2198
        %2209 = vmatprep.subr.bf16.mxu0 0
        %2210 = vmatpush1.bf16.msra.mxu0 %v2197
        %2211 = vmatprep.subr.bf16.mxu0 0
        %2212 = vmatpush1.bf16.msra.mxu0 %v2196
        %2213 = vmatprep.subr.bf16.mxu0 0
        %2214 = vmatpush1.bf16.msra.mxu0 %v2195
        %2215 = vmatprep.subr.bf16.mxu0 0
        %2216 = vmatpush1.bf16.msra.mxu0 %v2194
        %2217 = vmatprep.subr.bf16.mxu0 0
        %2218 = vmatpush1.bf16.msra.mxu0 %v2193
        %2219 = vmatprep.subr.bf16.mxu0 0
        %2220 = vmatpush1.bf16.msra.mxu0 %v2192
        %2221 = vmatprep.subr.bf16.mxu0 0
        %2222 = vmatpush1.bf16.msra.mxu0 %v2191
        %2223 = vmatprep.subr.bf16.mxu0 0
        %2224 = vmatpush2.bf16.msra.mxu0 0
        %2225 = vmatprep.subr.bf16.mxu0 0
        %2226 = vmatpush2.bf16.msra.mxu0 0
        %2227 = vmatprep.subr.bf16.mxu0 0
        %2228 = vmatpush2.bf16.msra.mxu0 0
        %2229 = vmatprep.subr.bf16.mxu0 0
        %2230 = vmatpush2.bf16.msra.mxu0 0
        %2231 = vmatprep.subr.bf16.mxu0 0
        %2232 = vmatpush2.bf16.msra.mxu0 0
        %2233 = vmatprep.subr.bf16.mxu0 0
        %2234 = vmatpush2.bf16.msra.mxu0 0
        %2235 = vmatprep.subr.bf16.mxu0 0
        %2236 = vmatpush2.bf16.msra.mxu0 0
        %2237 = vmatprep.subr.bf16.mxu0 0
        %2238 = vmatpush2.bf16.msra.mxu0 0
        %2239 = vmatprep.mubr.bf16.mxu0 0
        %2240 = vmatmul.mubr.bf16.gmra.mxu0 %v2135
        %v2241 = vpop.f32.mrf.mxu0
        %v2242 = vadd.f32 %v2157, %v2241
        %v2243 = vpop.f32.mrf.mxu0
        %v2244 = vpop.f32.mrf.mxu0
        %v2245 = vadd.f32 %v2157, %v2244
        %v2246 = vpop.f32.mrf.mxu0
        %2247 = vdwg.mxu0
        %s2248 = scalar_lea.vmem [#allocation2], 64
        %2249 = vst.msk [vmem:[%s2248] sm:$0xff] %vm1308, %v2242
        %2250 = vst.msk [vmem:[%s2248 + $0x8] sm:$0xff] %vm1308, %v2245
        %v2251 = vadd.f32 %v905, %v1018
        %v2252 = vadd.f32 %v906, %v1021
        %v2253 = vmax.f32 %v2251, 0.0
        %v2254 = vmax.f32 %v2252, 0.0
        %v2255 = vpack.c.bf16 %v2254, %v2253
        %v2256 = vld [vmem:[%s8] sm:$0xf]
        %v2257 = vld [vmem:[%s8 + $0x4] sm:$0xf]
        %v2258 = vld [vmem:[%s8 + $0x8] sm:$0xf]
        %v2259 = vld [vmem:[%s8 + $0xc] sm:$0xf]
        %v2260 = vld [vmem:[%s8 + $0x10] sm:$0xf]
        %v2261 = vld [vmem:[%s8 + $0x14] sm:$0xf]
        %v2262 = vld [vmem:[%s8 + $0x18] sm:$0xf]
        %v2263 = vld [vmem:[%s8 + $0x1c] sm:$0xf]
        %v2264 = vld [vmem:[%s8 + $0x20] sm:$0xf]
        %v2265 = vld [vmem:[%s8 + $0x24] sm:$0xf]
        %v2266 = vld [vmem:[%s8 + $0x28] sm:$0xf]
        %v2267 = vld [vmem:[%s8 + $0x2c] sm:$0xf]
        %v2268 = vld [vmem:[%s8 + $0x30] sm:$0xf]
        %v2269 = vld [vmem:[%s8 + $0x34] sm:$0xf]
        %v2270 = vld [vmem:[%s8 + $0x38] sm:$0xf]
        %v2271 = vld [vmem:[%s8 + $0x3c] sm:$0xf]
        %v2272 = vld [vmem:[%s9] sm:$0x1]
        %v2274 = vlaneseq
        %v2275 = vshrl.u32 %v2274, 7
        %v2276 = vsub.s32 0, %v2275
        %v2277 = vrot.slane %v2272, %v2276
        %v2295 = vunpack.c.l.b16 %v2256
        %v2296 = vunpack.c.l.b16 %v2257
        %v2297 = vunpack.c.l.b16 %v2258
        %v2298 = vunpack.c.l.b16 %v2259
        %v2299 = vunpack.c.l.b16 %v2260
        %v2300 = vunpack.c.l.b16 %v2261
        %v2301 = vunpack.c.l.b16 %v2262
        %v2302 = vunpack.c.l.b16 %v2263
        %v2303 = vunpack.c.l.b16 %v2264
        %v2304 = vunpack.c.l.b16 %v2265
        %v2305 = vunpack.c.l.b16 %v2266
        %v2306 = vunpack.c.l.b16 %v2267
        %v2307 = vunpack.c.l.b16 %v2268
        %v2308 = vunpack.c.l.b16 %v2269
        %v2309 = vunpack.c.l.b16 %v2270
        %v2310 = vunpack.c.l.b16 %v2271
        %v2311 = vpack.c.b16 %v2296, %v2295
        %v2312 = vpack.c.b16 %v2298, %v2297
        %v2313 = vpack.c.b16 %v2300, %v2299
        %v2314 = vpack.c.b16 %v2302, %v2301
        %v2315 = vpack.c.b16 %v2304, %v2303
        %v2316 = vpack.c.b16 %v2306, %v2305
        %v2317 = vpack.c.b16 %v2308, %v2307
        %v2318 = vpack.c.b16 %v2310, %v2309
        %2327 = vmatprep.subr.bf16.mxu0 0
        %2328 = vmatpush1.bf16.msra.mxu0 %v2318
        %2329 = vmatprep.subr.bf16.mxu0 0
        %2330 = vmatpush1.bf16.msra.mxu0 %v2317
        %2331 = vmatprep.subr.bf16.mxu0 0
        %2332 = vmatpush1.bf16.msra.mxu0 %v2316
        %2333 = vmatprep.subr.bf16.mxu0 0
        %2334 = vmatpush1.bf16.msra.mxu0 %v2315
        %2335 = vmatprep.subr.bf16.mxu0 0
        %2336 = vmatpush1.bf16.msra.mxu0 %v2314
        %2337 = vmatprep.subr.bf16.mxu0 0
        %2338 = vmatpush1.bf16.msra.mxu0 %v2313
        %2339 = vmatprep.subr.bf16.mxu0 0
        %2340 = vmatpush1.bf16.msra.mxu0 %v2312
        %2341 = vmatprep.subr.bf16.mxu0 0
        %2342 = vmatpush1.bf16.msra.mxu0 %v2311
        %2343 = vmatprep.subr.bf16.mxu0 0
        %2344 = vmatpush2.bf16.msra.mxu0 0
        %2345 = vmatprep.subr.bf16.mxu0 0
        %2346 = vmatpush2.bf16.msra.mxu0 0
        %2347 = vmatprep.subr.bf16.mxu0 0
        %2348 = vmatpush2.bf16.msra.mxu0 0
        %2349 = vmatprep.subr.bf16.mxu0 0
        %2350 = vmatpush2.bf16.msra.mxu0 0
        %2351 = vmatprep.subr.bf16.mxu0 0
        %2352 = vmatpush2.bf16.msra.mxu0 0
        %2353 = vmatprep.subr.bf16.mxu0 0
        %2354 = vmatpush2.bf16.msra.mxu0 0
        %2355 = vmatprep.subr.bf16.mxu0 0
        %2356 = vmatpush2.bf16.msra.mxu0 0
        %2357 = vmatprep.subr.bf16.mxu0 0
        %2358 = vmatpush2.bf16.msra.mxu0 0
        %2359 = vmatprep.mubr.bf16.mxu0 0
        %2360 = vmatmul.mubr.bf16.gmra.mxu0 %v2255
        %v2361 = vpop.f32.mrf.mxu0
        %v2362 = vadd.f32 %v2277, %v2361
        %v2363 = vpop.f32.mrf.mxu0
        %v2364 = vpop.f32.mrf.mxu0
        %v2365 = vadd.f32 %v2277, %v2364
        %v2366 = vpop.f32.mrf.mxu0
        %2367 = vdwg.mxu0
        %v2368 = vmax.f32 %v2362, 0.0
        %v2369 = vmax.f32 %v2365, 0.0
        %v2370 = vpack.c.bf16 %v2369, %v2368
        %v2371 = vld [vmem:[%s10] sm:$0xf]
        %v2372 = vld [vmem:[%s10 + $0x4] sm:$0xf]
        %v2373 = vld [vmem:[%s10 + $0x8] sm:$0xf]
        %v2374 = vld [vmem:[%s10 + $0xc] sm:$0xf]
        %v2375 = vld [vmem:[%s10 + $0x10] sm:$0xf]
        %v2376 = vld [vmem:[%s10 + $0x14] sm:$0xf]
        %v2377 = vld [vmem:[%s10 + $0x18] sm:$0xf]
        %v2378 = vld [vmem:[%s10 + $0x1c] sm:$0xf]
        %v2379 = vld [vmem:[%s10 + $0x20] sm:$0xf]
        %v2380 = vld [vmem:[%s10 + $0x24] sm:$0xf]
        %v2381 = vld [vmem:[%s10 + $0x28] sm:$0xf]
        %v2382 = vld [vmem:[%s10 + $0x2c] sm:$0xf]
        %v2383 = vld [vmem:[%s10 + $0x30] sm:$0xf]
        %v2384 = vld [vmem:[%s10 + $0x34] sm:$0xf]
        %v2385 = vld [vmem:[%s10 + $0x38] sm:$0xf]
        %v2386 = vld [vmem:[%s10 + $0x3c] sm:$0xf]
        %v2387 = vld [vmem:[%s11] sm:$0x1]
        %v2389 = vlaneseq
        %v2390 = vshrl.u32 %v2389, 7
        %v2391 = vsub.s32 0, %v2390
        %v2392 = vrot.slane %v2387, %v2391
        %v2410 = vunpack.c.l.b16 %v2371
        %v2411 = vunpack.c.l.b16 %v2372
        %v2412 = vunpack.c.l.b16 %v2373
        %v2413 = vunpack.c.l.b16 %v2374
        %v2414 = vunpack.c.l.b16 %v2375
        %v2415 = vunpack.c.l.b16 %v2376
        %v2416 = vunpack.c.l.b16 %v2377
        %v2417 = vunpack.c.l.b16 %v2378
        %v2418 = vunpack.c.l.b16 %v2379
        %v2419 = vunpack.c.l.b16 %v2380
        %v2420 = vunpack.c.l.b16 %v2381
        %v2421 = vunpack.c.l.b16 %v2382
        %v2422 = vunpack.c.l.b16 %v2383
        %v2423 = vunpack.c.l.b16 %v2384
        %v2424 = vunpack.c.l.b16 %v2385
        %v2425 = vunpack.c.l.b16 %v2386
        %v2426 = vpack.c.b16 %v2411, %v2410
        %v2427 = vpack.c.b16 %v2413, %v2412
        %v2428 = vpack.c.b16 %v2415, %v2414
        %v2429 = vpack.c.b16 %v2417, %v2416
        %v2430 = vpack.c.b16 %v2419, %v2418
        %v2431 = vpack.c.b16 %v2421, %v2420
        %v2432 = vpack.c.b16 %v2423, %v2422
        %v2433 = vpack.c.b16 %v2425, %v2424
        %2442 = vmatprep.subr.bf16.mxu0 0
        %2443 = vmatpush1.bf16.msra.mxu0 %v2433
        %2444 = vmatprep.subr.bf16.mxu0 0
        %2445 = vmatpush1.bf16.msra.mxu0 %v2432
        %2446 = vmatprep.subr.bf16.mxu0 0
        %2447 = vmatpush1.bf16.msra.mxu0 %v2431
        %2448 = vmatprep.subr.bf16.mxu0 0
        %2449 = vmatpush1.bf16.msra.mxu0 %v2430
        %2450 = vmatprep.subr.bf16.mxu0 0
        %2451 = vmatpush1.bf16.msra.mxu0 %v2429
        %2452 = vmatprep.subr.bf16.mxu0 0
        %2453 = vmatpush1.bf16.msra.mxu0 %v2428
        %2454 = vmatprep.subr.bf16.mxu0 0
        %2455 = vmatpush1.bf16.msra.mxu0 %v2427
        %2456 = vmatprep.subr.bf16.mxu0 0
        %2457 = vmatpush1.bf16.msra.mxu0 %v2426
        %2458 = vmatprep.subr.bf16.mxu0 0
        %2459 = vmatpush2.bf16.msra.mxu0 0
        %2460 = vmatprep.subr.bf16.mxu0 0
        %2461 = vmatpush2.bf16.msra.mxu0 0
        %2462 = vmatprep.subr.bf16.mxu0 0
        %2463 = vmatpush2.bf16.msra.mxu0 0
        %2464 = vmatprep.subr.bf16.mxu0 0
        %2465 = vmatpush2.bf16.msra.mxu0 0
        %2466 = vmatprep.subr.bf16.mxu0 0
        %2467 = vmatpush2.bf16.msra.mxu0 0
        %2468 = vmatprep.subr.bf16.mxu0 0
        %2469 = vmatpush2.bf16.msra.mxu0 0
        %2470 = vmatprep.subr.bf16.mxu0 0
        %2471 = vmatpush2.bf16.msra.mxu0 0
        %2472 = vmatprep.subr.bf16.mxu0 0
        %2473 = vmatpush2.bf16.msra.mxu0 0
        %2474 = vmatprep.mubr.bf16.mxu0 0
        %2475 = vmatmul.mubr.bf16.gmra.mxu0 %v2370
        %v2476 = vpop.f32.mrf.mxu0
        %v2477 = vadd.f32 %v2392, %v2476
        %v2478 = vpop.f32.mrf.mxu0
        %v2479 = vpop.f32.mrf.mxu0
        %v2480 = vadd.f32 %v2392, %v2479
        %v2481 = vpop.f32.mrf.mxu0
        %2482 = vdwg.mxu0
        %s2483 = scalar_lea.vmem [#allocation2], 80
        %2484 = vst.msk [vmem:[%s2483] sm:$0xff] %vm1308, %v2477
        %2485 = vst.msk [vmem:[%s2483 + $0x8] sm:$0xff] %vm1308, %v2480
        %v2486 = vld [vmem:[%s597] sm:$0xff]
        %v2487 = vld [vmem:[%s597 + $0x8] sm:$0xff]
        %s2488 = sadd.s32 0, 16
        %s2489 = scalar_lea.vmem %s597, %s2488 [#allocation5]
        %v2490 = vld [vmem:[%s2489] sm:$0xff]
        %v2491 = vld [vmem:[%s2489 + $0x8] sm:$0xff]
        %s2492 = sadd.s32 0, 32
        %s2493 = scalar_lea.vmem %s597, %s2492 [#allocation5]
        %v2494 = vld [vmem:[%s2493] sm:$0xff]
        %v2495 = vld [vmem:[%s2493 + $0x8] sm:$0xff]
        %v2496 = vld [vmem:[#allocation2] sm:$0xff]
        %v2497 = vld [vmem:[#allocation2 + $0x8] sm:$0xff]
        %v2498 = vmul.f32 %v2496, %v2486
        %v2499 = vmul.f32 %v2497, %v2487
        %v2500 = vsel %vm1308, %v2498, 0.0
        %2501 = vadd.xlane.f32.xlu0 %v2500
        %v2502 = vpop.xlane.xlu0 %2501
        %v2503 = vsel %vm1308, %v2499, 0.0
        %2504 = vadd.xlane.f32.xlu0 %v2503
        %v2505 = vpop.xlane.xlu0 %2504
        %v2506 = vadd.f32 %v2496, 0.0
        %v2507 = vadd.f32 %v2497, 0.0
        %v2508 = vadd.f32 %v2502, 0.0
        %v2509 = vadd.f32 %v2505, 0.0
        %s2510 = scalar_lea.vmem [#allocation2], %s2488
        %v2511 = vld [vmem:[%s2510] sm:$0xff]
        %v2512 = vld [vmem:[%s2510 + $0x8] sm:$0xff]
        %v2513 = vmul.f32 %v2511, %v2486
        %v2514 = vmul.f32 %v2512, %v2487
        %v2515 = vsel %vm1308, %v2513, 0.0
        %2516 = vadd.xlane.f32.xlu0 %v2515
        %v2517 = vpop.xlane.xlu0 %2516
        %v2518 = vsel %vm1308, %v2514, 0.0
        %2519 = vadd.xlane.f32.xlu0 %v2518
        %v2520 = vpop.xlane.xlu0 %2519
        %v2521 = vadd.f32 %v2506, %v2511
        %v2522 = vadd.f32 %v2507, %v2512
        %v2523 = vadd.f32 %v2508, %v2517
        %v2524 = vadd.f32 %v2509, %v2520
        %v2525 = vadd.f32 %v2517, 0.0
        %v2526 = vadd.f32 %v2520, 0.0
        %s2527 = scalar_lea.vmem [#allocation2], %s2492
        %v2528 = vld [vmem:[%s2527] sm:$0xff]
        %v2529 = vld [vmem:[%s2527 + $0x8] sm:$0xff]
        %v2530 = vmul.f32 %v2528, %v2490
        %v2531 = vmul.f32 %v2529, %v2491
        %v2532 = vsel %vm1308, %v2530, 0.0
        %2533 = vadd.xlane.f32.xlu0 %v2532
        %v2534 = vpop.xlane.xlu0 %2533
        %v2535 = vsel %vm1308, %v2531, 0.0
        %2536 = vadd.xlane.f32.xlu0 %v2535
        %v2537 = vpop.xlane.xlu0 %2536
        %v2538 = vadd.f32 %v2528, 0.0
        %v2539 = vadd.f32 %v2529, 0.0
        %v2540 = vadd.f32 %v2508, %v2534
        %v2541 = vadd.f32 %v2509, %v2537
        %v2542 = vadd.f32 %v2523, %v2534
        %v2543 = vadd.f32 %v2524, %v2537
        %s2544 = sadd.s32 0, 48
        %s2545 = scalar_lea.vmem [#allocation2], %s2544
        %v2546 = vld [vmem:[%s2545] sm:$0xff]
        %v2547 = vld [vmem:[%s2545 + $0x8] sm:$0xff]
        %v2548 = vmul.f32 %v2546, %v2490
        %v2549 = vmul.f32 %v2547, %v2491
        %v2550 = vsel %vm1308, %v2548, 0.0
        %2551 = vadd.xlane.f32.xlu0 %v2550
        %v2552 = vpop.xlane.xlu0 %2551
        %v2553 = vsel %vm1308, %v2549, 0.0
        %2554 = vadd.xlane.f32.xlu0 %v2553
        %v2555 = vpop.xlane.xlu0 %2554
        %v2556 = vadd.f32 %v2538, %v2546
        %v2557 = vadd.f32 %v2539, %v2547
        %v2558 = vadd.f32 %v2540, %v2552
        %v2559 = vadd.f32 %v2541, %v2555
        %v2560 = vadd.f32 %v2525, %v2552
        %v2561 = vadd.f32 %v2526, %v2555
        %v2562 = vadd.f32 %v2542, %v2552
        %v2563 = vadd.f32 %v2543, %v2555
        %s2564 = sadd.s32 0, 64
        %s2565 = scalar_lea.vmem [#allocation2], %s2564
        %v2566 = vld [vmem:[%s2565] sm:$0xff]
        %v2567 = vld [vmem:[%s2565 + $0x8] sm:$0xff]
        %v2568 = vmul.f32 %v2566, %v2494
        %v2569 = vmul.f32 %v2567, %v2495
        %v2570 = vsel %vm1308, %v2568, 0.0
        %2571 = vadd.xlane.f32.xlu0 %v2570
        %v2572 = vpop.xlane.xlu0 %2571
        %v2573 = vsel %vm1308, %v2569, 0.0
        %2574 = vadd.xlane.f32.xlu0 %v2573
        %v2575 = vpop.xlane.xlu0 %2574
        %v2576 = vadd.f32 %v2566, 0.0
        %v2577 = vadd.f32 %v2567, 0.0
        %v2578 = vadd.f32 %v2560, %v2572
        %v2579 = vadd.f32 %v2561, %v2575
        %v2580 = vadd.f32 %v2542, %v2572
        %v2581 = vadd.f32 %v2543, %v2575
        %v2582 = vadd.f32 %v2562, %v2572
        %v2583 = vadd.f32 %v2563, %v2575
        %s2584 = sadd.s32 0, 80
        %s2585 = scalar_lea.vmem [#allocation2], %s2584
        %v2586 = vld [vmem:[%s2585] sm:$0xff]
        %v2587 = vld [vmem:[%s2585 + $0x8] sm:$0xff]
        %v2588 = vmul.f32 %v2586, %v2494
        %v2589 = vmul.f32 %v2587, %v2495
        %v2590 = vsel %vm1308, %v2588, 0.0
        %2591 = vadd.xlane.f32.xlu0 %v2590
        %v2592 = vpop.xlane.xlu0 %2591
        %v2593 = vsel %vm1308, %v2589, 0.0
        %2594 = vadd.xlane.f32.xlu0 %v2593
        %v2595 = vpop.xlane.xlu0 %2594
        %v2596 = vadd.f32 %v2576, %v2586
        %v2597 = vadd.f32 %v2577, %v2587
        %v2598 = vadd.f32 %v2578, %v2592
        %v2599 = vadd.f32 %v2579, %v2595
        %v2600 = vadd.f32 %v2558, %v2592
        %v2601 = vadd.f32 %v2559, %v2595
        %v2602 = vadd.f32 %v2582, %v2592
        %v2603 = vadd.f32 %v2583, %v2595
        %v2604 = vsub.f32 %v2602, %v2580
        %v2605 = vsub.f32 %v2603, %v2581
        %v2606 = vmul.f32 %v2521, 2.0
        %v2607 = vmul.f32 %v2522, 2.0
        %v2608 = vadd.f32 %v2604, %v2606
        %v2609 = vadd.f32 %v2605, %v2607
        %2610 = vst.msk [vmem:[%s647] sm:$0xff] %vm1308, %v2608
        %2611 = vst.msk [vmem:[%s647 + $0x8] sm:$0xff] %vm1308, %v2609
        %v2612 = vsub.f32 %v2602, %v2600
        %v2613 = vsub.f32 %v2603, %v2601
        %v2614 = vmul.f32 %v2556, 2.0
        %v2615 = vmul.f32 %v2557, 2.0
        %v2616 = vadd.f32 %v2612, %v2614
        %v2617 = vadd.f32 %v2613, %v2615
        %s2618 = scalar_lea.vmem %s647, %s2488 [#allocation6]
        %2619 = vst.msk [vmem:[%s2618] sm:$0xff] %vm1308, %v2616
        %2620 = vst.msk [vmem:[%s2618 + $0x8] sm:$0xff] %vm1308, %v2617
        %v2621 = vsub.f32 %v2602, %v2598
        %v2622 = vsub.f32 %v2603, %v2599
        %v2623 = vmul.f32 %v2596, 2.0
        %v2624 = vmul.f32 %v2597, 2.0
        %v2625 = vadd.f32 %v2621, %v2623
        %v2626 = vadd.f32 %v2622, %v2624
        %s2627 = scalar_lea.vmem %s647, %s2492 [#allocation6]
        %2628 = vst.msk [vmem:[%s2627] sm:$0xff] %vm1308, %v2625
        %2629 = vst.msk [vmem:[%s2627 + $0x8] sm:$0xff] %vm1308, %v2626
        %s2630 = sand.u32 %s303, 1
        %s2631 = sand.u32 %s303, 1
        %s2632 = smul.addr %s2631, 48
        %s2633 = scalar_lea.vmem [#allocation6], %s2632
        // Predicated region
        $region189: #{tpu_custom_call.1} parent=175 // pred_check
          %p2634 = pneg %p313
        $region190: #{tpu_custom_call.1} parent=175 // pred_check_branch
          %2636 = sbr.rel (%p2634) target = $region192
        $region191: #{tpu_custom_call.1} parent=175 // pred_region
          %s2637 = smul.u32 2, %s23
          %s2638 = smul.addr %s2637, 8
          %s2639 = scalar_lea.vmem %s12, %s2638
          // Predicated region
          $region193: #{tpu_custom_call.1} parent=191 // pred_check
            _
          $region194: #{tpu_custom_call.1} parent=191 // pred_check_branch
            %2641 = sbr.rel (0) target = $region196
          $region195: #{tpu_custom_call.1} parent=191 // pred_region
            // Predicated region
            $region197: #{tpu_custom_call.1} parent=195 // pred_check
              _
            $region198: #{tpu_custom_call.1} parent=195 // pred_check_branch
              %2643 = sbr.rel (0) target = $region200
            $region199: #{tpu_custom_call.1} parent=195 // pred_region
              // Predicated region
              $region212: #{tpu_custom_call.1} parent=199 // pred_check
                _
              $region213: #{tpu_custom_call.1} parent=199 // pred_check_branch
                %2669 = sbr.rel (0) target = $region215
              $region214: #{tpu_custom_call.1} parent=199 // pred_region
                loop: start=0, step=1, limit=1
                $region216: #{tpu_custom_call.1} parent=214 // loop_pre_header
                  _
                $region217: #{tpu_custom_call.1} parent=214 // loop_header
                  %s2671 = sphi 0, %s2675
                  %p2672 = scmp.ge.s32.totalorder %s2671, 1
                  %s2676 = sphi %s2633, %s2633
                  %s2677 = sphi %s2639, %s2639
                $region218: #{tpu_custom_call.1} parent=214 // loop_header_branch
                  %2674 = sbr.rel (%p2672) target = $region222
                $region219: #{tpu_custom_call.1} parent=214 // loop_body
                  %v2678 = vld [vmem:[%s2676] sm:$0xff]
                  %2679 = vst [vmem:[%s2677] sm:$0xff] %v2678
                  %v2680 = vld [vmem:[%s2676 + $0x8] sm:$0xff]
                  %2681 = vst [vmem:[%s2677 + $0x8] sm:$0xff] %v2680
                  %v2682 = vld [vmem:[%s2676 + $0x10] sm:$0xff]
                  %2683 = vst [vmem:[%s2677 + $0x20] sm:$0xff] %v2682
                  %v2684 = vld [vmem:[%s2676 + $0x18] sm:$0xff]
                  %2685 = vst [vmem:[%s2677 + $0x28] sm:$0xff] %v2684
                  %v2686 = vld [vmem:[%s2676 + $0x20] sm:$0xff]
                  %2687 = vst [vmem:[%s2677 + $0x40] sm:$0xff] %v2686
                  %v2688 = vld [vmem:[%s2676 + $0x28] sm:$0xff]
                  %2689 = vst [vmem:[%s2677 + $0x48] sm:$0xff] %v2688
                $region220: #{tpu_custom_call.1} parent=214 // loop_footer
                  %s2675 = sadd.s32 1, %s2671
                $region221: #{tpu_custom_call.1} parent=214 // loop_footer_branch
                  %2670 = sbr.rel target = $region217
                $region222: #{tpu_custom_call.1} parent=214 // loop_exit
                  _
              $region215: #{tpu_custom_call.1} parent=199 // pred_fallthru
                _
              // Predicated region
              $region223: #{tpu_custom_call.1} parent=199 // pred_check
                _
              $region224: #{tpu_custom_call.1} parent=199 // pred_check_branch
                %2691 = sbr.rel target = $region226
              $region225: #{tpu_custom_call.1} parent=199 // pred_region
                _
              $region226: #{tpu_custom_call.1} parent=199 // pred_fallthru
                _
            $region200: #{tpu_custom_call.1} parent=195 // pred_fallthru
              _
            // Predicated region
            $region201: #{tpu_custom_call.1} parent=195 // pred_check
              _
            $region202: #{tpu_custom_call.1} parent=195 // pred_check_branch
              %2645 = sbr.rel target = $region204
            $region203: #{tpu_custom_call.1} parent=195 // pred_region
              %s2647 = ssub.s32 256, 1
              loop: start=0, step=1, limit=1
              $region205: #{tpu_custom_call.1} parent=203 // loop_pre_header
                _
              $region206: #{tpu_custom_call.1} parent=203 // loop_header
                %s2649 = sphi 0, %s2653
                %p2650 = scmp.ge.s32.totalorder %s2649, 1
                %s2654 = sphi %s2633, %s2633
                %s2655 = sphi %s2639, %s2639
              $region207: #{tpu_custom_call.1} parent=203 // loop_header_branch
                %2652 = sbr.rel (%p2650) target = $region211
              $region208: #{tpu_custom_call.1} parent=203 // loop_body
                %v2656 = vld [vmem:[%s2654] sm:%s2647]
                %2657 = vst [vmem:[%s2655] sm:%s2647] %v2656
                %v2658 = vld [vmem:[%s2654 + $0x8] sm:%s2647]
                %2659 = vst [vmem:[%s2655 + $0x8] sm:%s2647] %v2658
                %v2660 = vld [vmem:[%s2654 + $0x10] sm:%s2647]
                %2661 = vst [vmem:[%s2655 + $0x20] sm:%s2647] %v2660
                %v2662 = vld [vmem:[%s2654 + $0x18] sm:%s2647]
                %2663 = vst [vmem:[%s2655 + $0x28] sm:%s2647] %v2662
                %v2664 = vld [vmem:[%s2654 + $0x20] sm:%s2647]
                %2665 = vst [vmem:[%s2655 + $0x40] sm:%s2647] %v2664
                %v2666 = vld [vmem:[%s2654 + $0x28] sm:%s2647]
                %2667 = vst [vmem:[%s2655 + $0x48] sm:%s2647] %v2666
              $region209: #{tpu_custom_call.1} parent=203 // loop_footer
                %s2653 = sadd.s32 1, %s2649
              $region210: #{tpu_custom_call.1} parent=203 // loop_footer_branch
                %2648 = sbr.rel target = $region206
              $region211: #{tpu_custom_call.1} parent=203 // loop_exit
                _
            $region204: #{tpu_custom_call.1} parent=195 // pred_fallthru
              _
          $region196: #{tpu_custom_call.1} parent=191 // pred_fallthru
            _
          %2692 = vnop
        $region192: #{tpu_custom_call.1} parent=175 // pred_fallthru
          _
      $region176: #{tpu_custom_call.1} parent=5 // pred_fallthru
        _
      %p2693 = scmp.le.s32.totalorder 2, %s18
      // Predicated region
      $region227: #{tpu_custom_call.1} parent=5 // pred_check
        %p2694 = pneg %p2693
      $region228: #{tpu_custom_call.1} parent=5 // pred_check_branch
        %2696 = sbr.rel (%p2694) target = $region230
      $region229: #{tpu_custom_call.1} parent=5 // pred_region
        %s2697 = ssub.s32 %s18, 2
        // Predicated region
        $region231: #{tpu_custom_call.1} parent=229 // pred_check
          %p2698 = pneg %p319
        $region232: #{tpu_custom_call.1} parent=229 // pred_check_branch
          %2700 = sbr.rel (%p2698) target = $region234
        $region233: #{tpu_custom_call.1} parent=229 // pred_region
          %s2701 = sand.u32 %s304, 1
          %s2702 = sand.u32 %s304, 1
          %s2703 = smul.addr %s2702, 48
          %s2704 = scalar_lea.vmem [#allocation6], %s2703
        $region234: #{tpu_custom_call.1} parent=229 // pred_fallthru
          _
      $region230: #{tpu_custom_call.1} parent=5 // pred_fallthru
        _
    $region6: #{tpu_custom_call.1} parent=1 // loop_footer
      %s22 = sadd.s32 1, %s18
    $region7: #{tpu_custom_call.1} parent=1 // loop_footer_branch
      %17 = sbr.rel target = $region3
    $region8: #{tpu_custom_call.1} parent=1 // loop_exit
      _

</llo_original>
